<compile_context>
chip_gen: v5e
topology: v5e:2x2
jax: 0.10.0
libtpu: 0.0.40
codegen_flags: <defaults>
</compile_context>

<pallas_src>
import jax
import jax.numpy as jnp
from jax.experimental import pallas as pl
from jax.experimental.pallas import tpu as pltpu


_HIDDEN = (64, 128, 256, 512, 2048)
_OUT = 3 * 2048          # 6144


# --------------------------------------------------------------------------
# Kernel 1: the five small layers (z -> 64 -> 128 -> 256 -> 512 -> 2048).
# Everything is VMEM-resident; runs once (grid=(1,)).
# --------------------------------------------------------------------------
def _small_mlp_kernel(x_ref,
                      w1, b1, w2, b2, w3, b3, w4, b4, w5, b5,
                      h_ref):
    h = x_ref[...].astype(jnp.bfloat16)
    for w_ref, b_ref in ((w1, b1), (w2, b2), (w3, b3), (w4, b4), (w5, b5)):
        y = jnp.dot(h, w_ref[...], preferred_element_type=jnp.float32)
        y = y + b_ref[...]
        h = jnp.maximum(y, 0.0).astype(jnp.bfloat16)
    h_ref[...] = h


# --------------------------------------------------------------------------
# Kernel 2: the dominant 2048 x 6144 layer, streamed in lane-dense tiles.
# h is resident; int8 weight tile + per-column scale + bias are streamed.
# --------------------------------------------------------------------------
def _stream_head_kernel(h_ref, wq_ref, s_ref, b_ref, o_ref):
    # int8 -> bf16 widen (|q| <= 127 is exact in bf16), MXU dot in bf16 with
    # f32 accumulation, then per-column dequant scale + bias epilogue.
    w = wq_ref[...].astype(jnp.bfloat16)
    acc = jnp.dot(h_ref[...], w, preferred_element_type=jnp.float32)
    o_ref[...] = (acc * s_ref[...] + b_ref[...]).astype(o_ref.dtype)


# --------------------------------------------------------------------------
# Wrappers
# --------------------------------------------------------------------------
def _tile_config():
    """Pick (tile width, buffer depth) for the streamed last layer."""
    try:
        kind = jax.devices()[0].device_kind.lower()
    except Exception:  # pragma: no cover - defensive
        kind = ""
    if "7" in kind:
        # v7x: 2 TensorCores share the parallel grid axis -> keep an even
        # tile count (6144/1536 = 4 -> 2 tiles per core) and buffer deeper.
        return 1536, 3
    # v5e / v6e: single TC, 128 MiB VMEM -> bigger tiles, fewer grid steps.
    return 2048, 2


def _small_mlp(small_params, x):
    """x: (M, z_size) f32, M % 8 == 0.  Returns h: (M, 2048) bf16."""
    M, K = x.shape
    H = small_params[-1][0].shape[1]

    def const(shape):
        return pl.BlockSpec(shape, lambda i: (0, 0))

    in_specs = [const((M, K))]
    args = [x]
    for w, b in small_params:
        in_specs.append(const(w.shape))
        in_specs.append(const(b.shape))
        args.append(w)
        args.append(b)

    return pl.pallas_call(
        _small_mlp_kernel,
        out_shape=jax.ShapeDtypeStruct((M, H), jnp.bfloat16),
        grid_spec=pltpu.PrefetchScalarGridSpec(
            num_scalar_prefetch=0,
            grid=(1,),
            in_specs=in_specs,
            out_specs=const((M, H)),
        ),
        compiler_params=pltpu.CompilerParams(
            dimension_semantics=("arbitrary",),
        ),
    )(*args)


def _stream_head(head_params, h, *, tn, bufs):
    """h: (M, 2048) bf16.  Returns (M, 6144) f32."""
    wq, scale, bias = head_params
    M, Kh = h.shape
    N = wq.shape[1]
    assert N % tn == 0
    grid = (N // tn,)

    stream_kwargs = {}
    if bufs != 2:
        stream_kwargs["pipeline_mode"] = pl.Buffered(bufs)

    in_specs = [
        pl.BlockSpec((M, Kh), lambda j: (0, 0)),                      # h resident
        pl.BlockSpec((Kh, tn), lambda j: (0, j), **stream_kwargs),    # int8 weight stream
        pl.BlockSpec((1, tn), lambda j: (0, j), **stream_kwargs),     # per-col scale
        pl.BlockSpec((1, tn), lambda j: (0, j), **stream_kwargs),     # bias
    ]

    return pl.pallas_call(
        _stream_head_kernel,
        out_shape=jax.ShapeDtypeStruct((M, N), jnp.float32),
        grid_spec=pltpu.PrefetchScalarGridSpec(
            num_scalar_prefetch=0,
            grid=grid,
            in_specs=in_specs,
            out_specs=pl.BlockSpec((M, tn), lambda j: (0, j)),
        ),
        compiler_params=pltpu.CompilerParams(
            dimension_semantics=("parallel",),
            vmem_limit_bytes=24 * 1024 * 1024,   # right-sized (usage ~9 MiB)
        ),
    )(h, wq, scale, bias)


# --------------------------------------------------------------------------
# Parameters
# --------------------------------------------------------------------------
def init_generator_params(key, z_size, use_bias=True):
    """nn.Linear-shaped init.  Small-layer weights in bf16; the streamed last
    layer is symmetric int8 with per-output-column f32 scales; biases f32."""
    sizes = [z_size, *_HIDDEN, _OUT]
    raw = []
    for i in range(len(sizes) - 1):
        fan_in, fan_out = sizes[i], sizes[i + 1]
        key, kw, kb = jax.random.split(key, 3)
        bound = 1.0 / jnp.sqrt(float(fan_in))
        w = jax.random.uniform(kw, (fan_in, fan_out), jnp.float32, -bound, bound)
        if use_bias:
            b = jax.random.uniform(kb, (1, fan_out), jnp.float32, -bound, bound)
        else:
            b = jnp.zeros((1, fan_out), jnp.float32)
        raw.append((w, b))

    small = [(w.astype(jnp.bfloat16), b) for w, b in raw[:-1]]

    w6, b6 = raw[-1]
    amax = jnp.max(jnp.abs(w6), axis=0, keepdims=True)
    scale = jnp.maximum(amax, 1e-8) / 127.0
    q = jnp.clip(jnp.round(w6 / scale), -127.0, 127.0).astype(jnp.int8)
    return {"small": small, "head": (q, scale.astype(jnp.float32), b6)}


# --------------------------------------------------------------------------
# Forward (mirrors Generator.forward)
# --------------------------------------------------------------------------
def _flatten_z(z):
    # Original module does z.squeeze(); for the (B, z_size, 1, 1) inputs used
    # by this generator that is exactly "collapse trailing singleton dims".
    if z.ndim == 1:
        return z[None, :]
    return z.reshape(z.shape[0], -1)


def generator_forward(params, z, *, tn=None, bufs=None):
    if tn is None or bufs is None:
        t, d = _tile_config()
        tn = tn if tn is not None else t
        bufs = bufs if bufs is not None else d

    x = _flatten_z(z).astype(jnp.float32)
    M = x.shape[0]
    Mp = ((M + 7) // 8) * 8          # sublane alignment
    if Mp != M:
        x = jnp.pad(x, ((0, Mp - M), (0, 0)))

    h = _small_mlp(params["small"], x)           # (Mp, 2048) bf16
    out = _stream_head(params["head"], h, tn=tn, bufs=bufs)   # (Mp, 6144) f32
    return out[:M].reshape(-1, 3, 2048)


def reference_forward(params, z):
    """Pure-jnp reference using the same bf16/int8 math as the kernels."""
    x = _flatten_z(z).astype(jnp.float32)
    h = x.astype(jnp.bfloat16)
    for w, b in params["small"]:
        y = jnp.dot(h, w, preferred_element_type=jnp.float32) + b
        h = jnp.maximum(y, 0.0).astype(jnp.bfloat16)
    q, s, b6 = params["head"]
    y = jnp.dot(h, q.astype(jnp.bfloat16), preferred_element_type=jnp.float32)
    y = y * s + b6
    return y.reshape(-1, 3, 2048)


if __name__ == "__main__":
    B = 2
    Z_SIZE = 32
    USE_BIAS = True

    key = jax.random.PRNGKey(0)
    k_param, k_z = jax.random.split(key)
    params = init_generator_params(k_param, Z_SIZE, use_bias=USE_BIAS)

    # z arrives as (B, z_size, 1, 1); forward collapses the trailing 1x1.
    z = jax.random.normal(k_z, (B, Z_SIZE, 1, 1), jnp.float32)

    out = jax.block_until_ready(generator_forward(params, z))
    assert out.shape == (B, 3, 2048), out.shape

    ref = jax.block_until_ready(reference_forward(params, z))
    assert jnp.allclose(out, ref, atol=2e-3, rtol=1e-2), float(jnp.max(jnp.abs(out - ref)))

    print("KERNEL_OK")
</pallas_src>

<mosaic_0001>
module attributes {stable_mosaic.version = 11 : i64} {
  func.func @_small_mlp_kernel(%arg0: i32, %arg1: memref<8x32xf32, #tpu.memory_space<vmem>>, %arg2: memref<32x64xbf16, #tpu.memory_space<vmem>>, %arg3: memref<1x64xf32, #tpu.memory_space<vmem>>, %arg4: memref<64x128xbf16, #tpu.memory_space<vmem>>, %arg5: memref<1x128xf32, #tpu.memory_space<vmem>>, %arg6: memref<128x256xbf16, #tpu.memory_space<vmem>>, %arg7: memref<1x256xf32, #tpu.memory_space<vmem>>, %arg8: memref<256x512xbf16, #tpu.memory_space<vmem>>, %arg9: memref<1x512xf32, #tpu.memory_space<vmem>>, %arg10: memref<512x2048xbf16, #tpu.memory_space<vmem>>, %arg11: memref<1x2048xf32, #tpu.memory_space<vmem>>, %arg12: memref<8x2048xbf16, #tpu.memory_space<vmem>>) attributes {dimension_semantics = [#tpu.dimension_semantics<arbitrary>], iteration_bounds = array<i64: 1>, scalar_prefetch = 0 : i64, scratch_operands = 0 : i64, tpu.core_type = #tpu.core_type<tc>, window_params = [{pipeline_mode = #tpu.pipeline_mode<synchronous>, transform_indices = @transform_0, window_bounds = array<i64: 8, 32>}, {pipeline_mode = #tpu.pipeline_mode<synchronous>, transform_indices = @transform_1, window_bounds = array<i64: 32, 64>}, {pipeline_mode = #tpu.pipeline_mode<synchronous>, transform_indices = @transform_2, window_bounds = array<i64: 1, 64>}, {pipeline_mode = #tpu.pipeline_mode<synchronous>, transform_indices = @transform_3, window_bounds = array<i64: 64, 128>}, {pipeline_mode = #tpu.pipeline_mode<synchronous>, transform_indices = @transform_4, window_bounds = array<i64: 1, 128>}, {pipeline_mode = #tpu.pipeline_mode<synchronous>, transform_indices = @transform_5, window_bounds = array<i64: 128, 256>}, {pipeline_mode = #tpu.pipeline_mode<synchronous>, transform_indices = @transform_6, window_bounds = array<i64: 1, 256>}, {pipeline_mode = #tpu.pipeline_mode<synchronous>, transform_indices = @transform_7, window_bounds = array<i64: 256, 512>}, {pipeline_mode = #tpu.pipeline_mode<synchronous>, transform_indices = @transform_8, window_bounds = array<i64: 1, 512>}, {pipeline_mode = #tpu.pipeline_mode<synchronous>, transform_indices = @transform_9, window_bounds = array<i64: 512, 2048>}, {pipeline_mode = #tpu.pipeline_mode<synchronous>, transform_indices = @transform_10, window_bounds = array<i64: 1, 2048>}, {pipeline_mode = #tpu.pipeline_mode<synchronous>, transform_indices = @transform_11, window_bounds = array<i64: 8, 2048>}]} {
    %c0 = arith.constant 0 : index
    %c0_0 = arith.constant 0 : index
    %0 = vector.load %arg1[%c0, %c0_0] : memref<8x32xf32, #tpu.memory_space<vmem>>, vector<8x32xf32>
    %1 = arith.truncf %0 : vector<8x32xf32> to vector<8x32xbf16>
    %c0_1 = arith.constant 0 : index
    %c0_2 = arith.constant 0 : index
    %2 = vector.load %arg2[%c0_1, %c0_2] : memref<32x64xbf16, #tpu.memory_space<vmem>>, vector<32x64xbf16>
    %cst = arith.constant dense<0.000000e+00> : vector<8x64xf32>
    %3 = tpu.matmul %1, %2, %cst {dimension_numbers = #tpu.dot_dimension_numbers<[1], [0], [0], [1], [0, 0, 1, 1], [], []>} : vector<8x32xbf16>, vector<32x64xbf16>, vector<8x64xf32> -> vector<8x64xf32>
    %c0_3 = arith.constant 0 : index
    %c0_4 = arith.constant 0 : index
    %4 = vector.load %arg3[%c0_3, %c0_4] : memref<1x64xf32, #tpu.memory_space<vmem>>, vector<1x64xf32>
    %5 = vector.broadcast %4 : vector<1x64xf32> to vector<8x64xf32>
    %6 = arith.addf %3, %5 : vector<8x64xf32>
    %cst_5 = arith.constant 0.000000e+00 : f32
    %7 = vector.broadcast %cst_5 : f32 to vector<8x64xf32>
    %8 = arith.maximumf %6, %7 : vector<8x64xf32>
    %9 = arith.truncf %8 : vector<8x64xf32> to vector<8x64xbf16>
    %c0_6 = arith.constant 0 : index
    %c0_7 = arith.constant 0 : index
    %10 = vector.load %arg4[%c0_6, %c0_7] : memref<64x128xbf16, #tpu.memory_space<vmem>>, vector<64x128xbf16>
    %cst_8 = arith.constant dense<0.000000e+00> : vector<8x128xf32>
    %11 = tpu.matmul %9, %10, %cst_8 {dimension_numbers = #tpu.dot_dimension_numbers<[1], [0], [0], [1], [0, 0, 1, 1], [], []>} : vector<8x64xbf16>, vector<64x128xbf16>, vector<8x128xf32> -> vector<8x128xf32>
    %c0_9 = arith.constant 0 : index
    %c0_10 = arith.constant 0 : index
    %12 = vector.load %arg5[%c0_9, %c0_10] : memref<1x128xf32, #tpu.memory_space<vmem>>, vector<1x128xf32>
    %13 = vector.broadcast %12 : vector<1x128xf32> to vector<8x128xf32>
    %14 = arith.addf %11, %13 : vector<8x128xf32>
    %cst_11 = arith.constant 0.000000e+00 : f32
    %15 = vector.broadcast %cst_11 : f32 to vector<8x128xf32>
    %16 = arith.maximumf %14, %15 : vector<8x128xf32>
    %17 = arith.truncf %16 : vector<8x128xf32> to vector<8x128xbf16>
    %c0_12 = arith.constant 0 : index
    %c0_13 = arith.constant 0 : index
    %18 = vector.load %arg6[%c0_12, %c0_13] : memref<128x256xbf16, #tpu.memory_space<vmem>>, vector<128x256xbf16>
    %cst_14 = arith.constant dense<0.000000e+00> : vector<8x256xf32>
    %19 = tpu.matmul %17, %18, %cst_14 {dimension_numbers = #tpu.dot_dimension_numbers<[1], [0], [0], [1], [0, 0, 1, 1], [], []>} : vector<8x128xbf16>, vector<128x256xbf16>, vector<8x256xf32> -> vector<8x256xf32>
    %c0_15 = arith.constant 0 : index
    %c0_16 = arith.constant 0 : index
    %20 = vector.load %arg7[%c0_15, %c0_16] : memref<1x256xf32, #tpu.memory_space<vmem>>, vector<1x256xf32>
    %21 = vector.broadcast %20 : vector<1x256xf32> to vector<8x256xf32>
    %22 = arith.addf %19, %21 : vector<8x256xf32>
    %cst_17 = arith.constant 0.000000e+00 : f32
    %23 = vector.broadcast %cst_17 : f32 to vector<8x256xf32>
    %24 = arith.maximumf %22, %23 : vector<8x256xf32>
    %25 = arith.truncf %24 : vector<8x256xf32> to vector<8x256xbf16>
    %c0_18 = arith.constant 0 : index
    %c0_19 = arith.constant 0 : index
    %26 = vector.load %arg8[%c0_18, %c0_19] : memref<256x512xbf16, #tpu.memory_space<vmem>>, vector<256x512xbf16>
    %cst_20 = arith.constant dense<0.000000e+00> : vector<8x512xf32>
    %27 = tpu.matmul %25, %26, %cst_20 {dimension_numbers = #tpu.dot_dimension_numbers<[1], [0], [0], [1], [0, 0, 1, 1], [], []>} : vector<8x256xbf16>, vector<256x512xbf16>, vector<8x512xf32> -> vector<8x512xf32>
    %c0_21 = arith.constant 0 : index
    %c0_22 = arith.constant 0 : index
    %28 = vector.load %arg9[%c0_21, %c0_22] : memref<1x512xf32, #tpu.memory_space<vmem>>, vector<1x512xf32>
    %29 = vector.broadcast %28 : vector<1x512xf32> to vector<8x512xf32>
    %30 = arith.addf %27, %29 : vector<8x512xf32>
    %cst_23 = arith.constant 0.000000e+00 : f32
    %31 = vector.broadcast %cst_23 : f32 to vector<8x512xf32>
    %32 = arith.maximumf %30, %31 : vector<8x512xf32>
    %33 = arith.truncf %32 : vector<8x512xf32> to vector<8x512xbf16>
    %c0_24 = arith.constant 0 : index
    %c0_25 = arith.constant 0 : index
    %34 = vector.load %arg10[%c0_24, %c0_25] : memref<512x2048xbf16, #tpu.memory_space<vmem>>, vector<512x2048xbf16>
    %cst_26 = arith.constant dense<0.000000e+00> : vector<8x2048xf32>
    %35 = tpu.matmul %33, %34, %cst_26 {dimension_numbers = #tpu.dot_dimension_numbers<[1], [0], [0], [1], [0, 0, 1, 1], [], []>} : vector<8x512xbf16>, vector<512x2048xbf16>, vector<8x2048xf32> -> vector<8x2048xf32>
    %c0_27 = arith.constant 0 : index
    %c0_28 = arith.constant 0 : index
    %36 = vector.load %arg11[%c0_27, %c0_28] : memref<1x2048xf32, #tpu.memory_space<vmem>>, vector<1x2048xf32>
    %37 = vector.broadcast %36 : vector<1x2048xf32> to vector<8x2048xf32>
    %38 = arith.addf %35, %37 : vector<8x2048xf32>
    %cst_29 = arith.constant 0.000000e+00 : f32
    %39 = vector.broadcast %cst_29 : f32 to vector<8x2048xf32>
    %40 = arith.maximumf %38, %39 : vector<8x2048xf32>
    %41 = arith.truncf %40 : vector<8x2048xf32> to vector<8x2048xbf16>
    %c0_30 = arith.constant 0 : index
    %c0_31 = arith.constant 0 : index
    %42 = vector.load %arg12[%c0_30, %c0_31] : memref<8x2048xbf16, #tpu.memory_space<vmem>>, vector<8x2048xbf16>
    tpu.vector_store %arg12[%c0_30, %c0_31], %41 {strides = array<i32>} : memref<8x2048xbf16, #tpu.memory_space<vmem>>, vector<8x2048xbf16>,
    return
  }
  func.func @transform_0(%arg0: i32) -> (i32, i32) {
    %c0_i32 = arith.constant 0 : i32
    %c0_i32_0 = arith.constant 0 : i32
    %c0_i32_1 = arith.constant 0 : i32
    return %c0_i32, %c0_i32_0 : i32, i32
  }
  func.func @transform_1(%arg0: i32) -> (i32, i32) {
    %c0_i32 = arith.constant 0 : i32
    %c0_i32_0 = arith.constant 0 : i32
    %c0_i32_1 = arith.constant 0 : i32
    return %c0_i32, %c0_i32_0 : i32, i32
  }
  func.func @transform_2(%arg0: i32) -> (i32, i32) {
    %c0_i32 = arith.constant 0 : i32
    %c0_i32_0 = arith.constant 0 : i32
    %c0_i32_1 = arith.constant 0 : i32
    return %c0_i32, %c0_i32_0 : i32, i32
  }
  func.func @transform_3(%arg0: i32) -> (i32, i32) {
    %c0_i32 = arith.constant 0 : i32
    %c0_i32_0 = arith.constant 0 : i32
    %c0_i32_1 = arith.constant 0 : i32
    return %c0_i32, %c0_i32_0 : i32, i32
  }
  func.func @transform_4(%arg0: i32) -> (i32, i32) {
    %c0_i32 = arith.constant 0 : i32
    %c0_i32_0 = arith.constant 0 : i32
    %c0_i32_1 = arith.constant 0 : i32
    return %c0_i32, %c0_i32_0 : i32, i32
  }
  func.func @transform_5(%arg0: i32) -> (i32, i32) {
    %c0_i32 = arith.constant 0 : i32
    %c0_i32_0 = arith.constant 0 : i32
    %c0_i32_1 = arith.constant 0 : i32
    return %c0_i32, %c0_i32_0 : i32, i32
  }
  func.func @transform_6(%arg0: i32) -> (i32, i32) {
    %c0_i32 = arith.constant 0 : i32
    %c0_i32_0 = arith.constant 0 : i32
    %c0_i32_1 = arith.constant 0 : i32
    return %c0_i32, %c0_i32_0 : i32, i32
  }
  func.func @transform_7(%arg0: i32) -> (i32, i32) {
    %c0_i32 = arith.constant 0 : i32
    %c0_i32_0 = arith.constant 0 : i32
    %c0_i32_1 = arith.constant 0 : i32
    return %c0_i32, %c0_i32_0 : i32, i32
  }
  func.func @transform_8(%arg0: i32) -> (i32, i32) {
    %c0_i32 = arith.constant 0 : i32
    %c0_i32_0 = arith.constant 0 : i32
    %c0_i32_1 = arith.constant 0 : i32
    return %c0_i32, %c0_i32_0 : i32, i32
  }
  func.func @transform_9(%arg0: i32) -> (i32, i32) {
    %c0_i32 = arith.constant 0 : i32
    %c0_i32_0 = arith.constant 0 : i32
    %c0_i32_1 = arith.constant 0 : i32
    return %c0_i32, %c0_i32_0 : i32, i32
  }
  func.func @transform_10(%arg0: i32) -> (i32, i32) {
    %c0_i32 = arith.constant 0 : i32
    %c0_i32_0 = arith.constant 0 : i32
    %c0_i32_1 = arith.constant 0 : i32
    return %c0_i32, %c0_i32_0 : i32, i32
  }
  func.func @transform_11(%arg0: i32) -> (i32, i32) {
    %c0_i32 = arith.constant 0 : i32
    %c0_i32_0 = arith.constant 0 : i32
    %c0_i32_1 = arith.constant 0 : i32
    return %c0_i32, %c0_i32_0 : i32, i32
  }
}

</mosaic_0001>

<llo_original>
// kernel: tpu_custom_call.1
$region0: #{tpu_custom_call.1}
  #allocation0 [shape = 'u32[]', space=smem, size = 0x4, offset = 0x4, fixed_abs, tag = 'smem constant byte address 0x4 - core index']
  #allocation1 [shape = 'u32[72,128]{1,0:T(1,128)}', space=vmem, size = 0x9000, scoped, tag = 'internal scratch']
  %s0 = inlined_call_operand.hbm [shape: f32[8,32], index: 0, kind: input, shape index: {}]
  %s1 = inlined_call_operand.hbm [shape: bf16[32,64], index: 1, kind: input, shape index: {}]
  %s2 = inlined_call_operand.hbm [shape: f32[1,64], index: 2, kind: input, shape index: {}]
  %s3 = inlined_call_operand.hbm [shape: bf16[64,128], index: 3, kind: input, shape index: {}]
  %s4 = inlined_call_operand.hbm [shape: f32[1,128], index: 4, kind: input, shape index: {}]
  %s5 = inlined_call_operand.hbm [shape: bf16[128,256], index: 5, kind: input, shape index: {}]
  %s6 = inlined_call_operand.hbm [shape: f32[1,256], index: 6, kind: input, shape index: {}]
  %s7 = inlined_call_operand.hbm [shape: bf16[256,512], index: 7, kind: input, shape index: {}]
  %s8 = inlined_call_operand.hbm [shape: f32[1,512], index: 8, kind: input, shape index: {}]
  %s9 = inlined_call_operand.hbm [shape: bf16[512,2048], index: 9, kind: input, shape index: {}]
  %s10 = inlined_call_operand.hbm [shape: f32[1,2048], index: 10, kind: input, shape index: {}]
  %s11 = inlined_call_operand.hbm [shape: bf16[8,2048], index: 11, kind: output, shape index: {}]
  %s12 = sld [smem:[#allocation0]]
  $region98: #{tpu_custom_call.1} parent=0
    _
  %s14 = ssub.s32 1, %s12
  %s15 = scalar_select 0, %s14, %s12
  $region1: #{tpu_custom_call.1} parent=0
    #allocation2 [shape = 'u8[4096]{0}', space=vmem, size = 0x1000, scoped, tag = 'input window, operand 0, single buffered']
    #allocation3 [shape = 's32[1]{0}', space=sflag, size = 0x4, scoped, tag = 'scoped memory for tpu_custom_call.1']
    #allocation4 [shape = 's32[1]{0}', space=sflag, size = 0x4, scoped, tag = 'scoped memory for tpu_custom_call.1']
    #allocation5 [shape = 'u8[8192]{0}', space=vmem, size = 0x2000, scoped, tag = 'input window, operand 1, single buffered']
    #allocation6 [shape = 's32[1]{0}', space=sflag, size = 0x4, scoped, tag = 'scoped memory for tpu_custom_call.1']
    #allocation7 [shape = 'u8[512]{0}', space=vmem, size = 0x400, scoped, tag = 'input window, operand 2, single buffered']
    #allocation8 [shape = 'u8[16384]{0}', space=vmem, size = 0x4000, scoped, tag = 'input window, operand 3, single buffered']
    #allocation9 [shape = 's32[1]{0}', space=sflag, size = 0x4, scoped, tag = 'scoped memory for tpu_custom_call.1']
    #allocation10 [shape = 'u8[512]{0}', space=vmem, size = 0x400, scoped, tag = 'input window, operand 4, single buffered']
    #allocation11 [shape = 'u8[65536]{0}', space=vmem, size = 0x10000, scoped, tag = 'input window, operand 5, single buffered']
    #allocation12 [shape = 's32[1]{0}', space=sflag, size = 0x4, scoped, tag = 'scoped memory for tpu_custom_call.1']
    #allocation13 [shape = 'u8[1024]{0}', space=vmem, size = 0x400, scoped, tag = 'input window, operand 6, single buffered']
    #allocation14 [shape = 'u8[262144]{0}', space=vmem, size = 0x40000, scoped, tag = 'input window, operand 7, single buffered']
    #allocation15 [shape = 's32[1]{0}', space=sflag, size = 0x4, scoped, tag = 'scoped memory for tpu_custom_call.1']
    #allocation16 [shape = 'u8[2048]{0}', space=vmem, size = 0x800, scoped, tag = 'input window, operand 8, single buffered']
    #allocation17 [shape = 'u8[2097152]{0}', space=vmem, size = 0x200000, scoped, tag = 'input window, operand 9, single buffered']
    #allocation18 [shape = 's32[1]{0}', space=sflag, size = 0x4, scoped, tag = 'scoped memory for tpu_custom_call.1']
    #allocation19 [shape = 'u8[8192]{0}', space=vmem, size = 0x2000, scoped, tag = 'input window, operand 10, single buffered']
    #allocation20 [shape = 'u8[32768]{0}', space=vmem, size = 0x8000, scoped, tag = 'output window, operand 0, single buffered']
    %16 = vsyncpa [#allocation3], 0
    %17 = vsyncpa [#allocation6], 0
    %18 = vsyncpa [#allocation9], 0
    %19 = vsyncpa [#allocation12], 0
    %20 = vsyncpa [#allocation15], 0
    %21 = vsyncpa [#allocation18], 0
    %22 = vsyncpa [#allocation4], 0
    // Predicated region
    $region2: #{tpu_custom_call.1} parent=1 // pred_check
      _
    $region3: #{tpu_custom_call.1} parent=1 // pred_check_branch
      %24 = sbr.rel (0) target = $region5
    $region4: #{tpu_custom_call.1} parent=1 // pred_region
      %26 = vsyncadd [#allocation3], 0
      %s28 = sshll.u32 %s0, 4
      %s29 = int_to_ptr.hbm [resolvable:$true] %s28
      %s30 = sshll.u32 [#allocation2], 4
      %s31 = int_to_ptr.vmem [resolvable:$true] %s30
      %33 = dma.hbm_to_vmem [thread:$0]  %s29, 128, %s31, [#allocation3]
    $region5: #{tpu_custom_call.1} parent=1 // pred_fallthru
      _
    // Predicated region
    $region6: #{tpu_custom_call.1} parent=1 // pred_check
      _
    $region7: #{tpu_custom_call.1} parent=1 // pred_check_branch
      %35 = sbr.rel (0) target = $region9
    $region8: #{tpu_custom_call.1} parent=1 // pred_region
      %37 = vsyncadd [#allocation6], 0
      %s38 = sshll.u32 %s1, 4
      %s39 = int_to_ptr.hbm [resolvable:$true] %s38
      %s40 = sshll.u32 [#allocation5], 4
      %s41 = int_to_ptr.vmem [resolvable:$true] %s40
      %46 = dma.hbm_to_vmem [thread:$0]  %s39, 256, %s41, [#allocation6], 64, 64, 4
    $region9: #{tpu_custom_call.1} parent=1 // pred_fallthru
      _
    // Predicated region
    $region10: #{tpu_custom_call.1} parent=1 // pred_check
      _
    $region11: #{tpu_custom_call.1} parent=1 // pred_check_branch
      %48 = sbr.rel (0) target = $region13
    $region12: #{tpu_custom_call.1} parent=1 // pred_region
      %50 = vsyncadd [#allocation6], 0
      %s52 = sshll.u32 %s2, 4
      %s53 = int_to_ptr.hbm [resolvable:$true] %s52
      %s54 = sshll.u32 [#allocation7], 4
      %s55 = int_to_ptr.vmem [resolvable:$true] %s54
      %57 = dma.hbm_to_vmem [thread:$0]  %s53, 16, %s55, [#allocation6]
    $region13: #{tpu_custom_call.1} parent=1 // pred_fallthru
      _
    // Predicated region
    $region14: #{tpu_custom_call.1} parent=1 // pred_check
      _
    $region15: #{tpu_custom_call.1} parent=1 // pred_check_branch
      %59 = sbr.rel (0) target = $region17
    $region16: #{tpu_custom_call.1} parent=1 // pred_region
      %61 = vsyncadd [#allocation9], 0
      %s62 = sshll.u32 %s3, 4
      %s63 = int_to_ptr.hbm [resolvable:$true] %s62
      %s64 = sshll.u32 [#allocation8], 4
      %s65 = int_to_ptr.vmem [resolvable:$true] %s64
      %70 = dma.hbm_to_vmem [thread:$0]  %s63, 512, %s65, [#allocation9], 64, 64, 4
    $region17: #{tpu_custom_call.1} parent=1 // pred_fallthru
      _
    // Predicated region
    $region18: #{tpu_custom_call.1} parent=1 // pred_check
      _
    $region19: #{tpu_custom_call.1} parent=1 // pred_check_branch
      %72 = sbr.rel (0) target = $region21
    $region20: #{tpu_custom_call.1} parent=1 // pred_region
      %74 = vsyncadd [#allocation9], 0
      %s76 = sshll.u32 %s4, 4
      %s77 = int_to_ptr.hbm [resolvable:$true] %s76
      %s78 = sshll.u32 [#allocation10], 4
      %s79 = int_to_ptr.vmem [resolvable:$true] %s78
      %81 = dma.hbm_to_vmem [thread:$0]  %s77, 16, %s79, [#allocation9]
    $region21: #{tpu_custom_call.1} parent=1 // pred_fallthru
      _
    // Predicated region
    $region22: #{tpu_custom_call.1} parent=1 // pred_check
      _
    $region23: #{tpu_custom_call.1} parent=1 // pred_check_branch
      %83 = sbr.rel (0) target = $region25
    $region24: #{tpu_custom_call.1} parent=1 // pred_region
      %85 = vsyncadd [#allocation12], 0
      %s86 = sshll.u32 %s5, 4
      %s87 = int_to_ptr.hbm [resolvable:$true] %s86
      %s88 = sshll.u32 [#allocation11], 4
      %s89 = int_to_ptr.vmem [resolvable:$true] %s88
      %94 = dma.hbm_to_vmem [thread:$0]  %s87, 2048, %s89, [#allocation12], 128, 128, 8
    $region25: #{tpu_custom_call.1} parent=1 // pred_fallthru
      _
    // Predicated region
    $region26: #{tpu_custom_call.1} parent=1 // pred_check
      _
    $region27: #{tpu_custom_call.1} parent=1 // pred_check_branch
      %96 = sbr.rel (0) target = $region29
    $region28: #{tpu_custom_call.1} parent=1 // pred_region
      %98 = vsyncadd [#allocation12], 0
      %s100 = sshll.u32 %s6, 4
      %s101 = int_to_ptr.hbm [resolvable:$true] %s100
      %s102 = sshll.u32 [#allocation13], 4
      %s103 = int_to_ptr.vmem [resolvable:$true] %s102
      %105 = dma.hbm_to_vmem [thread:$0]  %s101, 32, %s103, [#allocation12]
    $region29: #{tpu_custom_call.1} parent=1 // pred_fallthru
      _
    // Predicated region
    $region30: #{tpu_custom_call.1} parent=1 // pred_check
      _
    $region31: #{tpu_custom_call.1} parent=1 // pred_check_branch
      %107 = sbr.rel (0) target = $region33
    $region32: #{tpu_custom_call.1} parent=1 // pred_region
      %109 = vsyncadd [#allocation15], 0
      %s110 = sshll.u32 %s7, 4
      %s111 = int_to_ptr.hbm [resolvable:$true] %s110
      %s112 = sshll.u32 [#allocation14], 4
      %s113 = int_to_ptr.vmem [resolvable:$true] %s112
      %118 = dma.hbm_to_vmem [thread:$0]  %s111, 8192, %s113, [#allocation15], 256, 256, 16
    $region33: #{tpu_custom_call.1} parent=1 // pred_fallthru
      _
    // Predicated region
    $region34: #{tpu_custom_call.1} parent=1 // pred_check
      _
    $region35: #{tpu_custom_call.1} parent=1 // pred_check_branch
      %120 = sbr.rel (0) target = $region37
    $region36: #{tpu_custom_call.1} parent=1 // pred_region
      %122 = vsyncadd [#allocation15], 0
      %s124 = sshll.u32 %s8, 4
      %s125 = int_to_ptr.hbm [resolvable:$true] %s124
      %s126 = sshll.u32 [#allocation16], 4
      %s127 = int_to_ptr.vmem [resolvable:$true] %s126
      %129 = dma.hbm_to_vmem [thread:$0]  %s125, 64, %s127, [#allocation15]
    $region37: #{tpu_custom_call.1} parent=1 // pred_fallthru
      _
    // Predicated region
    $region38: #{tpu_custom_call.1} parent=1 // pred_check
      _
    $region39: #{tpu_custom_call.1} parent=1 // pred_check_branch
      %131 = sbr.rel (0) target = $region41
    $region40: #{tpu_custom_call.1} parent=1 // pred_region
      %133 = vsyncadd [#allocation18], 0
      %s134 = sshll.u32 %s9, 4
      %s135 = int_to_ptr.hbm [resolvable:$true] %s134
      %s136 = sshll.u32 [#allocation17], 4
      %s137 = int_to_ptr.vmem [resolvable:$true] %s136
      %142 = dma.hbm_to_vmem [thread:$0]  %s135, 65536, %s137, [#allocation18], 1024, 1024, 64
    $region41: #{tpu_custom_call.1} parent=1 // pred_fallthru
      _
    // Predicated region
    $region42: #{tpu_custom_call.1} parent=1 // pred_check
      _
    $region43: #{tpu_custom_call.1} parent=1 // pred_check_branch
      %144 = sbr.rel (0) target = $region45
    $region44: #{tpu_custom_call.1} parent=1 // pred_region
      %146 = vsyncadd [#allocation18], 0
      %s148 = sshll.u32 %s10, 4
      %s149 = int_to_ptr.hbm [resolvable:$true] %s148
      %s150 = sshll.u32 [#allocation19], 4
      %s151 = int_to_ptr.vmem [resolvable:$true] %s150
      %153 = dma.hbm_to_vmem [thread:$0]  %s149, 256, %s151, [#allocation18]
    $region45: #{tpu_custom_call.1} parent=1 // pred_fallthru
      _
    // Predicated region
    $region46: #{tpu_custom_call.1} parent=1 // pred_check
      _
    $region47: #{tpu_custom_call.1} parent=1 // pred_check_branch
      %155 = sbr.rel (0) target = $region49
    $region48: #{tpu_custom_call.1} parent=1 // pred_region
      %157 = dma.done [#allocation3], 128
    $region49: #{tpu_custom_call.1} parent=1 // pred_fallthru
      _
    // Predicated region
    $region50: #{tpu_custom_call.1} parent=1 // pred_check
      _
    $region51: #{tpu_custom_call.1} parent=1 // pred_check_branch
      %159 = sbr.rel (0) target = $region53
    $region52: #{tpu_custom_call.1} parent=1 // pred_region
      %161 = dma.done [#allocation6], 256
    $region53: #{tpu_custom_call.1} parent=1 // pred_fallthru
      _
    // Predicated region
    $region54: #{tpu_custom_call.1} parent=1 // pred_check
      _
    $region55: #{tpu_custom_call.1} parent=1 // pred_check_branch
      %163 = sbr.rel (0) target = $region57
    $region56: #{tpu_custom_call.1} parent=1 // pred_region
      %165 = dma.done [#allocation6], 16
    $region57: #{tpu_custom_call.1} parent=1 // pred_fallthru
      _
    // Predicated region
    $region58: #{tpu_custom_call.1} parent=1 // pred_check
      _
    $region59: #{tpu_custom_call.1} parent=1 // pred_check_branch
      %167 = sbr.rel (0) target = $region61
    $region60: #{tpu_custom_call.1} parent=1 // pred_region
      %169 = dma.done [#allocation9], 512
    $region61: #{tpu_custom_call.1} parent=1 // pred_fallthru
      _
    // Predicated region
    $region62: #{tpu_custom_call.1} parent=1 // pred_check
      _
    $region63: #{tpu_custom_call.1} parent=1 // pred_check_branch
      %171 = sbr.rel (0) target = $region65
    $region64: #{tpu_custom_call.1} parent=1 // pred_region
      %173 = dma.done [#allocation9], 16
    $region65: #{tpu_custom_call.1} parent=1 // pred_fallthru
      _
    // Predicated region
    $region66: #{tpu_custom_call.1} parent=1 // pred_check
      _
    $region67: #{tpu_custom_call.1} parent=1 // pred_check_branch
      %175 = sbr.rel (0) target = $region69
    $region68: #{tpu_custom_call.1} parent=1 // pred_region
      %177 = dma.done [#allocation12], 2048
    $region69: #{tpu_custom_call.1} parent=1 // pred_fallthru
      _
    // Predicated region
    $region70: #{tpu_custom_call.1} parent=1 // pred_check
      _
    $region71: #{tpu_custom_call.1} parent=1 // pred_check_branch
      %179 = sbr.rel (0) target = $region73
    $region72: #{tpu_custom_call.1} parent=1 // pred_region
      %181 = dma.done [#allocation12], 32
    $region73: #{tpu_custom_call.1} parent=1 // pred_fallthru
      _
    // Predicated region
    $region74: #{tpu_custom_call.1} parent=1 // pred_check
      _
    $region75: #{tpu_custom_call.1} parent=1 // pred_check_branch
      %183 = sbr.rel (0) target = $region77
    $region76: #{tpu_custom_call.1} parent=1 // pred_region
      %185 = dma.done [#allocation15], 8192
    $region77: #{tpu_custom_call.1} parent=1 // pred_fallthru
      _
    // Predicated region
    $region78: #{tpu_custom_call.1} parent=1 // pred_check
      _
    $region79: #{tpu_custom_call.1} parent=1 // pred_check_branch
      %187 = sbr.rel (0) target = $region81
    $region80: #{tpu_custom_call.1} parent=1 // pred_region
      %189 = dma.done [#allocation15], 64
    $region81: #{tpu_custom_call.1} parent=1 // pred_fallthru
      _
    // Predicated region
    $region82: #{tpu_custom_call.1} parent=1 // pred_check
      _
    $region83: #{tpu_custom_call.1} parent=1 // pred_check_branch
      %191 = sbr.rel (0) target = $region85
    $region84: #{tpu_custom_call.1} parent=1 // pred_region
      %193 = dma.done [#allocation18], 65536
    $region85: #{tpu_custom_call.1} parent=1 // pred_fallthru
      _
    // Predicated region
    $region86: #{tpu_custom_call.1} parent=1 // pred_check
      _
    $region87: #{tpu_custom_call.1} parent=1 // pred_check_branch
      %195 = sbr.rel (0) target = $region89
    $region88: #{tpu_custom_call.1} parent=1 // pred_region
      %197 = dma.done [#allocation18], 256
    $region89: #{tpu_custom_call.1} parent=1 // pred_fallthru
      _
    %v199 = vld [vmem:[#allocation2] sm:$0xff]
    %v200 = vpack.c.bf16 %v199, %v199
    %v201 = vld [vmem:[#allocation5] sm:$0xf]
    %v202 = vld [vmem:[#allocation5 + $0x4] sm:$0xf]
    %v203 = vld [vmem:[#allocation5 + $0x8] sm:$0xf]
    %v204 = vld [vmem:[#allocation5 + $0xc] sm:$0xf]
    %v205 = vld [vmem:[#allocation7] sm:$0x1]
    %v207 = vperm.slane %v205, 0
    %v213 = vunpack.c.l.b16 %v201
    %v214 = vunpack.c.l.b16 %v202
    %v215 = vunpack.c.l.b16 %v203
    %v216 = vunpack.c.l.b16 %v204
    %v217 = vpack.c.b16 %v214, %v213
    %v218 = vpack.c.b16 %v216, %v215
    %vm221 = vcmask 261120
    %v223 = vsel %vm221, %v200, 0
    %225 = vmatpush.bf16.msra.mxu0 0
    %226 = vmatpush.bf16.msra.mxu0 0
    %227 = vmatpush.bf16.msra.mxu0 0
    %228 = vmatpush.bf16.msra.mxu0 0
    %229 = vmatpush.bf16.msra.mxu0 0
    %230 = vmatpush.bf16.msra.mxu0 0
    %231 = vmatpush.bf16.msra.mxu0 %v218
    %232 = vmatpush.bf16.msra.mxu0 %v217
    %233 = vmatmul.bf16.gmra.mxu0 %v223
    %v234 = vpop.f32.mrf.mxu0
    %v235 = vadd.f32 %v207, %v234
    %v236 = vpop.f32.mrf.mxu0
    %237 = vdwg.mxu0
    %v238 = vmax.f32 %v235, 0.0
    %v239 = vpack.c.bf16 %v238, %v238
    %v240 = vld [vmem:[#allocation8] sm:$0xf]
    %v241 = vld [vmem:[#allocation8 + $0x4] sm:$0xf]
    %v242 = vld [vmem:[#allocation8 + $0x8] sm:$0xf]
    %v243 = vld [vmem:[#allocation8 + $0xc] sm:$0xf]
    %v244 = vld [vmem:[#allocation8 + $0x10] sm:$0xf]
    %v245 = vld [vmem:[#allocation8 + $0x14] sm:$0xf]
    %v246 = vld [vmem:[#allocation8 + $0x18] sm:$0xf]
    %v247 = vld [vmem:[#allocation8 + $0x1c] sm:$0xf]
    %v248 = vld [vmem:[#allocation10] sm:$0x1]
    %v250 = vperm.slane %v248, 0
    %v260 = vunpack.c.l.b16 %v240
    %v261 = vunpack.c.l.b16 %v241
    %v262 = vunpack.c.l.b16 %v242
    %v263 = vunpack.c.l.b16 %v243
    %v264 = vunpack.c.l.b16 %v244
    %v265 = vunpack.c.l.b16 %v245
    %v266 = vunpack.c.l.b16 %v246
    %v267 = vunpack.c.l.b16 %v247
    %v268 = vpack.c.b16 %v261, %v260
    %v269 = vpack.c.b16 %v263, %v262
    %v270 = vpack.c.b16 %v265, %v264
    %v271 = vpack.c.b16 %v267, %v266
    %vm276 = vcmask 523264
    %v278 = vsel %vm276, %v239, 0
    %280 = vmatpush.bf16.msra.mxu0 0
    %281 = vmatpush.bf16.msra.mxu0 0
    %282 = vmatpush.bf16.msra.mxu0 0
    %283 = vmatpush.bf16.msra.mxu0 0
    %284 = vmatpush.bf16.msra.mxu0 %v271
    %285 = vmatpush.bf16.msra.mxu0 %v270
    %286 = vmatpush.bf16.msra.mxu0 %v269
    %287 = vmatpush.bf16.msra.mxu0 %v268
    %288 = vmatmul.bf16.gmra.mxu0 %v278
    %v289 = vpop.f32.mrf.mxu0
    %v290 = vadd.f32 %v250, %v289
    %v291 = vpop.f32.mrf.mxu0
    %292 = vdwg.mxu0
    %v293 = vmax.f32 %v290, 0.0
    %v294 = vpack.c.bf16 %v293, %v293
    %v295 = vld [vmem:[#allocation11] sm:$0xff]
    %v296 = vld [vmem:[#allocation11 + $0x8] sm:$0xff]
    %v297 = vld [vmem:[#allocation11 + $0x10] sm:$0xff]
    %v298 = vld [vmem:[#allocation11 + $0x18] sm:$0xff]
    %v299 = vld [vmem:[#allocation11 + $0x20] sm:$0xff]
    %v300 = vld [vmem:[#allocation11 + $0x28] sm:$0xff]
    %v301 = vld [vmem:[#allocation11 + $0x30] sm:$0xff]
    %v302 = vld [vmem:[#allocation11 + $0x38] sm:$0xff]
    %v303 = vld [vmem:[#allocation11 + $0x40] sm:$0xff]
    %v304 = vld [vmem:[#allocation11 + $0x48] sm:$0xff]
    %v305 = vld [vmem:[#allocation11 + $0x50] sm:$0xff]
    %v306 = vld [vmem:[#allocation11 + $0x58] sm:$0xff]
    %v307 = vld [vmem:[#allocation11 + $0x60] sm:$0xff]
    %v308 = vld [vmem:[#allocation11 + $0x68] sm:$0xff]
    %v309 = vld [vmem:[#allocation11 + $0x70] sm:$0xff]
    %v310 = vld [vmem:[#allocation11 + $0x78] sm:$0xff]
    %v311 = vld [vmem:[#allocation13] sm:$0x3]
    %v313 = vperm.slane %v311, 0
    %v314 = vperm.slane %v311, 1
    %v333 = vunpack.c.l.b16 %v295
    %v334 = vunpack.c.h.b16 %v295
    %v335 = vunpack.c.l.b16 %v296
    %v336 = vunpack.c.h.b16 %v296
    %v337 = vunpack.c.l.b16 %v297
    %v338 = vunpack.c.h.b16 %v297
    %v339 = vunpack.c.l.b16 %v298
    %v340 = vunpack.c.h.b16 %v298
    %v341 = vunpack.c.l.b16 %v299
    %v342 = vunpack.c.h.b16 %v299
    %v343 = vunpack.c.l.b16 %v300
    %v344 = vunpack.c.h.b16 %v300
    %v345 = vunpack.c.l.b16 %v301
    %v346 = vunpack.c.h.b16 %v301
    %v347 = vunpack.c.l.b16 %v302
    %v348 = vunpack.c.h.b16 %v302
    %v349 = vunpack.c.l.b16 %v303
    %v350 = vunpack.c.h.b16 %v303
    %v351 = vunpack.c.l.b16 %v304
    %v352 = vunpack.c.h.b16 %v304
    %v353 = vunpack.c.l.b16 %v305
    %v354 = vunpack.c.h.b16 %v305
    %v355 = vunpack.c.l.b16 %v306
    %v356 = vunpack.c.h.b16 %v306
    %v357 = vunpack.c.l.b16 %v307
    %v358 = vunpack.c.h.b16 %v307
    %v359 = vunpack.c.l.b16 %v308
    %v360 = vunpack.c.h.b16 %v308
    %v361 = vunpack.c.l.b16 %v309
    %v362 = vunpack.c.h.b16 %v309
    %v363 = vunpack.c.l.b16 %v310
    %v364 = vunpack.c.h.b16 %v310
    %v365 = vpack.c.b16 %v335, %v333
    %v366 = vpack.c.b16 %v336, %v334
    %v367 = vpack.c.b16 %v339, %v337
    %v368 = vpack.c.b16 %v340, %v338
    %v369 = vpack.c.b16 %v343, %v341
    %v370 = vpack.c.b16 %v344, %v342
    %v371 = vpack.c.b16 %v347, %v345
    %v372 = vpack.c.b16 %v348, %v346
    %v373 = vpack.c.b16 %v351, %v349
    %v374 = vpack.c.b16 %v352, %v350
    %v375 = vpack.c.b16 %v355, %v353
    %v376 = vpack.c.b16 %v356, %v354
    %v377 = vpack.c.b16 %v359, %v357
    %v378 = vpack.c.b16 %v360, %v358
    %v379 = vpack.c.b16 %v363, %v361
    %v380 = vpack.c.b16 %v364, %v362
    %397 = vmatpush.bf16.msra.mxu0 %v379
    %398 = vmatpush.bf16.msra.mxu0 %v377
    %399 = vmatpush.bf16.msra.mxu0 %v375
    %400 = vmatpush.bf16.msra.mxu0 %v373
    %401 = vmatpush.bf16.msra.mxu0 %v371
    %402 = vmatpush.bf16.msra.mxu0 %v369
    %403 = vmatpush.bf16.msra.mxu0 %v367
    %404 = vmatpush.bf16.msra.mxu0 %v365
    %405 = vmatmul.bf16.gmra.mxu0 %v294
    %v406 = vpop.f32.mrf.mxu0
    %v407 = vadd.f32 %v313, %v406
    %v408 = vpop.f32.mrf.mxu0
    %409 = vdwg.mxu0
    %410 = vmatpush.bf16.msra.mxu0 %v380
    %411 = vmatpush.bf16.msra.mxu0 %v378
    %412 = vmatpush.bf16.msra.mxu0 %v376
    %413 = vmatpush.bf16.msra.mxu0 %v374
    %414 = vmatpush.bf16.msra.mxu0 %v372
    %415 = vmatpush.bf16.msra.mxu0 %v370
    %416 = vmatpush.bf16.msra.mxu0 %v368
    %417 = vmatpush.bf16.msra.mxu0 %v366
    %418 = vmatmul.bf16.gmra.mxu0 %v294
    %v419 = vpop.f32.mrf.mxu0
    %v420 = vadd.f32 %v314, %v419
    %v421 = vpop.f32.mrf.mxu0
    %422 = vdwg.mxu0
    %v423 = vmax.f32 %v407, 0.0
    %v424 = vmax.f32 %v420, 0.0
    %v425 = vpack.c.bf16 %v423, %v423
    %v426 = vpack.c.bf16 %v424, %v424
    %v427 = vld [vmem:[#allocation14] sm:$0xff]
    %v428 = vld [vmem:[#allocation14 + $0x8] sm:$0xff]
    %v429 = vld [vmem:[#allocation14 + $0x10] sm:$0xff]
    %v430 = vld [vmem:[#allocation14 + $0x18] sm:$0xff]
    %v431 = vld [vmem:[#allocation14 + $0x20] sm:$0xff]
    %v432 = vld [vmem:[#allocation14 + $0x28] sm:$0xff]
    %v433 = vld [vmem:[#allocation14 + $0x30] sm:$0xff]
    %v434 = vld [vmem:[#allocation14 + $0x38] sm:$0xff]
    %v435 = vld [vmem:[#allocation14 + $0x40] sm:$0xff]
    %v436 = vld [vmem:[#allocation14 + $0x48] sm:$0xff]
    %v437 = vld [vmem:[#allocation14 + $0x50] sm:$0xff]
    %v438 = vld [vmem:[#allocation14 + $0x58] sm:$0xff]
    %v439 = vld [vmem:[#allocation14 + $0x60] sm:$0xff]
    %v440 = vld [vmem:[#allocation14 + $0x68] sm:$0xff]
    %v441 = vld [vmem:[#allocation14 + $0x70] sm:$0xff]
    %v442 = vld [vmem:[#allocation14 + $0x78] sm:$0xff]
    %v443 = vld [vmem:[#allocation14 + $0x80] sm:$0xff]
    %v444 = vld [vmem:[#allocation14 + $0x88] sm:$0xff]
    %v445 = vld [vmem:[#allocation14 + $0x90] sm:$0xff]
    %v446 = vld [vmem:[#allocation14 + $0x98] sm:$0xff]
    %v447 = vld [vmem:[#allocation14 + $0xa0] sm:$0xff]
    %v448 = vld [vmem:[#allocation14 + $0xa8] sm:$0xff]
    %v449 = vld [vmem:[#allocation14 + $0xb0] sm:$0xff]
    %v450 = vld [vmem:[#allocation14 + $0xb8] sm:$0xff]
    %v451 = vld [vmem:[#allocation14 + $0xc0] sm:$0xff]
    %v452 = vld [vmem:[#allocation14 + $0xc8] sm:$0xff]
    %v453 = vld [vmem:[#allocation14 + $0xd0] sm:$0xff]
    %v454 = vld [vmem:[#allocation14 + $0xd8] sm:$0xff]
    %v455 = vld [vmem:[#allocation14 + $0xe0] sm:$0xff]
    %v456 = vld [vmem:[#allocation14 + $0xe8] sm:$0xff]
    %v457 = vld [vmem:[#allocation14 + $0xf0] sm:$0xff]
    %v458 = vld [vmem:[#allocation14 + $0xf8] sm:$0xff]
    %v459 = vld [vmem:[#allocation14 + $0x100] sm:$0xff]
    %v460 = vld [vmem:[#allocation14 + $0x108] sm:$0xff]
    %v461 = vld [vmem:[#allocation14 + $0x110] sm:$0xff]
    %v462 = vld [vmem:[#allocation14 + $0x118] sm:$0xff]
    %v463 = vld [vmem:[#allocation14 + $0x120] sm:$0xff]
    %v464 = vld [vmem:[#allocation14 + $0x128] sm:$0xff]
    %v465 = vld [vmem:[#allocation14 + $0x130] sm:$0xff]
    %v466 = vld [vmem:[#allocation14 + $0x138] sm:$0xff]
    %v467 = vld [vmem:[#allocation14 + $0x140] sm:$0xff]
    %v468 = vld [vmem:[#allocation14 + $0x148] sm:$0xff]
    %v469 = vld [vmem:[#allocation14 + $0x150] sm:$0xff]
    %v470 = vld [vmem:[#allocation14 + $0x158] sm:$0xff]
    %v471 = vld [vmem:[#allocation14 + $0x160] sm:$0xff]
    %v472 = vld [vmem:[#allocation14 + $0x168] sm:$0xff]
    %v473 = vld [vmem:[#allocation14 + $0x170] sm:$0xff]
    %v474 = vld [vmem:[#allocation14 + $0x178] sm:$0xff]
    %v475 = vld [vmem:[#allocation14 + $0x180] sm:$0xff]
    %v476 = vld [vmem:[#allocation14 + $0x188] sm:$0xff]
    %v477 = vld [vmem:[#allocation14 + $0x190] sm:$0xff]
    %v478 = vld [vmem:[#allocation14 + $0x198] sm:$0xff]
    %v479 = vld [vmem:[#allocation14 + $0x1a0] sm:$0xff]
    %v480 = vld [vmem:[#allocation14 + $0x1a8] sm:$0xff]
    %v481 = vld [vmem:[#allocation14 + $0x1b0] sm:$0xff]
    %v482 = vld [vmem:[#allocation14 + $0x1b8] sm:$0xff]
    %v483 = vld [vmem:[#allocation14 + $0x1c0] sm:$0xff]
    %v484 = vld [vmem:[#allocation14 + $0x1c8] sm:$0xff]
    %v485 = vld [vmem:[#allocation14 + $0x1d0] sm:$0xff]
    %v486 = vld [vmem:[#allocation14 + $0x1d8] sm:$0xff]
    %v487 = vld [vmem:[#allocation14 + $0x1e0] sm:$0xff]
    %v488 = vld [vmem:[#allocation14 + $0x1e8] sm:$0xff]
    %v489 = vld [vmem:[#allocation14 + $0x1f0] sm:$0xff]
    %v490 = vld [vmem:[#allocation14 + $0x1f8] sm:$0xff]
    %v491 = vld [vmem:[#allocation16] sm:$0xf]
    %v493 = vperm.slane %v491, 0
    %v494 = vperm.slane %v491, 1
    %v495 = vperm.slane %v491, 2
    %v496 = vperm.slane %v491, 3
    %v565 = vunpack.c.l.b16 %v427
    %v566 = vunpack.c.h.b16 %v427
    %v567 = vunpack.c.l.b16 %v428
    %v568 = vunpack.c.h.b16 %v428
    %v569 = vunpack.c.l.b16 %v429
    %v570 = vunpack.c.h.b16 %v429
    %v571 = vunpack.c.l.b16 %v430
    %v572 = vunpack.c.h.b16 %v430
    %v573 = vunpack.c.l.b16 %v431
    %v574 = vunpack.c.h.b16 %v431
    %v575 = vunpack.c.l.b16 %v432
    %v576 = vunpack.c.h.b16 %v432
    %v577 = vunpack.c.l.b16 %v433
    %v578 = vunpack.c.h.b16 %v433
    %v579 = vunpack.c.l.b16 %v434
    %v580 = vunpack.c.h.b16 %v434
    %v581 = vunpack.c.l.b16 %v435
    %v582 = vunpack.c.h.b16 %v435
    %v583 = vunpack.c.l.b16 %v436
    %v584 = vunpack.c.h.b16 %v436
    %v585 = vunpack.c.l.b16 %v437
    %v586 = vunpack.c.h.b16 %v437
    %v587 = vunpack.c.l.b16 %v438
    %v588 = vunpack.c.h.b16 %v438
    %v589 = vunpack.c.l.b16 %v439
    %v590 = vunpack.c.h.b16 %v439
    %v591 = vunpack.c.l.b16 %v440
    %v592 = vunpack.c.h.b16 %v440
    %v593 = vunpack.c.l.b16 %v441
    %v594 = vunpack.c.h.b16 %v441
    %v595 = vunpack.c.l.b16 %v442
    %v596 = vunpack.c.h.b16 %v442
    %v597 = vunpack.c.l.b16 %v443
    %v598 = vunpack.c.h.b16 %v443
    %v599 = vunpack.c.l.b16 %v444
    %v600 = vunpack.c.h.b16 %v444
    %v601 = vunpack.c.l.b16 %v445
    %v602 = vunpack.c.h.b16 %v445
    %v603 = vunpack.c.l.b16 %v446
    %v604 = vunpack.c.h.b16 %v446
    %v605 = vunpack.c.l.b16 %v447
    %v606 = vunpack.c.h.b16 %v447
    %v607 = vunpack.c.l.b16 %v448
    %v608 = vunpack.c.h.b16 %v448
    %v609 = vunpack.c.l.b16 %v449
    %v610 = vunpack.c.h.b16 %v449
    %v611 = vunpack.c.l.b16 %v450
    %v612 = vunpack.c.h.b16 %v450
    %v613 = vunpack.c.l.b16 %v451
    %v614 = vunpack.c.h.b16 %v451
    %v615 = vunpack.c.l.b16 %v452
    %v616 = vunpack.c.h.b16 %v452
    %v617 = vunpack.c.l.b16 %v453
    %v618 = vunpack.c.h.b16 %v453
    %v619 = vunpack.c.l.b16 %v454
    %v620 = vunpack.c.h.b16 %v454
    %v621 = vunpack.c.l.b16 %v455
    %v622 = vunpack.c.h.b16 %v455
    %v623 = vunpack.c.l.b16 %v456
    %v624 = vunpack.c.h.b16 %v456
    %v625 = vunpack.c.l.b16 %v457
    %v626 = vunpack.c.h.b16 %v457
    %v627 = vunpack.c.l.b16 %v458
    %v628 = vunpack.c.h.b16 %v458
    %v629 = vunpack.c.l.b16 %v459
    %v630 = vunpack.c.h.b16 %v459
    %v631 = vunpack.c.l.b16 %v460
    %v632 = vunpack.c.h.b16 %v460
    %v633 = vunpack.c.l.b16 %v461
    %v634 = vunpack.c.h.b16 %v461
    %v635 = vunpack.c.l.b16 %v462
    %v636 = vunpack.c.h.b16 %v462
    %v637 = vunpack.c.l.b16 %v463
    %v638 = vunpack.c.h.b16 %v463
    %v639 = vunpack.c.l.b16 %v464
    %v640 = vunpack.c.h.b16 %v464
    %v641 = vunpack.c.l.b16 %v465
    %v642 = vunpack.c.h.b16 %v465
    %v643 = vunpack.c.l.b16 %v466
    %v644 = vunpack.c.h.b16 %v466
    %v645 = vunpack.c.l.b16 %v467
    %v646 = vunpack.c.h.b16 %v467
    %v647 = vunpack.c.l.b16 %v468
    %v648 = vunpack.c.h.b16 %v468
    %v649 = vunpack.c.l.b16 %v469
    %v650 = vunpack.c.h.b16 %v469
    %v651 = vunpack.c.l.b16 %v470
    %v652 = vunpack.c.h.b16 %v470
    %v653 = vunpack.c.l.b16 %v471
    %v654 = vunpack.c.h.b16 %v471
    %v655 = vunpack.c.l.b16 %v472
    %v656 = vunpack.c.h.b16 %v472
    %v657 = vunpack.c.l.b16 %v473
    %v658 = vunpack.c.h.b16 %v473
    %v659 = vunpack.c.l.b16 %v474
    %v660 = vunpack.c.h.b16 %v474
    %v661 = vunpack.c.l.b16 %v475
    %v662 = vunpack.c.h.b16 %v475
    %v663 = vunpack.c.l.b16 %v476
    %v664 = vunpack.c.h.b16 %v476
    %v665 = vunpack.c.l.b16 %v477
    %v666 = vunpack.c.h.b16 %v477
    %v667 = vunpack.c.l.b16 %v478
    %v668 = vunpack.c.h.b16 %v478
    %v669 = vunpack.c.l.b16 %v479
    %v670 = vunpack.c.h.b16 %v479
    %v671 = vunpack.c.l.b16 %v480
    %v672 = vunpack.c.h.b16 %v480
    %v673 = vunpack.c.l.b16 %v481
    %v674 = vunpack.c.h.b16 %v481
    %v675 = vunpack.c.l.b16 %v482
    %v676 = vunpack.c.h.b16 %v482
    %v677 = vunpack.c.l.b16 %v483
    %v678 = vunpack.c.h.b16 %v483
    %v679 = vunpack.c.l.b16 %v484
    %v680 = vunpack.c.h.b16 %v484
    %v681 = vunpack.c.l.b16 %v485
    %v682 = vunpack.c.h.b16 %v485
    %v683 = vunpack.c.l.b16 %v486
    %v684 = vunpack.c.h.b16 %v486
    %v685 = vunpack.c.l.b16 %v487
    %v686 = vunpack.c.h.b16 %v487
    %v687 = vunpack.c.l.b16 %v488
    %v688 = vunpack.c.h.b16 %v488
    %v689 = vunpack.c.l.b16 %v489
    %v690 = vunpack.c.h.b16 %v489
    %v691 = vunpack.c.l.b16 %v490
    %v692 = vunpack.c.h.b16 %v490
    %v693 = vpack.c.b16 %v569, %v565
    %v694 = vpack.c.b16 %v570, %v566
    %v695 = vpack.c.b16 %v571, %v567
    %v696 = vpack.c.b16 %v572, %v568
    %v697 = vpack.c.b16 %v577, %v573
    %v698 = vpack.c.b16 %v578, %v574
    %v699 = vpack.c.b16 %v579, %v575
    %v700 = vpack.c.b16 %v580, %v576
    %v701 = vpack.c.b16 %v585, %v581
    %v702 = vpack.c.b16 %v586, %v582
    %v703 = vpack.c.b16 %v587, %v583
    %v704 = vpack.c.b16 %v588, %v584
    %v705 = vpack.c.b16 %v593, %v589
    %v706 = vpack.c.b16 %v594, %v590
    %v707 = vpack.c.b16 %v595, %v591
    %v708 = vpack.c.b16 %v596, %v592
    %v709 = vpack.c.b16 %v601, %v597
    %v710 = vpack.c.b16 %v602, %v598
    %v711 = vpack.c.b16 %v603, %v599
    %v712 = vpack.c.b16 %v604, %v600
    %v713 = vpack.c.b16 %v609, %v605
    %v714 = vpack.c.b16 %v610, %v606
    %v715 = vpack.c.b16 %v611, %v607
    %v716 = vpack.c.b16 %v612, %v608
    %v717 = vpack.c.b16 %v617, %v613
    %v718 = vpack.c.b16 %v618, %v614
    %v719 = vpack.c.b16 %v619, %v615
    %v720 = vpack.c.b16 %v620, %v616
    %v721 = vpack.c.b16 %v625, %v621
    %v722 = vpack.c.b16 %v626, %v622
    %v723 = vpack.c.b16 %v627, %v623
    %v724 = vpack.c.b16 %v628, %v624
    %v725 = vpack.c.b16 %v633, %v629
    %v726 = vpack.c.b16 %v634, %v630
    %v727 = vpack.c.b16 %v635, %v631
    %v728 = vpack.c.b16 %v636, %v632
    %v729 = vpack.c.b16 %v641, %v637
    %v730 = vpack.c.b16 %v642, %v638
    %v731 = vpack.c.b16 %v643, %v639
    %v732 = vpack.c.b16 %v644, %v640
    %v733 = vpack.c.b16 %v649, %v645
    %v734 = vpack.c.b16 %v650, %v646
    %v735 = vpack.c.b16 %v651, %v647
    %v736 = vpack.c.b16 %v652, %v648
    %v737 = vpack.c.b16 %v657, %v653
    %v738 = vpack.c.b16 %v658, %v654
    %v739 = vpack.c.b16 %v659, %v655
    %v740 = vpack.c.b16 %v660, %v656
    %v741 = vpack.c.b16 %v665, %v661
    %v742 = vpack.c.b16 %v666, %v662
    %v743 = vpack.c.b16 %v667, %v663
    %v744 = vpack.c.b16 %v668, %v664
    %v745 = vpack.c.b16 %v673, %v669
    %v746 = vpack.c.b16 %v674, %v670
    %v747 = vpack.c.b16 %v675, %v671
    %v748 = vpack.c.b16 %v676, %v672
    %v749 = vpack.c.b16 %v681, %v677
    %v750 = vpack.c.b16 %v682, %v678
    %v751 = vpack.c.b16 %v683, %v679
    %v752 = vpack.c.b16 %v684, %v680
    %v753 = vpack.c.b16 %v689, %v685
    %v754 = vpack.c.b16 %v690, %v686
    %v755 = vpack.c.b16 %v691, %v687
    %v756 = vpack.c.b16 %v692, %v688
    %821 = vmatpush.bf16.msra.mxu0 %v721
    %822 = vmatpush.bf16.msra.mxu0 %v717
    %823 = vmatpush.bf16.msra.mxu0 %v713
    %824 = vmatpush.bf16.msra.mxu0 %v709
    %825 = vmatpush.bf16.msra.mxu0 %v705
    %826 = vmatpush.bf16.msra.mxu0 %v701
    %827 = vmatpush.bf16.msra.mxu0 %v697
    %828 = vmatpush.bf16.msra.mxu0 %v693
    %829 = vmatmul.bf16.gmra.mxu0 %v425
    %v830 = vpop.f32.mrf.mxu0
    %v831 = vadd.f32 %v493, %v830
    %v832 = vpop.f32.mrf.mxu0
    %833 = vdwg.mxu0
    %834 = vmatpush.bf16.msra.mxu0 %v753
    %835 = vmatpush.bf16.msra.mxu0 %v749
    %836 = vmatpush.bf16.msra.mxu0 %v745
    %837 = vmatpush.bf16.msra.mxu0 %v741
    %838 = vmatpush.bf16.msra.mxu0 %v737
    %839 = vmatpush.bf16.msra.mxu0 %v733
    %840 = vmatpush.bf16.msra.mxu0 %v729
    %841 = vmatpush.bf16.msra.mxu0 %v725
    %842 = vmatmul.bf16.gmra.mxu0 %v426
    %v843 = vpop.f32.mrf.mxu0
    %v844 = vadd.f32 %v831, %v843
    %v845 = vpop.f32.mrf.mxu0
    %846 = vdwg.mxu0
    %847 = vmatpush.bf16.msra.mxu0 %v722
    %848 = vmatpush.bf16.msra.mxu0 %v718
    %849 = vmatpush.bf16.msra.mxu0 %v714
    %850 = vmatpush.bf16.msra.mxu0 %v710
    %851 = vmatpush.bf16.msra.mxu0 %v706
    %852 = vmatpush.bf16.msra.mxu0 %v702
    %853 = vmatpush.bf16.msra.mxu0 %v698
    %854 = vmatpush.bf16.msra.mxu0 %v694
    %855 = vmatmul.bf16.gmra.mxu0 %v425
    %v856 = vpop.f32.mrf.mxu0
    %v857 = vadd.f32 %v494, %v856
    %v858 = vpop.f32.mrf.mxu0
    %859 = vdwg.mxu0
    %860 = vmatpush.bf16.msra.mxu0 %v754
    %861 = vmatpush.bf16.msra.mxu0 %v750
    %862 = vmatpush.bf16.msra.mxu0 %v746
    %863 = vmatpush.bf16.msra.mxu0 %v742
    %864 = vmatpush.bf16.msra.mxu0 %v738
    %865 = vmatpush.bf16.msra.mxu0 %v734
    %866 = vmatpush.bf16.msra.mxu0 %v730
    %867 = vmatpush.bf16.msra.mxu0 %v726
    %868 = vmatmul.bf16.gmra.mxu0 %v426
    %v869 = vpop.f32.mrf.mxu0
    %v870 = vadd.f32 %v857, %v869
    %v871 = vpop.f32.mrf.mxu0
    %872 = vdwg.mxu0
    %873 = vmatpush.bf16.msra.mxu0 %v723
    %874 = vmatpush.bf16.msra.mxu0 %v719
    %875 = vmatpush.bf16.msra.mxu0 %v715
    %876 = vmatpush.bf16.msra.mxu0 %v711
    %877 = vmatpush.bf16.msra.mxu0 %v707
    %878 = vmatpush.bf16.msra.mxu0 %v703
    %879 = vmatpush.bf16.msra.mxu0 %v699
    %880 = vmatpush.bf16.msra.mxu0 %v695
    %881 = vmatmul.bf16.gmra.mxu0 %v425
    %v882 = vpop.f32.mrf.mxu0
    %v883 = vadd.f32 %v495, %v882
    %v884 = vpop.f32.mrf.mxu0
    %885 = vdwg.mxu0
    %886 = vmatpush.bf16.msra.mxu0 %v755
    %887 = vmatpush.bf16.msra.mxu0 %v751
    %888 = vmatpush.bf16.msra.mxu0 %v747
    %889 = vmatpush.bf16.msra.mxu0 %v743
    %890 = vmatpush.bf16.msra.mxu0 %v739
    %891 = vmatpush.bf16.msra.mxu0 %v735
    %892 = vmatpush.bf16.msra.mxu0 %v731
    %893 = vmatpush.bf16.msra.mxu0 %v727
    %894 = vmatmul.bf16.gmra.mxu0 %v426
    %v895 = vpop.f32.mrf.mxu0
    %v896 = vadd.f32 %v883, %v895
    %v897 = vpop.f32.mrf.mxu0
    %898 = vdwg.mxu0
    %899 = vmatpush.bf16.msra.mxu0 %v724
    %900 = vmatpush.bf16.msra.mxu0 %v720
    %901 = vmatpush.bf16.msra.mxu0 %v716
    %902 = vmatpush.bf16.msra.mxu0 %v712
    %903 = vmatpush.bf16.msra.mxu0 %v708
    %904 = vmatpush.bf16.msra.mxu0 %v704
    %905 = vmatpush.bf16.msra.mxu0 %v700
    %906 = vmatpush.bf16.msra.mxu0 %v696
    %907 = vmatmul.bf16.gmra.mxu0 %v425
    %v908 = vpop.f32.mrf.mxu0
    %v909 = vadd.f32 %v496, %v908
    %v910 = vpop.f32.mrf.mxu0
    %911 = vdwg.mxu0
    %912 = vmatpush.bf16.msra.mxu0 %v756
    %913 = vmatpush.bf16.msra.mxu0 %v752
    %914 = vmatpush.bf16.msra.mxu0 %v748
    %915 = vmatpush.bf16.msra.mxu0 %v744
    %916 = vmatpush.bf16.msra.mxu0 %v740
    %917 = vmatpush.bf16.msra.mxu0 %v736
    %918 = vmatpush.bf16.msra.mxu0 %v732
    %919 = vmatpush.bf16.msra.mxu0 %v728
    %920 = vmatmul.bf16.gmra.mxu0 %v426
    %v921 = vpop.f32.mrf.mxu0
    %v922 = vadd.f32 %v909, %v921
    %v923 = vpop.f32.mrf.mxu0
    %924 = vdwg.mxu0
    %v925 = vmax.f32 %v844, 0.0
    %v926 = vmax.f32 %v870, 0.0
    %v927 = vmax.f32 %v896, 0.0
    %v928 = vmax.f32 %v922, 0.0
    %v929 = vpack.c.bf16 %v925, %v925
    %v930 = vpack.c.bf16 %v926, %v926
    %v931 = vpack.c.bf16 %v927, %v927
    %v932 = vpack.c.bf16 %v928, %v928
    %v933 = vld [vmem:[#allocation17] sm:$0xff]
    %v934 = vld [vmem:[#allocation17 + $0x8] sm:$0xff]
    %v935 = vld [vmem:[#allocation17 + $0x10] sm:$0xff]
    %v936 = vld [vmem:[#allocation17 + $0x18] sm:$0xff]
    %v937 = vld [vmem:[#allocation17 + $0x20] sm:$0xff]
    %v938 = vld [vmem:[#allocation17 + $0x28] sm:$0xff]
    %v939 = vld [vmem:[#allocation17 + $0x30] sm:$0xff]
    %v940 = vld [vmem:[#allocation17 + $0x38] sm:$0xff]
    %v941 = vld [vmem:[#allocation17 + $0x40] sm:$0xff]
    %v942 = vld [vmem:[#allocation17 + $0x48] sm:$0xff]
    %v943 = vld [vmem:[#allocation17 + $0x50] sm:$0xff]
    %v944 = vld [vmem:[#allocation17 + $0x58] sm:$0xff]
    %v945 = vld [vmem:[#allocation17 + $0x60] sm:$0xff]
    %v946 = vld [vmem:[#allocation17 + $0x68] sm:$0xff]
    %v947 = vld [vmem:[#allocation17 + $0x70] sm:$0xff]
    %v948 = vld [vmem:[#allocation17 + $0x78] sm:$0xff]
    %v949 = vld [vmem:[#allocation17 + $0x80] sm:$0xff]
    %v950 = vld [vmem:[#allocation17 + $0x88] sm:$0xff]
    %v951 = vld [vmem:[#allocation17 + $0x90] sm:$0xff]
    %v952 = vld [vmem:[#allocation17 + $0x98] sm:$0xff]
    %v953 = vld [vmem:[#allocation17 + $0xa0] sm:$0xff]
    %v954 = vld [vmem:[#allocation17 + $0xa8] sm:$0xff]
    %v955 = vld [vmem:[#allocation17 + $0xb0] sm:$0xff]
    %v956 = vld [vmem:[#allocation17 + $0xb8] sm:$0xff]
    %v957 = vld [vmem:[#allocation17 + $0xc0] sm:$0xff]
    %v958 = vld [vmem:[#allocation17 + $0xc8] sm:$0xff]
    %v959 = vld [vmem:[#allocation17 + $0xd0] sm:$0xff]
    %v960 = vld [vmem:[#allocation17 + $0xd8] sm:$0xff]
    %v961 = vld [vmem:[#allocation17 + $0xe0] sm:$0xff]
    %v962 = vld [vmem:[#allocation17 + $0xe8] sm:$0xff]
    %v963 = vld [vmem:[#allocation17 + $0xf0] sm:$0xff]
    %v964 = vld [vmem:[#allocation17 + $0xf8] sm:$0xff]
    %v965 = vld [vmem:[#allocation17 + $0x100] sm:$0xff]
    %v966 = vld [vmem:[#allocation17 + $0x108] sm:$0xff]
    %v967 = vld [vmem:[#allocation17 + $0x110] sm:$0xff]
    %v968 = vld [vmem:[#allocation17 + $0x118] sm:$0xff]
    %v969 = vld [vmem:[#allocation17 + $0x120] sm:$0xff]
    %v970 = vld [vmem:[#allocation17 + $0x128] sm:$0xff]
    %v971 = vld [vmem:[#allocation17 + $0x130] sm:$0xff]
    %v972 = vld [vmem:[#allocation17 + $0x138] sm:$0xff]
    %v973 = vld [vmem:[#allocation17 + $0x140] sm:$0xff]
    %v974 = vld [vmem:[#allocation17 + $0x148] sm:$0xff]
    %v975 = vld [vmem:[#allocation17 + $0x150] sm:$0xff]
    %v976 = vld [vmem:[#allocation17 + $0x158] sm:$0xff]
    %v977 = vld [vmem:[#allocation17 + $0x160] sm:$0xff]
    %v978 = vld [vmem:[#allocation17 + $0x168] sm:$0xff]
    %v979 = vld [vmem:[#allocation17 + $0x170] sm:$0xff]
    %v980 = vld [vmem:[#allocation17 + $0x178] sm:$0xff]
    %v981 = vld [vmem:[#allocation17 + $0x180] sm:$0xff]
    %v982 = vld [vmem:[#allocation17 + $0x188] sm:$0xff]
    %v983 = vld [vmem:[#allocation17 + $0x190] sm:$0xff]
    %v984 = vld [vmem:[#allocation17 + $0x198] sm:$0xff]
    %v985 = vld [vmem:[#allocation17 + $0x1a0] sm:$0xff]
    %v986 = vld [vmem:[#allocation17 + $0x1a8] sm:$0xff]
    %v987 = vld [vmem:[#allocation17 + $0x1b0] sm:$0xff]
    %v988 = vld [vmem:[#allocation17 + $0x1b8] sm:$0xff]
    %v989 = vld [vmem:[#allocation17 + $0x1c0] sm:$0xff]
    %v990 = vld [vmem:[#allocation17 + $0x1c8] sm:$0xff]
    %v991 = vld [vmem:[#allocation17 + $0x1d0] sm:$0xff]
    %v992 = vld [vmem:[#allocation17 + $0x1d8] sm:$0xff]
    %v993 = vld [vmem:[#allocation17 + $0x1e0] sm:$0xff]
    %v994 = vld [vmem:[#allocation17 + $0x1e8] sm:$0xff]
    %v995 = vld [vmem:[#allocation17 + $0x1f0] sm:$0xff]
    %v996 = vld [vmem:[#allocation17 + $0x1f8] sm:$0xff]
    %v997 = vld [vmem:[#allocation17 + $0x200] sm:$0xff]
    %v998 = vld [vmem:[#allocation17 + $0x208] sm:$0xff]
    %v999 = vld [vmem:[#allocation17 + $0x210] sm:$0xff]
    %v1000 = vld [vmem:[#allocation17 + $0x218] sm:$0xff]
    %v1001 = vld [vmem:[#allocation17 + $0x220] sm:$0xff]
    %v1002 = vld [vmem:[#allocation17 + $0x228] sm:$0xff]
    %v1003 = vld [vmem:[#allocation17 + $0x230] sm:$0xff]
    %v1004 = vld [vmem:[#allocation17 + $0x238] sm:$0xff]
    %v1005 = vld [vmem:[#allocation17 + $0x240] sm:$0xff]
    %v1006 = vld [vmem:[#allocation17 + $0x248] sm:$0xff]
    %v1007 = vld [vmem:[#allocation17 + $0x250] sm:$0xff]
    %v1008 = vld [vmem:[#allocation17 + $0x258] sm:$0xff]
    %v1009 = vld [vmem:[#allocation17 + $0x260] sm:$0xff]
    %v1010 = vld [vmem:[#allocation17 + $0x268] sm:$0xff]
    %v1011 = vld [vmem:[#allocation17 + $0x270] sm:$0xff]
    %v1012 = vld [vmem:[#allocation17 + $0x278] sm:$0xff]
    %v1013 = vld [vmem:[#allocation17 + $0x280] sm:$0xff]
    %v1014 = vld [vmem:[#allocation17 + $0x288] sm:$0xff]
    %v1015 = vld [vmem:[#allocation17 + $0x290] sm:$0xff]
    %v1016 = vld [vmem:[#allocation17 + $0x298] sm:$0xff]
    %v1017 = vld [vmem:[#allocation17 + $0x2a0] sm:$0xff]
    %v1018 = vld [vmem:[#allocation17 + $0x2a8] sm:$0xff]
    %v1019 = vld [vmem:[#allocation17 + $0x2b0] sm:$0xff]
    %v1020 = vld [vmem:[#allocation17 + $0x2b8] sm:$0xff]
    %v1021 = vld [vmem:[#allocation17 + $0x2c0] sm:$0xff]
    %v1022 = vld [vmem:[#allocation17 + $0x2c8] sm:$0xff]
    %v1023 = vld [vmem:[#allocation17 + $0x2d0] sm:$0xff]
    %v1024 = vld [vmem:[#allocation17 + $0x2d8] sm:$0xff]
    %v1025 = vld [vmem:[#allocation17 + $0x2e0] sm:$0xff]
    %v1026 = vld [vmem:[#allocation17 + $0x2e8] sm:$0xff]
    %v1027 = vld [vmem:[#allocation17 + $0x2f0] sm:$0xff]
    %v1028 = vld [vmem:[#allocation17 + $0x2f8] sm:$0xff]
    %v1029 = vld [vmem:[#allocation17 + $0x300] sm:$0xff]
    %v1030 = vld [vmem:[#allocation17 + $0x308] sm:$0xff]
    %v1031 = vld [vmem:[#allocation17 + $0x310] sm:$0xff]
    %v1032 = vld [vmem:[#allocation17 + $0x318] sm:$0xff]
    %v1033 = vld [vmem:[#allocation17 + $0x320] sm:$0xff]
    %v1034 = vld [vmem:[#allocation17 + $0x328] sm:$0xff]
    %v1035 = vld [vmem:[#allocation17 + $0x330] sm:$0xff]
    %v1036 = vld [vmem:[#allocation17 + $0x338] sm:$0xff]
    %v1037 = vld [vmem:[#allocation17 + $0x340] sm:$0xff]
    %v1038 = vld [vmem:[#allocation17 + $0x348] sm:$0xff]
    %v1039 = vld [vmem:[#allocation17 + $0x350] sm:$0xff]
    %v1040 = vld [vmem:[#allocation17 + $0x358] sm:$0xff]
    %v1041 = vld [vmem:[#allocation17 + $0x360] sm:$0xff]
    %v1042 = vld [vmem:[#allocation17 + $0x368] sm:$0xff]
    %v1043 = vld [vmem:[#allocation17 + $0x370] sm:$0xff]
    %v1044 = vld [vmem:[#allocation17 + $0x378] sm:$0xff]
    %v1045 = vld [vmem:[#allocation17 + $0x380] sm:$0xff]
    %v1046 = vld [vmem:[#allocation17 + $0x388] sm:$0xff]
    %v1047 = vld [vmem:[#allocation17 + $0x390] sm:$0xff]
    %v1048 = vld [vmem:[#allocation17 + $0x398] sm:$0xff]
    %v1049 = vld [vmem:[#allocation17 + $0x3a0] sm:$0xff]
    %v1050 = vld [vmem:[#allocation17 + $0x3a8] sm:$0xff]
    %v1051 = vld [vmem:[#allocation17 + $0x3b0] sm:$0xff]
    %v1052 = vld [vmem:[#allocation17 + $0x3b8] sm:$0xff]
    %v1053 = vld [vmem:[#allocation17 + $0x3c0] sm:$0xff]
    %v1054 = vld [vmem:[#allocation17 + $0x3c8] sm:$0xff]
    %v1055 = vld [vmem:[#allocation17 + $0x3d0] sm:$0xff]
    %v1056 = vld [vmem:[#allocation17 + $0x3d8] sm:$0xff]
    %v1057 = vld [vmem:[#allocation17 + $0x3e0] sm:$0xff]
    %v1058 = vld [vmem:[#allocation17 + $0x3e8] sm:$0xff]
    %v1059 = vld [vmem:[#allocation17 + $0x3f0] sm:$0xff]
    %v1060 = vld [vmem:[#allocation17 + $0x3f8] sm:$0xff]
    %v1061 = vld [vmem:[#allocation17 + $0x400] sm:$0xff]
    %v1062 = vld [vmem:[#allocation17 + $0x408] sm:$0xff]
    %v1063 = vld [vmem:[#allocation17 + $0x410] sm:$0xff]
    %v1064 = vld [vmem:[#allocation17 + $0x418] sm:$0xff]
    %v1065 = vld [vmem:[#allocation17 + $0x420] sm:$0xff]
    %v1066 = vld [vmem:[#allocation17 + $0x428] sm:$0xff]
    %v1067 = vld [vmem:[#allocation17 + $0x430] sm:$0xff]
    %v1068 = vld [vmem:[#allocation17 + $0x438] sm:$0xff]
    %v1069 = vld [vmem:[#allocation17 + $0x440] sm:$0xff]
    %v1070 = vld [vmem:[#allocation17 + $0x448] sm:$0xff]
    %v1071 = vld [vmem:[#allocation17 + $0x450] sm:$0xff]
    %v1072 = vld [vmem:[#allocation17 + $0x458] sm:$0xff]
    %v1073 = vld [vmem:[#allocation17 + $0x460] sm:$0xff]
    %v1074 = vld [vmem:[#allocation17 + $0x468] sm:$0xff]
    %v1075 = vld [vmem:[#allocation17 + $0x470] sm:$0xff]
    %v1076 = vld [vmem:[#allocation17 + $0x478] sm:$0xff]
    %v1077 = vld [vmem:[#allocation17 + $0x480] sm:$0xff]
    %v1078 = vld [vmem:[#allocation17 + $0x488] sm:$0xff]
    %v1079 = vld [vmem:[#allocation17 + $0x490] sm:$0xff]
    %v1080 = vld [vmem:[#allocation17 + $0x498] sm:$0xff]
    %v1081 = vld [vmem:[#allocation17 + $0x4a0] sm:$0xff]
    %v1082 = vld [vmem:[#allocation17 + $0x4a8] sm:$0xff]
    %v1083 = vld [vmem:[#allocation17 + $0x4b0] sm:$0xff]
    %v1084 = vld [vmem:[#allocation17 + $0x4b8] sm:$0xff]
    %v1085 = vld [vmem:[#allocation17 + $0x4c0] sm:$0xff]
    %v1086 = vld [vmem:[#allocation17 + $0x4c8] sm:$0xff]
    %v1087 = vld [vmem:[#allocation17 + $0x4d0] sm:$0xff]
    %v1088 = vld [vmem:[#allocation17 + $0x4d8] sm:$0xff]
    %v1089 = vld [vmem:[#allocation17 + $0x4e0] sm:$0xff]
    %v1090 = vld [vmem:[#allocation17 + $0x4e8] sm:$0xff]
    %v1091 = vld [vmem:[#allocation17 + $0x4f0] sm:$0xff]
    %v1092 = vld [vmem:[#allocation17 + $0x4f8] sm:$0xff]
    %v1093 = vld [vmem:[#allocation17 + $0x500] sm:$0xff]
    %v1094 = vld [vmem:[#allocation17 + $0x508] sm:$0xff]
    %v1095 = vld [vmem:[#allocation17 + $0x510] sm:$0xff]
    %v1096 = vld [vmem:[#allocation17 + $0x518] sm:$0xff]
    %v1097 = vld [vmem:[#allocation17 + $0x520] sm:$0xff]
    %v1098 = vld [vmem:[#allocation17 + $0x528] sm:$0xff]
    %v1099 = vld [vmem:[#allocation17 + $0x530] sm:$0xff]
    %v1100 = vld [vmem:[#allocation17 + $0x538] sm:$0xff]
    %v1101 = vld [vmem:[#allocation17 + $0x540] sm:$0xff]
    %v1102 = vld [vmem:[#allocation17 + $0x548] sm:$0xff]
    %v1103 = vld [vmem:[#allocation17 + $0x550] sm:$0xff]
    %v1104 = vld [vmem:[#allocation17 + $0x558] sm:$0xff]
    %v1105 = vld [vmem:[#allocation17 + $0x560] sm:$0xff]
    %v1106 = vld [vmem:[#allocation17 + $0x568] sm:$0xff]
    %v1107 = vld [vmem:[#allocation17 + $0x570] sm:$0xff]
    %v1108 = vld [vmem:[#allocation17 + $0x578] sm:$0xff]
    %v1109 = vld [vmem:[#allocation17 + $0x580] sm:$0xff]
    %v1110 = vld [vmem:[#allocation17 + $0x588] sm:$0xff]
    %v1111 = vld [vmem:[#allocation17 + $0x590] sm:$0xff]
    %v1112 = vld [vmem:[#allocation17 + $0x598] sm:$0xff]
    %v1113 = vld [vmem:[#allocation17 + $0x5a0] sm:$0xff]
    %v1114 = vld [vmem:[#allocation17 + $0x5a8] sm:$0xff]
    %v1115 = vld [vmem:[#allocation17 + $0x5b0] sm:$0xff]
    %v1116 = vld [vmem:[#allocation17 + $0x5b8] sm:$0xff]
    %v1117 = vld [vmem:[#allocation17 + $0x5c0] sm:$0xff]
    %v1118 = vld [vmem:[#allocation17 + $0x5c8] sm:$0xff]
    %v1119 = vld [vmem:[#allocation17 + $0x5d0] sm:$0xff]
    %v1120 = vld [vmem:[#allocation17 + $0x5d8] sm:$0xff]
    %v1121 = vld [vmem:[#allocation17 + $0x5e0] sm:$0xff]
    %v1122 = vld [vmem:[#allocation17 + $0x5e8] sm:$0xff]
    %v1123 = vld [vmem:[#allocation17 + $0x5f0] sm:$0xff]
    %v1124 = vld [vmem:[#allocation17 + $0x5f8] sm:$0xff]
    %v1125 = vld [vmem:[#allocation17 + $0x600] sm:$0xff]
    %v1126 = vld [vmem:[#allocation17 + $0x608] sm:$0xff]
    %v1127 = vld [vmem:[#allocation17 + $0x610] sm:$0xff]
    %v1128 = vld [vmem:[#allocation17 + $0x618] sm:$0xff]
    %v1129 = vld [vmem:[#allocation17 + $0x620] sm:$0xff]
    %v1130 = vld [vmem:[#allocation17 + $0x628] sm:$0xff]
    %v1131 = vld [vmem:[#allocation17 + $0x630] sm:$0xff]
    %v1132 = vld [vmem:[#allocation17 + $0x638] sm:$0xff]
    %v1133 = vld [vmem:[#allocation17 + $0x640] sm:$0xff]
    %v1134 = vld [vmem:[#allocation17 + $0x648] sm:$0xff]
    %v1135 = vld [vmem:[#allocation17 + $0x650] sm:$0xff]
    %v1136 = vld [vmem:[#allocation17 + $0x658] sm:$0xff]
    %v1137 = vld [vmem:[#allocation17 + $0x660] sm:$0xff]
    %v1138 = vld [vmem:[#allocation17 + $0x668] sm:$0xff]
    %v1139 = vld [vmem:[#allocation17 + $0x670] sm:$0xff]
    %v1140 = vld [vmem:[#allocation17 + $0x678] sm:$0xff]
    %v1141 = vld [vmem:[#allocation17 + $0x680] sm:$0xff]
    %v1142 = vld [vmem:[#allocation17 + $0x688] sm:$0xff]
    %v1143 = vld [vmem:[#allocation17 + $0x690] sm:$0xff]
    %v1144 = vld [vmem:[#allocation17 + $0x698] sm:$0xff]
    %v1145 = vld [vmem:[#allocation17 + $0x6a0] sm:$0xff]
    %v1146 = vld [vmem:[#allocation17 + $0x6a8] sm:$0xff]
    %v1147 = vld [vmem:[#allocation17 + $0x6b0] sm:$0xff]
    %v1148 = vld [vmem:[#allocation17 + $0x6b8] sm:$0xff]
    %v1149 = vld [vmem:[#allocation17 + $0x6c0] sm:$0xff]
    %v1150 = vld [vmem:[#allocation17 + $0x6c8] sm:$0xff]
    %v1151 = vld [vmem:[#allocation17 + $0x6d0] sm:$0xff]
    %v1152 = vld [vmem:[#allocation17 + $0x6d8] sm:$0xff]
    %v1153 = vld [vmem:[#allocation17 + $0x6e0] sm:$0xff]
    %v1154 = vld [vmem:[#allocation17 + $0x6e8] sm:$0xff]
    %v1155 = vld [vmem:[#allocation17 + $0x6f0] sm:$0xff]
    %v1156 = vld [vmem:[#allocation17 + $0x6f8] sm:$0xff]
    %v1157 = vld [vmem:[#allocation17 + $0x700] sm:$0xff]
    %v1158 = vld [vmem:[#allocation17 + $0x708] sm:$0xff]
    %v1159 = vld [vmem:[#allocation17 + $0x710] sm:$0xff]
    %v1160 = vld [vmem:[#allocation17 + $0x718] sm:$0xff]
    %v1161 = vld [vmem:[#allocation17 + $0x720] sm:$0xff]
    %v1162 = vld [vmem:[#allocation17 + $0x728] sm:$0xff]
    %v1163 = vld [vmem:[#allocation17 + $0x730] sm:$0xff]
    %v1164 = vld [vmem:[#allocation17 + $0x738] sm:$0xff]
    %v1165 = vld [vmem:[#allocation17 + $0x740] sm:$0xff]
    %v1166 = vld [vmem:[#allocation17 + $0x748] sm:$0xff]
    %v1167 = vld [vmem:[#allocation17 + $0x750] sm:$0xff]
    %v1168 = vld [vmem:[#allocation17 + $0x758] sm:$0xff]
    %v1169 = vld [vmem:[#allocation17 + $0x760] sm:$0xff]
    %v1170 = vld [vmem:[#allocation17 + $0x768] sm:$0xff]
    %v1171 = vld [vmem:[#allocation17 + $0x770] sm:$0xff]
    %v1172 = vld [vmem:[#allocation17 + $0x778] sm:$0xff]
    %v1173 = vld [vmem:[#allocation17 + $0x780] sm:$0xff]
    %v1174 = vld [vmem:[#allocation17 + $0x788] sm:$0xff]
    %v1175 = vld [vmem:[#allocation17 + $0x790] sm:$0xff]
    %v1176 = vld [vmem:[#allocation17 + $0x798] sm:$0xff]
    %v1177 = vld [vmem:[#allocation17 + $0x7a0] sm:$0xff]
    %v1178 = vld [vmem:[#allocation17 + $0x7a8] sm:$0xff]
    %v1179 = vld [vmem:[#allocation17 + $0x7b0] sm:$0xff]
    %v1180 = vld [vmem:[#allocation17 + $0x7b8] sm:$0xff]
    %v1181 = vld [vmem:[#allocation17 + $0x7c0] sm:$0xff]
    %v1182 = vld [vmem:[#allocation17 + $0x7c8] sm:$0xff]
    %v1183 = vld [vmem:[#allocation17 + $0x7d0] sm:$0xff]
    %v1184 = vld [vmem:[#allocation17 + $0x7d8] sm:$0xff]
    %v1185 = vld [vmem:[#allocation17 + $0x7e0] sm:$0xff]
    %v1186 = vld [vmem:[#allocation17 + $0x7e8] sm:$0xff]
    %v1187 = vld [vmem:[#allocation17 + $0x7f0] sm:$0xff]
    %v1188 = vld [vmem:[#allocation17 + $0x7f8] sm:$0xff]
    %v1189 = vld [vmem:[#allocation17 + $0x800] sm:$0xff]
    %v1190 = vld [vmem:[#allocation17 + $0x808] sm:$0xff]
    %v1191 = vld [vmem:[#allocation17 + $0x810] sm:$0xff]
    %v1192 = vld [vmem:[#allocation17 + $0x818] sm:$0xff]
    %v1193 = vld [vmem:[#allocation17 + $0x820] sm:$0xff]
    %v1194 = vld [vmem:[#allocation17 + $0x828] sm:$0xff]
    %v1195 = vld [vmem:[#allocation17 + $0x830] sm:$0xff]
    %v1196 = vld [vmem:[#allocation17 + $0x838] sm:$0xff]
    %v1197 = vld [vmem:[#allocation17 + $0x840] sm:$0xff]
    %v1198 = vld [vmem:[#allocation17 + $0x848] sm:$0xff]
    %v1199 = vld [vmem:[#allocation17 + $0x850] sm:$0xff]
    %v1200 = vld [vmem:[#allocation17 + $0x858] sm:$0xff]
    %v1201 = vld [vmem:[#allocation17 + $0x860] sm:$0xff]
    %v1202 = vld [vmem:[#allocation17 + $0x868] sm:$0xff]
    %v1203 = vld [vmem:[#allocation17 + $0x870] sm:$0xff]
    %v1204 = vld [vmem:[#allocation17 + $0x878] sm:$0xff]
    %v1205 = vld [vmem:[#allocation17 + $0x880] sm:$0xff]
    %v1206 = vld [vmem:[#allocation17 + $0x888] sm:$0xff]
    %v1207 = vld [vmem:[#allocation17 + $0x890] sm:$0xff]
    %v1208 = vld [vmem:[#allocation17 + $0x898] sm:$0xff]
    %v1209 = vld [vmem:[#allocation17 + $0x8a0] sm:$0xff]
    %v1210 = vld [vmem:[#allocation17 + $0x8a8] sm:$0xff]
    %v1211 = vld [vmem:[#allocation17 + $0x8b0] sm:$0xff]
    %v1212 = vld [vmem:[#allocation17 + $0x8b8] sm:$0xff]
    %v1213 = vld [vmem:[#allocation17 + $0x8c0] sm:$0xff]
    %v1214 = vld [vmem:[#allocation17 + $0x8c8] sm:$0xff]
    %v1215 = vld [vmem:[#allocation17 + $0x8d0] sm:$0xff]
    %v1216 = vld [vmem:[#allocation17 + $0x8d8] sm:$0xff]
    %v1217 = vld [vmem:[#allocation17 + $0x8e0] sm:$0xff]
    %v1218 = vld [vmem:[#allocation17 + $0x8e8] sm:$0xff]
    %v1219 = vld [vmem:[#allocation17 + $0x8f0] sm:$0xff]
    %v1220 = vld [vmem:[#allocation17 + $0x8f8] sm:$0xff]
    %v1221 = vld [vmem:[#allocation17 + $0x900] sm:$0xff]
    %v1222 = vld [vmem:[#allocation17 + $0x908] sm:$0xff]
    %v1223 = vld [vmem:[#allocation17 + $0x910] sm:$0xff]
    %v1224 = vld [vmem:[#allocation17 + $0x918] sm:$0xff]
    %v1225 = vld [vmem:[#allocation17 + $0x920] sm:$0xff]
    %v1226 = vld [vmem:[#allocation17 + $0x928] sm:$0xff]
    %v1227 = vld [vmem:[#allocation17 + $0x930] sm:$0xff]
    %v1228 = vld [vmem:[#allocation17 + $0x938] sm:$0xff]
    %v1229 = vld [vmem:[#allocation17 + $0x940] sm:$0xff]
    %v1230 = vld [vmem:[#allocation17 + $0x948] sm:$0xff]
    %v1231 = vld [vmem:[#allocation17 + $0x950] sm:$0xff]
    %v1232 = vld [vmem:[#allocation17 + $0x958] sm:$0xff]
    %v1233 = vld [vmem:[#allocation17 + $0x960] sm:$0xff]
    %v1234 = vld [vmem:[#allocation17 + $0x968] sm:$0xff]
    %v1235 = vld [vmem:[#allocation17 + $0x970] sm:$0xff]
    %v1236 = vld [vmem:[#allocation17 + $0x978] sm:$0xff]
    %v1237 = vld [vmem:[#allocation17 + $0x980] sm:$0xff]
    %v1238 = vld [vmem:[#allocation17 + $0x988] sm:$0xff]
    %v1239 = vld [vmem:[#allocation17 + $0x990] sm:$0xff]
    %v1240 = vld [vmem:[#allocation17 + $0x998] sm:$0xff]
    %v1241 = vld [vmem:[#allocation17 + $0x9a0] sm:$0xff]
    %v1242 = vld [vmem:[#allocation17 + $0x9a8] sm:$0xff]
    %v1243 = vld [vmem:[#allocation17 + $0x9b0] sm:$0xff]
    %v1244 = vld [vmem:[#allocation17 + $0x9b8] sm:$0xff]
    %v1245 = vld [vmem:[#allocation17 + $0x9c0] sm:$0xff]
    %v1246 = vld [vmem:[#allocation17 + $0x9c8] sm:$0xff]
    %v1247 = vld [vmem:[#allocation17 + $0x9d0] sm:$0xff]
    %v1248 = vld [vmem:[#allocation17 + $0x9d8] sm:$0xff]
    %v1249 = vld [vmem:[#allocation17 + $0x9e0] sm:$0xff]
    %v1250 = vld [vmem:[#allocation17 + $0x9e8] sm:$0xff]
    %v1251 = vld [vmem:[#allocation17 + $0x9f0] sm:$0xff]
    %v1252 = vld [vmem:[#allocation17 + $0x9f8] sm:$0xff]
    %v1253 = vld [vmem:[#allocation17 + $0xa00] sm:$0xff]
    %v1254 = vld [vmem:[#allocation17 + $0xa08] sm:$0xff]
    %v1255 = vld [vmem:[#allocation17 + $0xa10] sm:$0xff]
    %v1256 = vld [vmem:[#allocation17 + $0xa18] sm:$0xff]
    %v1257 = vld [vmem:[#allocation17 + $0xa20] sm:$0xff]
    %v1258 = vld [vmem:[#allocation17 + $0xa28] sm:$0xff]
    %v1259 = vld [vmem:[#allocation17 + $0xa30] sm:$0xff]
    %v1260 = vld [vmem:[#allocation17 + $0xa38] sm:$0xff]
    %v1261 = vld [vmem:[#allocation17 + $0xa40] sm:$0xff]
    %v1262 = vld [vmem:[#allocation17 + $0xa48] sm:$0xff]
    %v1263 = vld [vmem:[#allocation17 + $0xa50] sm:$0xff]
    %v1264 = vld [vmem:[#allocation17 + $0xa58] sm:$0xff]
    %v1265 = vld [vmem:[#allocation17 + $0xa60] sm:$0xff]
    %v1266 = vld [vmem:[#allocation17 + $0xa68] sm:$0xff]
    %v1267 = vld [vmem:[#allocation17 + $0xa70] sm:$0xff]
    %v1268 = vld [vmem:[#allocation17 + $0xa78] sm:$0xff]
    %v1269 = vld [vmem:[#allocation17 + $0xa80] sm:$0xff]
    %v1270 = vld [vmem:[#allocation17 + $0xa88] sm:$0xff]
    %v1271 = vld [vmem:[#allocation17 + $0xa90] sm:$0xff]
    %v1272 = vld [vmem:[#allocation17 + $0xa98] sm:$0xff]
    %v1273 = vld [vmem:[#allocation17 + $0xaa0] sm:$0xff]
    %v1274 = vld [vmem:[#allocation17 + $0xaa8] sm:$0xff]
    %v1275 = vld [vmem:[#allocation17 + $0xab0] sm:$0xff]
    %v1276 = vld [vmem:[#allocation17 + $0xab8] sm:$0xff]
    %v1277 = vld [vmem:[#allocation17 + $0xac0] sm:$0xff]
    %v1278 = vld [vmem:[#allocation17 + $0xac8] sm:$0xff]
    %v1279 = vld [vmem:[#allocation17 + $0xad0] sm:$0xff]
    %v1280 = vld [vmem:[#allocation17 + $0xad8] sm:$0xff]
    %v1281 = vld [vmem:[#allocation17 + $0xae0] sm:$0xff]
    %v1282 = vld [vmem:[#allocation17 + $0xae8] sm:$0xff]
    %v1283 = vld [vmem:[#allocation17 + $0xaf0] sm:$0xff]
    %v1284 = vld [vmem:[#allocation17 + $0xaf8] sm:$0xff]
    %v1285 = vld [vmem:[#allocation17 + $0xb00] sm:$0xff]
    %v1286 = vld [vmem:[#allocation17 + $0xb08] sm:$0xff]
    %v1287 = vld [vmem:[#allocation17 + $0xb10] sm:$0xff]
    %v1288 = vld [vmem:[#allocation17 + $0xb18] sm:$0xff]
    %v1289 = vld [vmem:[#allocation17 + $0xb20] sm:$0xff]
    %v1290 = vld [vmem:[#allocation17 + $0xb28] sm:$0xff]
    %v1291 = vld [vmem:[#allocation17 + $0xb30] sm:$0xff]
    %v1292 = vld [vmem:[#allocation17 + $0xb38] sm:$0xff]
    %v1293 = vld [vmem:[#allocation17 + $0xb40] sm:$0xff]
    %v1294 = vld [vmem:[#allocation17 + $0xb48] sm:$0xff]
    %v1295 = vld [vmem:[#allocation17 + $0xb50] sm:$0xff]
    %v1296 = vld [vmem:[#allocation17 + $0xb58] sm:$0xff]
    %v1297 = vld [vmem:[#allocation17 + $0xb60] sm:$0xff]
    %v1298 = vld [vmem:[#allocation17 + $0xb68] sm:$0xff]
    %v1299 = vld [vmem:[#allocation17 + $0xb70] sm:$0xff]
    %v1300 = vld [vmem:[#allocation17 + $0xb78] sm:$0xff]
    %v1301 = vld [vmem:[#allocation17 + $0xb80] sm:$0xff]
    %v1302 = vld [vmem:[#allocation17 + $0xb88] sm:$0xff]
    %v1303 = vld [vmem:[#allocation17 + $0xb90] sm:$0xff]
    %v1304 = vld [vmem:[#allocation17 + $0xb98] sm:$0xff]
    %v1305 = vld [vmem:[#allocation17 + $0xba0] sm:$0xff]
    %v1306 = vld [vmem:[#allocation17 + $0xba8] sm:$0xff]
    %v1307 = vld [vmem:[#allocation17 + $0xbb0] sm:$0xff]
    %v1308 = vld [vmem:[#allocation17 + $0xbb8] sm:$0xff]
    %v1309 = vld [vmem:[#allocation17 + $0xbc0] sm:$0xff]
    %v1310 = vld [vmem:[#allocation17 + $0xbc8] sm:$0xff]
    %v1311 = vld [vmem:[#allocation17 + $0xbd0] sm:$0xff]
    %v1312 = vld [vmem:[#allocation17 + $0xbd8] sm:$0xff]
    %v1313 = vld [vmem:[#allocation17 + $0xbe0] sm:$0xff]
    %v1314 = vld [vmem:[#allocation17 + $0xbe8] sm:$0xff]
    %v1315 = vld [vmem:[#allocation17 + $0xbf0] sm:$0xff]
    %v1316 = vld [vmem:[#allocation17 + $0xbf8] sm:$0xff]
    %v1317 = vld [vmem:[#allocation17 + $0xc00] sm:$0xff]
    %v1318 = vld [vmem:[#allocation17 + $0xc08] sm:$0xff]
    %v1319 = vld [vmem:[#allocation17 + $0xc10] sm:$0xff]
    %v1320 = vld [vmem:[#allocation17 + $0xc18] sm:$0xff]
    %v1321 = vld [vmem:[#allocation17 + $0xc20] sm:$0xff]
    %v1322 = vld [vmem:[#allocation17 + $0xc28] sm:$0xff]
    %v1323 = vld [vmem:[#allocation17 + $0xc30] sm:$0xff]
    %v1324 = vld [vmem:[#allocation17 + $0xc38] sm:$0xff]
    %v1325 = vld [vmem:[#allocation17 + $0xc40] sm:$0xff]
    %v1326 = vld [vmem:[#allocation17 + $0xc48] sm:$0xff]
    %v1327 = vld [vmem:[#allocation17 + $0xc50] sm:$0xff]
    %v1328 = vld [vmem:[#allocation17 + $0xc58] sm:$0xff]
    %v1329 = vld [vmem:[#allocation17 + $0xc60] sm:$0xff]
    %v1330 = vld [vmem:[#allocation17 + $0xc68] sm:$0xff]
    %v1331 = vld [vmem:[#allocation17 + $0xc70] sm:$0xff]
    %v1332 = vld [vmem:[#allocation17 + $0xc78] sm:$0xff]
    %v1333 = vld [vmem:[#allocation17 + $0xc80] sm:$0xff]
    %v1334 = vld [vmem:[#allocation17 + $0xc88] sm:$0xff]
    %v1335 = vld [vmem:[#allocation17 + $0xc90] sm:$0xff]
    %v1336 = vld [vmem:[#allocation17 + $0xc98] sm:$0xff]
    %v1337 = vld [vmem:[#allocation17 + $0xca0] sm:$0xff]
    %v1338 = vld [vmem:[#allocation17 + $0xca8] sm:$0xff]
    %v1339 = vld [vmem:[#allocation17 + $0xcb0] sm:$0xff]
    %v1340 = vld [vmem:[#allocation17 + $0xcb8] sm:$0xff]
    %v1341 = vld [vmem:[#allocation17 + $0xcc0] sm:$0xff]
    %v1342 = vld [vmem:[#allocation17 + $0xcc8] sm:$0xff]
    %v1343 = vld [vmem:[#allocation17 + $0xcd0] sm:$0xff]
    %v1344 = vld [vmem:[#allocation17 + $0xcd8] sm:$0xff]
    %v1345 = vld [vmem:[#allocation17 + $0xce0] sm:$0xff]
    %v1346 = vld [vmem:[#allocation17 + $0xce8] sm:$0xff]
    %v1347 = vld [vmem:[#allocation17 + $0xcf0] sm:$0xff]
    %v1348 = vld [vmem:[#allocation17 + $0xcf8] sm:$0xff]
    %v1349 = vld [vmem:[#allocation17 + $0xd00] sm:$0xff]
    %v1350 = vld [vmem:[#allocation17 + $0xd08] sm:$0xff]
    %v1351 = vld [vmem:[#allocation17 + $0xd10] sm:$0xff]
    %v1352 = vld [vmem:[#allocation17 + $0xd18] sm:$0xff]
    %v1353 = vld [vmem:[#allocation17 + $0xd20] sm:$0xff]
    %v1354 = vld [vmem:[#allocation17 + $0xd28] sm:$0xff]
    %v1355 = vld [vmem:[#allocation17 + $0xd30] sm:$0xff]
    %v1356 = vld [vmem:[#allocation17 + $0xd38] sm:$0xff]
    %v1357 = vld [vmem:[#allocation17 + $0xd40] sm:$0xff]
    %v1358 = vld [vmem:[#allocation17 + $0xd48] sm:$0xff]
    %v1359 = vld [vmem:[#allocation17 + $0xd50] sm:$0xff]
    %v1360 = vld [vmem:[#allocation17 + $0xd58] sm:$0xff]
    %v1361 = vld [vmem:[#allocation17 + $0xd60] sm:$0xff]
    %v1362 = vld [vmem:[#allocation17 + $0xd68] sm:$0xff]
    %v1363 = vld [vmem:[#allocation17 + $0xd70] sm:$0xff]
    %v1364 = vld [vmem:[#allocation17 + $0xd78] sm:$0xff]
    %v1365 = vld [vmem:[#allocation17 + $0xd80] sm:$0xff]
    %v1366 = vld [vmem:[#allocation17 + $0xd88] sm:$0xff]
    %v1367 = vld [vmem:[#allocation17 + $0xd90] sm:$0xff]
    %v1368 = vld [vmem:[#allocation17 + $0xd98] sm:$0xff]
    %v1369 = vld [vmem:[#allocation17 + $0xda0] sm:$0xff]
    %v1370 = vld [vmem:[#allocation17 + $0xda8] sm:$0xff]
    %v1371 = vld [vmem:[#allocation17 + $0xdb0] sm:$0xff]
    %v1372 = vld [vmem:[#allocation17 + $0xdb8] sm:$0xff]
    %v1373 = vld [vmem:[#allocation17 + $0xdc0] sm:$0xff]
    %v1374 = vld [vmem:[#allocation17 + $0xdc8] sm:$0xff]
    %v1375 = vld [vmem:[#allocation17 + $0xdd0] sm:$0xff]
    %v1376 = vld [vmem:[#allocation17 + $0xdd8] sm:$0xff]
    %v1377 = vld [vmem:[#allocation17 + $0xde0] sm:$0xff]
    %v1378 = vld [vmem:[#allocation17 + $0xde8] sm:$0xff]
    %v1379 = vld [vmem:[#allocation17 + $0xdf0] sm:$0xff]
    %v1380 = vld [vmem:[#allocation17 + $0xdf8] sm:$0xff]
    %v1381 = vld [vmem:[#allocation17 + $0xe00] sm:$0xff]
    %v1382 = vld [vmem:[#allocation17 + $0xe08] sm:$0xff]
    %v1383 = vld [vmem:[#allocation17 + $0xe10] sm:$0xff]
    %v1384 = vld [vmem:[#allocation17 + $0xe18] sm:$0xff]
    %v1385 = vld [vmem:[#allocation17 + $0xe20] sm:$0xff]
    %v1386 = vld [vmem:[#allocation17 + $0xe28] sm:$0xff]
    %v1387 = vld [vmem:[#allocation17 + $0xe30] sm:$0xff]
    %v1388 = vld [vmem:[#allocation17 + $0xe38] sm:$0xff]
    %v1389 = vld [vmem:[#allocation17 + $0xe40] sm:$0xff]
    %v1390 = vld [vmem:[#allocation17 + $0xe48] sm:$0xff]
    %v1391 = vld [vmem:[#allocation17 + $0xe50] sm:$0xff]
    %v1392 = vld [vmem:[#allocation17 + $0xe58] sm:$0xff]
    %v1393 = vld [vmem:[#allocation17 + $0xe60] sm:$0xff]
    %v1394 = vld [vmem:[#allocation17 + $0xe68] sm:$0xff]
    %v1395 = vld [vmem:[#allocation17 + $0xe70] sm:$0xff]
    %v1396 = vld [vmem:[#allocation17 + $0xe78] sm:$0xff]
    %v1397 = vld [vmem:[#allocation17 + $0xe80] sm:$0xff]
    %v1398 = vld [vmem:[#allocation17 + $0xe88] sm:$0xff]
    %v1399 = vld [vmem:[#allocation17 + $0xe90] sm:$0xff]
    %v1400 = vld [vmem:[#allocation17 + $0xe98] sm:$0xff]
    %v1401 = vld [vmem:[#allocation17 + $0xea0] sm:$0xff]
    %v1402 = vld [vmem:[#allocation17 + $0xea8] sm:$0xff]
    %v1403 = vld [vmem:[#allocation17 + $0xeb0] sm:$0xff]
    %v1404 = vld [vmem:[#allocation17 + $0xeb8] sm:$0xff]
    %v1405 = vld [vmem:[#allocation17 + $0xec0] sm:$0xff]
    %v1406 = vld [vmem:[#allocation17 + $0xec8] sm:$0xff]
    %v1407 = vld [vmem:[#allocation17 + $0xed0] sm:$0xff]
    %v1408 = vld [vmem:[#allocation17 + $0xed8] sm:$0xff]
    %v1409 = vld [vmem:[#allocation17 + $0xee0] sm:$0xff]
    %v1410 = vld [vmem:[#allocation17 + $0xee8] sm:$0xff]
    %v1411 = vld [vmem:[#allocation17 + $0xef0] sm:$0xff]
    %v1412 = vld [vmem:[#allocation17 + $0xef8] sm:$0xff]
    %v1413 = vld [vmem:[#allocation17 + $0xf00] sm:$0xff]
    %v1414 = vld [vmem:[#allocation17 + $0xf08] sm:$0xff]
    %v1415 = vld [vmem:[#allocation17 + $0xf10] sm:$0xff]
    %v1416 = vld [vmem:[#allocation17 + $0xf18] sm:$0xff]
    %v1417 = vld [vmem:[#allocation17 + $0xf20] sm:$0xff]
    %v1418 = vld [vmem:[#allocation17 + $0xf28] sm:$0xff]
    %v1419 = vld [vmem:[#allocation17 + $0xf30] sm:$0xff]
    %v1420 = vld [vmem:[#allocation17 + $0xf38] sm:$0xff]
    %v1421 = vld [vmem:[#allocation17 + $0xf40] sm:$0xff]
    %v1422 = vld [vmem:[#allocation17 + $0xf48] sm:$0xff]
    %v1423 = vld [vmem:[#allocation17 + $0xf50] sm:$0xff]
    %v1424 = vld [vmem:[#allocation17 + $0xf58] sm:$0xff]
    %v1425 = vld [vmem:[#allocation17 + $0xf60] sm:$0xff]
    %v1426 = vld [vmem:[#allocation17 + $0xf68] sm:$0xff]
    %v1427 = vld [vmem:[#allocation17 + $0xf70] sm:$0xff]
    %v1428 = vld [vmem:[#allocation17 + $0xf78] sm:$0xff]
    %v1429 = vld [vmem:[#allocation17 + $0xf80] sm:$0xff]
    %v1430 = vld [vmem:[#allocation17 + $0xf88] sm:$0xff]
    %v1431 = vld [vmem:[#allocation17 + $0xf90] sm:$0xff]
    %v1432 = vld [vmem:[#allocation17 + $0xf98] sm:$0xff]
    %v1433 = vld [vmem:[#allocation17 + $0xfa0] sm:$0xff]
    %v1434 = vld [vmem:[#allocation17 + $0xfa8] sm:$0xff]
    %v1435 = vld [vmem:[#allocation17 + $0xfb0] sm:$0xff]
    %v1436 = vld [vmem:[#allocation17 + $0xfb8] sm:$0xff]
    %v1437 = vld [vmem:[#allocation17 + $0xfc0] sm:$0xff]
    %v1438 = vld [vmem:[#allocation17 + $0xfc8] sm:$0xff]
    %v1439 = vld [vmem:[#allocation17 + $0xfd0] sm:$0xff]
    %v1440 = vld [vmem:[#allocation17 + $0xfd8] sm:$0xff]
    %v1441 = vld [vmem:[#allocation17 + $0xfe0] sm:$0xff]
    %v1442 = vld [vmem:[#allocation17 + $0xfe8] sm:$0xff]
    %v1443 = vld [vmem:[#allocation17 + $0xff0] sm:$0xff]
    %v1444 = vld [vmem:[#allocation17 + $0xff8] sm:$0xff]
    %v1445 = vld [vmem:[#allocation19] sm:$0xff]
    %v1446 = vld [vmem:[#allocation19 + $0x8] sm:$0xff]
    %v1449 = vperm.slane %v1445, 0
    %v1450 = vperm.slane %v1445, 1
    %v1451 = vperm.slane %v1445, 2
    %v1452 = vperm.slane %v1445, 3
    %v1453 = vperm.slane %v1445, 4
    %v1454 = vperm.slane %v1445, 5
    %v1455 = vperm.slane %v1445, 6
    %v1456 = vperm.slane %v1445, 7
    %v1457 = vperm.slane %v1446, 0
    %v1458 = vperm.slane %v1446, 1
    %v1459 = vperm.slane %v1446, 2
    %v1460 = vperm.slane %v1446, 3
    %v1461 = vperm.slane %v1446, 4
    %v1462 = vperm.slane %v1446, 5
    %v1463 = vperm.slane %v1446, 6
    %v1464 = vperm.slane %v1446, 7
    %v1993 = vunpack.c.l.b16 %v933
    %v1994 = vunpack.c.h.b16 %v933
    %v1995 = vunpack.c.l.b16 %v934
    %v1996 = vunpack.c.h.b16 %v934
    %v1997 = vunpack.c.l.b16 %v935
    %v1998 = vunpack.c.h.b16 %v935
    %v1999 = vunpack.c.l.b16 %v936
    %v2000 = vunpack.c.h.b16 %v936
    %v2001 = vunpack.c.l.b16 %v937
    %v2002 = vunpack.c.h.b16 %v937
    %v2003 = vunpack.c.l.b16 %v938
    %v2004 = vunpack.c.h.b16 %v938
    %v2005 = vunpack.c.l.b16 %v939
    %v2006 = vunpack.c.h.b16 %v939
    %v2007 = vunpack.c.l.b16 %v940
    %v2008 = vunpack.c.h.b16 %v940
    %v2009 = vunpack.c.l.b16 %v941
    %v2010 = vunpack.c.h.b16 %v941
    %v2011 = vunpack.c.l.b16 %v942
    %v2012 = vunpack.c.h.b16 %v942
    %v2013 = vunpack.c.l.b16 %v943
    %v2014 = vunpack.c.h.b16 %v943
    %v2015 = vunpack.c.l.b16 %v944
    %v2016 = vunpack.c.h.b16 %v944
    %v2017 = vunpack.c.l.b16 %v945
    %v2018 = vunpack.c.h.b16 %v945
    %v2019 = vunpack.c.l.b16 %v946
    %v2020 = vunpack.c.h.b16 %v946
    %v2021 = vunpack.c.l.b16 %v947
    %v2022 = vunpack.c.h.b16 %v947
    %v2023 = vunpack.c.l.b16 %v948
    %v2024 = vunpack.c.h.b16 %v948
    %v2025 = vunpack.c.l.b16 %v949
    %v2026 = vunpack.c.h.b16 %v949
    %v2027 = vunpack.c.l.b16 %v950
    %v2028 = vunpack.c.h.b16 %v950
    %v2029 = vunpack.c.l.b16 %v951
    %v2030 = vunpack.c.h.b16 %v951
    %v2031 = vunpack.c.l.b16 %v952
    %v2032 = vunpack.c.h.b16 %v952
    %v2033 = vunpack.c.l.b16 %v953
    %v2034 = vunpack.c.h.b16 %v953
    %v2035 = vunpack.c.l.b16 %v954
    %v2036 = vunpack.c.h.b16 %v954
    %v2037 = vunpack.c.l.b16 %v955
    %v2038 = vunpack.c.h.b16 %v955
    %v2039 = vunpack.c.l.b16 %v956
    %v2040 = vunpack.c.h.b16 %v956
    %v2041 = vunpack.c.l.b16 %v957
    %v2042 = vunpack.c.h.b16 %v957
    %v2043 = vunpack.c.l.b16 %v958
    %v2044 = vunpack.c.h.b16 %v958
    %v2045 = vunpack.c.l.b16 %v959
    %v2046 = vunpack.c.h.b16 %v959
    %v2047 = vunpack.c.l.b16 %v960
    %v2048 = vunpack.c.h.b16 %v960
    %v2049 = vunpack.c.l.b16 %v961
    %v2050 = vunpack.c.h.b16 %v961
    %v2051 = vunpack.c.l.b16 %v962
    %v2052 = vunpack.c.h.b16 %v962
    %v2053 = vunpack.c.l.b16 %v963
    %v2054 = vunpack.c.h.b16 %v963
    %v2055 = vunpack.c.l.b16 %v964
    %v2056 = vunpack.c.h.b16 %v964
    %v2057 = vunpack.c.l.b16 %v965
    %v2058 = vunpack.c.h.b16 %v965
    %v2059 = vunpack.c.l.b16 %v966
    %v2060 = vunpack.c.h.b16 %v966
    %v2061 = vunpack.c.l.b16 %v967
    %v2062 = vunpack.c.h.b16 %v967
    %v2063 = vunpack.c.l.b16 %v968
    %v2064 = vunpack.c.h.b16 %v968
    %v2065 = vunpack.c.l.b16 %v969
    %v2066 = vunpack.c.h.b16 %v969
    %v2067 = vunpack.c.l.b16 %v970
    %v2068 = vunpack.c.h.b16 %v970
    %v2069 = vunpack.c.l.b16 %v971
    %v2070 = vunpack.c.h.b16 %v971
    %v2071 = vunpack.c.l.b16 %v972
    %v2072 = vunpack.c.h.b16 %v972
    %v2073 = vunpack.c.l.b16 %v973
    %v2074 = vunpack.c.h.b16 %v973
    %v2075 = vunpack.c.l.b16 %v974
    %v2076 = vunpack.c.h.b16 %v974
    %v2077 = vunpack.c.l.b16 %v975
    %v2078 = vunpack.c.h.b16 %v975
    %v2079 = vunpack.c.l.b16 %v976
    %v2080 = vunpack.c.h.b16 %v976
    %v2081 = vunpack.c.l.b16 %v977
    %v2082 = vunpack.c.h.b16 %v977
    %v2083 = vunpack.c.l.b16 %v978
    %v2084 = vunpack.c.h.b16 %v978
    %v2085 = vunpack.c.l.b16 %v979
    %v2086 = vunpack.c.h.b16 %v979
    %v2087 = vunpack.c.l.b16 %v980
    %v2088 = vunpack.c.h.b16 %v980
    %v2089 = vunpack.c.l.b16 %v981
    %v2090 = vunpack.c.h.b16 %v981
    %v2091 = vunpack.c.l.b16 %v982
    %v2092 = vunpack.c.h.b16 %v982
    %v2093 = vunpack.c.l.b16 %v983
    %v2094 = vunpack.c.h.b16 %v983
    %v2095 = vunpack.c.l.b16 %v984
    %v2096 = vunpack.c.h.b16 %v984
    %v2097 = vunpack.c.l.b16 %v985
    %v2098 = vunpack.c.h.b16 %v985
    %v2099 = vunpack.c.l.b16 %v986
    %v2100 = vunpack.c.h.b16 %v986
    %v2101 = vunpack.c.l.b16 %v987
    %v2102 = vunpack.c.h.b16 %v987
    %v2103 = vunpack.c.l.b16 %v988
    %v2104 = vunpack.c.h.b16 %v988
    %v2105 = vunpack.c.l.b16 %v989
    %v2106 = vunpack.c.h.b16 %v989
    %v2107 = vunpack.c.l.b16 %v990
    %v2108 = vunpack.c.h.b16 %v990
    %v2109 = vunpack.c.l.b16 %v991
    %v2110 = vunpack.c.h.b16 %v991
    %v2111 = vunpack.c.l.b16 %v992
    %v2112 = vunpack.c.h.b16 %v992
    %v2113 = vunpack.c.l.b16 %v993
    %v2114 = vunpack.c.h.b16 %v993
    %v2115 = vunpack.c.l.b16 %v994
    %v2116 = vunpack.c.h.b16 %v994
    %v2117 = vunpack.c.l.b16 %v995
    %v2118 = vunpack.c.h.b16 %v995
    %v2119 = vunpack.c.l.b16 %v996
    %v2120 = vunpack.c.h.b16 %v996
    %v2121 = vunpack.c.l.b16 %v997
    %v2122 = vunpack.c.h.b16 %v997
    %v2123 = vunpack.c.l.b16 %v998
    %v2124 = vunpack.c.h.b16 %v998
    %v2125 = vunpack.c.l.b16 %v999
    %v2126 = vunpack.c.h.b16 %v999
    %v2127 = vunpack.c.l.b16 %v1000
    %v2128 = vunpack.c.h.b16 %v1000
    %v2129 = vunpack.c.l.b16 %v1001
    %v2130 = vunpack.c.h.b16 %v1001
    %v2131 = vunpack.c.l.b16 %v1002
    %v2132 = vunpack.c.h.b16 %v1002
    %v2133 = vunpack.c.l.b16 %v1003
    %v2134 = vunpack.c.h.b16 %v1003
    %v2135 = vunpack.c.l.b16 %v1004
    %v2136 = vunpack.c.h.b16 %v1004
    %v2137 = vunpack.c.l.b16 %v1005
    %v2138 = vunpack.c.h.b16 %v1005
    %v2139 = vunpack.c.l.b16 %v1006
    %v2140 = vunpack.c.h.b16 %v1006
    %v2141 = vunpack.c.l.b16 %v1007
    %v2142 = vunpack.c.h.b16 %v1007
    %v2143 = vunpack.c.l.b16 %v1008
    %v2144 = vunpack.c.h.b16 %v1008
    %v2145 = vunpack.c.l.b16 %v1009
    %v2146 = vunpack.c.h.b16 %v1009
    %v2147 = vunpack.c.l.b16 %v1010
    %v2148 = vunpack.c.h.b16 %v1010
    %v2149 = vunpack.c.l.b16 %v1011
    %v2150 = vunpack.c.h.b16 %v1011
    %v2151 = vunpack.c.l.b16 %v1012
    %v2152 = vunpack.c.h.b16 %v1012
    %v2153 = vunpack.c.l.b16 %v1013
    %v2154 = vunpack.c.h.b16 %v1013
    %v2155 = vunpack.c.l.b16 %v1014
    %v2156 = vunpack.c.h.b16 %v1014
    %v2157 = vunpack.c.l.b16 %v1015
    %v2158 = vunpack.c.h.b16 %v1015
    %v2159 = vunpack.c.l.b16 %v1016
    %v2160 = vunpack.c.h.b16 %v1016
    %v2161 = vunpack.c.l.b16 %v1017
    %v2162 = vunpack.c.h.b16 %v1017
    %v2163 = vunpack.c.l.b16 %v1018
    %v2164 = vunpack.c.h.b16 %v1018
    %v2165 = vunpack.c.l.b16 %v1019
    %v2166 = vunpack.c.h.b16 %v1019
    %v2167 = vunpack.c.l.b16 %v1020
    %v2168 = vunpack.c.h.b16 %v1020
    %v2169 = vunpack.c.l.b16 %v1021
    %v2170 = vunpack.c.h.b16 %v1021
    %v2171 = vunpack.c.l.b16 %v1022
    %v2172 = vunpack.c.h.b16 %v1022
    %v2173 = vunpack.c.l.b16 %v1023
    %v2174 = vunpack.c.h.b16 %v1023
    %v2175 = vunpack.c.l.b16 %v1024
    %v2176 = vunpack.c.h.b16 %v1024
    %v2177 = vunpack.c.l.b16 %v1025
    %v2178 = vunpack.c.h.b16 %v1025
    %v2179 = vunpack.c.l.b16 %v1026
    %v2180 = vunpack.c.h.b16 %v1026
    %v2181 = vunpack.c.l.b16 %v1027
    %v2182 = vunpack.c.h.b16 %v1027
    %v2183 = vunpack.c.l.b16 %v1028
    %v2184 = vunpack.c.h.b16 %v1028
    %v2185 = vunpack.c.l.b16 %v1029
    %v2186 = vunpack.c.h.b16 %v1029
    %v2187 = vunpack.c.l.b16 %v1030
    %v2188 = vunpack.c.h.b16 %v1030
    %v2189 = vunpack.c.l.b16 %v1031
    %v2190 = vunpack.c.h.b16 %v1031
    %v2191 = vunpack.c.l.b16 %v1032
    %v2192 = vunpack.c.h.b16 %v1032
    %v2193 = vunpack.c.l.b16 %v1033
    %v2194 = vunpack.c.h.b16 %v1033
    %v2195 = vunpack.c.l.b16 %v1034
    %v2196 = vunpack.c.h.b16 %v1034
    %v2197 = vunpack.c.l.b16 %v1035
    %v2198 = vunpack.c.h.b16 %v1035
    %v2199 = vunpack.c.l.b16 %v1036
    %v2200 = vunpack.c.h.b16 %v1036
    %v2201 = vunpack.c.l.b16 %v1037
    %v2202 = vunpack.c.h.b16 %v1037
    %v2203 = vunpack.c.l.b16 %v1038
    %v2204 = vunpack.c.h.b16 %v1038
    %v2205 = vunpack.c.l.b16 %v1039
    %v2206 = vunpack.c.h.b16 %v1039
    %v2207 = vunpack.c.l.b16 %v1040
    %v2208 = vunpack.c.h.b16 %v1040
    %v2209 = vunpack.c.l.b16 %v1041
    %v2210 = vunpack.c.h.b16 %v1041
    %v2211 = vunpack.c.l.b16 %v1042
    %v2212 = vunpack.c.h.b16 %v1042
    %v2213 = vunpack.c.l.b16 %v1043
    %v2214 = vunpack.c.h.b16 %v1043
    %v2215 = vunpack.c.l.b16 %v1044
    %v2216 = vunpack.c.h.b16 %v1044
    %v2217 = vunpack.c.l.b16 %v1045
    %v2218 = vunpack.c.h.b16 %v1045
    %v2219 = vunpack.c.l.b16 %v1046
    %v2220 = vunpack.c.h.b16 %v1046
    %v2221 = vunpack.c.l.b16 %v1047
    %v2222 = vunpack.c.h.b16 %v1047
    %v2223 = vunpack.c.l.b16 %v1048
    %v2224 = vunpack.c.h.b16 %v1048
    %v2225 = vunpack.c.l.b16 %v1049
    %v2226 = vunpack.c.h.b16 %v1049
    %v2227 = vunpack.c.l.b16 %v1050
    %v2228 = vunpack.c.h.b16 %v1050
    %v2229 = vunpack.c.l.b16 %v1051
    %v2230 = vunpack.c.h.b16 %v1051
    %v2231 = vunpack.c.l.b16 %v1052
    %v2232 = vunpack.c.h.b16 %v1052
    %v2233 = vunpack.c.l.b16 %v1053
    %v2234 = vunpack.c.h.b16 %v1053
    %v2235 = vunpack.c.l.b16 %v1054
    %v2236 = vunpack.c.h.b16 %v1054
    %v2237 = vunpack.c.l.b16 %v1055
    %v2238 = vunpack.c.h.b16 %v1055
    %v2239 = vunpack.c.l.b16 %v1056
    %v2240 = vunpack.c.h.b16 %v1056
    %v2241 = vunpack.c.l.b16 %v1057
    %v2242 = vunpack.c.h.b16 %v1057
    %v2243 = vunpack.c.l.b16 %v1058
    %v2244 = vunpack.c.h.b16 %v1058
    %v2245 = vunpack.c.l.b16 %v1059
    %v2246 = vunpack.c.h.b16 %v1059
    %v2247 = vunpack.c.l.b16 %v1060
    %v2248 = vunpack.c.h.b16 %v1060
    %v2249 = vunpack.c.l.b16 %v1061
    %v2250 = vunpack.c.h.b16 %v1061
    %v2251 = vunpack.c.l.b16 %v1062
    %v2252 = vunpack.c.h.b16 %v1062
    %v2253 = vunpack.c.l.b16 %v1063
    %v2254 = vunpack.c.h.b16 %v1063
    %v2255 = vunpack.c.l.b16 %v1064
    %v2256 = vunpack.c.h.b16 %v1064
    %v2257 = vunpack.c.l.b16 %v1065
    %v2258 = vunpack.c.h.b16 %v1065
    %v2259 = vunpack.c.l.b16 %v1066
    %v2260 = vunpack.c.h.b16 %v1066
    %v2261 = vunpack.c.l.b16 %v1067
    %v2262 = vunpack.c.h.b16 %v1067
    %v2263 = vunpack.c.l.b16 %v1068
    %v2264 = vunpack.c.h.b16 %v1068
    %v2265 = vunpack.c.l.b16 %v1069
    %v2266 = vunpack.c.h.b16 %v1069
    %v2267 = vunpack.c.l.b16 %v1070
    %v2268 = vunpack.c.h.b16 %v1070
    %v2269 = vunpack.c.l.b16 %v1071
    %v2270 = vunpack.c.h.b16 %v1071
    %v2271 = vunpack.c.l.b16 %v1072
    %v2272 = vunpack.c.h.b16 %v1072
    %v2273 = vunpack.c.l.b16 %v1073
    %v2274 = vunpack.c.h.b16 %v1073
    %v2275 = vunpack.c.l.b16 %v1074
    %v2276 = vunpack.c.h.b16 %v1074
    %v2277 = vunpack.c.l.b16 %v1075
    %v2278 = vunpack.c.h.b16 %v1075
    %v2279 = vunpack.c.l.b16 %v1076
    %v2280 = vunpack.c.h.b16 %v1076
    %v2281 = vunpack.c.l.b16 %v1077
    %v2282 = vunpack.c.h.b16 %v1077
    %v2283 = vunpack.c.l.b16 %v1078
    %v2284 = vunpack.c.h.b16 %v1078
    %v2285 = vunpack.c.l.b16 %v1079
    %v2286 = vunpack.c.h.b16 %v1079
    %v2287 = vunpack.c.l.b16 %v1080
    %v2288 = vunpack.c.h.b16 %v1080
    %v2289 = vunpack.c.l.b16 %v1081
    %v2290 = vunpack.c.h.b16 %v1081
    %v2291 = vunpack.c.l.b16 %v1082
    %v2292 = vunpack.c.h.b16 %v1082
    %v2293 = vunpack.c.l.b16 %v1083
    %v2294 = vunpack.c.h.b16 %v1083
    %v2295 = vunpack.c.l.b16 %v1084
    %v2296 = vunpack.c.h.b16 %v1084
    %v2297 = vunpack.c.l.b16 %v1085
    %v2298 = vunpack.c.h.b16 %v1085
    %v2299 = vunpack.c.l.b16 %v1086
    %v2300 = vunpack.c.h.b16 %v1086
    %v2301 = vunpack.c.l.b16 %v1087
    %v2302 = vunpack.c.h.b16 %v1087
    %v2303 = vunpack.c.l.b16 %v1088
    %v2304 = vunpack.c.h.b16 %v1088
    %v2305 = vunpack.c.l.b16 %v1089
    %v2306 = vunpack.c.h.b16 %v1089
    %v2307 = vunpack.c.l.b16 %v1090
    %v2308 = vunpack.c.h.b16 %v1090
    %v2309 = vunpack.c.l.b16 %v1091
    %v2310 = vunpack.c.h.b16 %v1091
    %v2311 = vunpack.c.l.b16 %v1092
    %v2312 = vunpack.c.h.b16 %v1092
    %v2313 = vunpack.c.l.b16 %v1093
    %v2314 = vunpack.c.h.b16 %v1093
    %v2315 = vunpack.c.l.b16 %v1094
    %v2316 = vunpack.c.h.b16 %v1094
    %v2317 = vunpack.c.l.b16 %v1095
    %v2318 = vunpack.c.h.b16 %v1095
    %v2319 = vunpack.c.l.b16 %v1096
    %v2320 = vunpack.c.h.b16 %v1096
    %v2321 = vunpack.c.l.b16 %v1097
    %v2322 = vunpack.c.h.b16 %v1097
    %v2323 = vunpack.c.l.b16 %v1098
    %v2324 = vunpack.c.h.b16 %v1098
    %v2325 = vunpack.c.l.b16 %v1099
    %v2326 = vunpack.c.h.b16 %v1099
    %v2327 = vunpack.c.l.b16 %v1100
    %v2328 = vunpack.c.h.b16 %v1100
    %v2329 = vunpack.c.l.b16 %v1101
    %v2330 = vunpack.c.h.b16 %v1101
    %v2331 = vunpack.c.l.b16 %v1102
    %v2332 = vunpack.c.h.b16 %v1102
    %v2333 = vunpack.c.l.b16 %v1103
    %v2334 = vunpack.c.h.b16 %v1103
    %v2335 = vunpack.c.l.b16 %v1104
    %v2336 = vunpack.c.h.b16 %v1104
    %v2337 = vunpack.c.l.b16 %v1105
    %v2338 = vunpack.c.h.b16 %v1105
    %v2339 = vunpack.c.l.b16 %v1106
    %v2340 = vunpack.c.h.b16 %v1106
    %v2341 = vunpack.c.l.b16 %v1107
    %v2342 = vunpack.c.h.b16 %v1107
    %v2343 = vunpack.c.l.b16 %v1108
    %v2344 = vunpack.c.h.b16 %v1108
    %v2345 = vunpack.c.l.b16 %v1109
    %v2346 = vunpack.c.h.b16 %v1109
    %v2347 = vunpack.c.l.b16 %v1110
    %v2348 = vunpack.c.h.b16 %v1110
    %v2349 = vunpack.c.l.b16 %v1111
    %v2350 = vunpack.c.h.b16 %v1111
    %v2351 = vunpack.c.l.b16 %v1112
    %v2352 = vunpack.c.h.b16 %v1112
    %v2353 = vunpack.c.l.b16 %v1113
    %v2354 = vunpack.c.h.b16 %v1113
    %v2355 = vunpack.c.l.b16 %v1114
    %v2356 = vunpack.c.h.b16 %v1114
    %v2357 = vunpack.c.l.b16 %v1115
    %v2358 = vunpack.c.h.b16 %v1115
    %v2359 = vunpack.c.l.b16 %v1116
    %v2360 = vunpack.c.h.b16 %v1116
    %v2361 = vunpack.c.l.b16 %v1117
    %v2362 = vunpack.c.h.b16 %v1117
    %v2363 = vunpack.c.l.b16 %v1118
    %v2364 = vunpack.c.h.b16 %v1118
    %v2365 = vunpack.c.l.b16 %v1119
    %v2366 = vunpack.c.h.b16 %v1119
    %v2367 = vunpack.c.l.b16 %v1120
    %v2368 = vunpack.c.h.b16 %v1120
    %v2369 = vunpack.c.l.b16 %v1121
    %v2370 = vunpack.c.h.b16 %v1121
    %v2371 = vunpack.c.l.b16 %v1122
    %v2372 = vunpack.c.h.b16 %v1122
    %v2373 = vunpack.c.l.b16 %v1123
    %v2374 = vunpack.c.h.b16 %v1123
    %v2375 = vunpack.c.l.b16 %v1124
    %v2376 = vunpack.c.h.b16 %v1124
    %v2377 = vunpack.c.l.b16 %v1125
    %v2378 = vunpack.c.h.b16 %v1125
    %v2379 = vunpack.c.l.b16 %v1126
    %v2380 = vunpack.c.h.b16 %v1126
    %v2381 = vunpack.c.l.b16 %v1127
    %v2382 = vunpack.c.h.b16 %v1127
    %v2383 = vunpack.c.l.b16 %v1128
    %v2384 = vunpack.c.h.b16 %v1128
    %v2385 = vunpack.c.l.b16 %v1129
    %v2386 = vunpack.c.h.b16 %v1129
    %v2387 = vunpack.c.l.b16 %v1130
    %v2388 = vunpack.c.h.b16 %v1130
    %v2389 = vunpack.c.l.b16 %v1131
    %v2390 = vunpack.c.h.b16 %v1131
    %v2391 = vunpack.c.l.b16 %v1132
    %v2392 = vunpack.c.h.b16 %v1132
    %v2393 = vunpack.c.l.b16 %v1133
    %v2394 = vunpack.c.h.b16 %v1133
    %v2395 = vunpack.c.l.b16 %v1134
    %v2396 = vunpack.c.h.b16 %v1134
    %v2397 = vunpack.c.l.b16 %v1135
    %v2398 = vunpack.c.h.b16 %v1135
    %v2399 = vunpack.c.l.b16 %v1136
    %v2400 = vunpack.c.h.b16 %v1136
    %v2401 = vunpack.c.l.b16 %v1137
    %v2402 = vunpack.c.h.b16 %v1137
    %v2403 = vunpack.c.l.b16 %v1138
    %v2404 = vunpack.c.h.b16 %v1138
    %v2405 = vunpack.c.l.b16 %v1139
    %v2406 = vunpack.c.h.b16 %v1139
    %v2407 = vunpack.c.l.b16 %v1140
    %v2408 = vunpack.c.h.b16 %v1140
    %v2409 = vunpack.c.l.b16 %v1141
    %v2410 = vunpack.c.h.b16 %v1141
    %v2411 = vunpack.c.l.b16 %v1142
    %v2412 = vunpack.c.h.b16 %v1142
    %v2413 = vunpack.c.l.b16 %v1143
    %v2414 = vunpack.c.h.b16 %v1143
    %v2415 = vunpack.c.l.b16 %v1144
    %v2416 = vunpack.c.h.b16 %v1144
    %v2417 = vunpack.c.l.b16 %v1145
    %v2418 = vunpack.c.h.b16 %v1145
    %v2419 = vunpack.c.l.b16 %v1146
    %v2420 = vunpack.c.h.b16 %v1146
    %v2421 = vunpack.c.l.b16 %v1147
    %v2422 = vunpack.c.h.b16 %v1147
    %v2423 = vunpack.c.l.b16 %v1148
    %v2424 = vunpack.c.h.b16 %v1148
    %v2425 = vunpack.c.l.b16 %v1149
    %v2426 = vunpack.c.h.b16 %v1149
    %v2427 = vunpack.c.l.b16 %v1150
    %v2428 = vunpack.c.h.b16 %v1150
    %v2429 = vunpack.c.l.b16 %v1151
    %v2430 = vunpack.c.h.b16 %v1151
    %v2431 = vunpack.c.l.b16 %v1152
    %v2432 = vunpack.c.h.b16 %v1152
    %v2433 = vunpack.c.l.b16 %v1153
    %v2434 = vunpack.c.h.b16 %v1153
    %v2435 = vunpack.c.l.b16 %v1154
    %v2436 = vunpack.c.h.b16 %v1154
    %v2437 = vunpack.c.l.b16 %v1155
    %v2438 = vunpack.c.h.b16 %v1155
    %v2439 = vunpack.c.l.b16 %v1156
    %v2440 = vunpack.c.h.b16 %v1156
    %v2441 = vunpack.c.l.b16 %v1157
    %v2442 = vunpack.c.h.b16 %v1157
    %v2443 = vunpack.c.l.b16 %v1158
    %v2444 = vunpack.c.h.b16 %v1158
    %v2445 = vunpack.c.l.b16 %v1159
    %v2446 = vunpack.c.h.b16 %v1159
    %v2447 = vunpack.c.l.b16 %v1160
    %v2448 = vunpack.c.h.b16 %v1160
    %v2449 = vunpack.c.l.b16 %v1161
    %v2450 = vunpack.c.h.b16 %v1161
    %v2451 = vunpack.c.l.b16 %v1162
    %v2452 = vunpack.c.h.b16 %v1162
    %v2453 = vunpack.c.l.b16 %v1163
    %v2454 = vunpack.c.h.b16 %v1163
    %v2455 = vunpack.c.l.b16 %v1164
    %v2456 = vunpack.c.h.b16 %v1164
    %v2457 = vunpack.c.l.b16 %v1165
    %v2458 = vunpack.c.h.b16 %v1165
    %v2459 = vunpack.c.l.b16 %v1166
    %v2460 = vunpack.c.h.b16 %v1166
    %v2461 = vunpack.c.l.b16 %v1167
    %v2462 = vunpack.c.h.b16 %v1167
    %v2463 = vunpack.c.l.b16 %v1168
    %v2464 = vunpack.c.h.b16 %v1168
    %v2465 = vunpack.c.l.b16 %v1169
    %v2466 = vunpack.c.h.b16 %v1169
    %v2467 = vunpack.c.l.b16 %v1170
    %v2468 = vunpack.c.h.b16 %v1170
    %v2469 = vunpack.c.l.b16 %v1171
    %v2470 = vunpack.c.h.b16 %v1171
    %v2471 = vunpack.c.l.b16 %v1172
    %v2472 = vunpack.c.h.b16 %v1172
    %v2473 = vunpack.c.l.b16 %v1173
    %v2474 = vunpack.c.h.b16 %v1173
    %v2475 = vunpack.c.l.b16 %v1174
    %v2476 = vunpack.c.h.b16 %v1174
    %v2477 = vunpack.c.l.b16 %v1175
    %v2478 = vunpack.c.h.b16 %v1175
    %v2479 = vunpack.c.l.b16 %v1176
    %v2480 = vunpack.c.h.b16 %v1176
    %v2481 = vunpack.c.l.b16 %v1177
    %v2482 = vunpack.c.h.b16 %v1177
    %v2483 = vunpack.c.l.b16 %v1178
    %v2484 = vunpack.c.h.b16 %v1178
    %v2485 = vunpack.c.l.b16 %v1179
    %v2486 = vunpack.c.h.b16 %v1179
    %v2487 = vunpack.c.l.b16 %v1180
    %v2488 = vunpack.c.h.b16 %v1180
    %v2489 = vunpack.c.l.b16 %v1181
    %v2490 = vunpack.c.h.b16 %v1181
    %v2491 = vunpack.c.l.b16 %v1182
    %v2492 = vunpack.c.h.b16 %v1182
    %v2493 = vunpack.c.l.b16 %v1183
    %v2494 = vunpack.c.h.b16 %v1183
    %v2495 = vunpack.c.l.b16 %v1184
    %v2496 = vunpack.c.h.b16 %v1184
    %v2497 = vunpack.c.l.b16 %v1185
    %v2498 = vunpack.c.h.b16 %v1185
    %v2499 = vunpack.c.l.b16 %v1186
    %v2500 = vunpack.c.h.b16 %v1186
    %v2501 = vunpack.c.l.b16 %v1187
    %v2502 = vunpack.c.h.b16 %v1187
    %v2503 = vunpack.c.l.b16 %v1188
    %v2504 = vunpack.c.h.b16 %v1188
    %v2505 = vunpack.c.l.b16 %v1189
    %v2506 = vunpack.c.h.b16 %v1189
    %v2507 = vunpack.c.l.b16 %v1190
    %v2508 = vunpack.c.h.b16 %v1190
    %v2509 = vunpack.c.l.b16 %v1191
    %v2510 = vunpack.c.h.b16 %v1191
    %v2511 = vunpack.c.l.b16 %v1192
    %v2512 = vunpack.c.h.b16 %v1192
    %v2513 = vunpack.c.l.b16 %v1193
    %v2514 = vunpack.c.h.b16 %v1193
    %v2515 = vunpack.c.l.b16 %v1194
    %v2516 = vunpack.c.h.b16 %v1194
    %v2517 = vunpack.c.l.b16 %v1195
    %v2518 = vunpack.c.h.b16 %v1195
    %v2519 = vunpack.c.l.b16 %v1196
    %v2520 = vunpack.c.h.b16 %v1196
    %v2521 = vunpack.c.l.b16 %v1197
    %v2522 = vunpack.c.h.b16 %v1197
    %v2523 = vunpack.c.l.b16 %v1198
    %v2524 = vunpack.c.h.b16 %v1198
    %v2525 = vunpack.c.l.b16 %v1199
    %v2526 = vunpack.c.h.b16 %v1199
    %v2527 = vunpack.c.l.b16 %v1200
    %v2528 = vunpack.c.h.b16 %v1200
    %v2529 = vunpack.c.l.b16 %v1201
    %v2530 = vunpack.c.h.b16 %v1201
    %v2531 = vunpack.c.l.b16 %v1202
    %v2532 = vunpack.c.h.b16 %v1202
    %v2533 = vunpack.c.l.b16 %v1203
    %v2534 = vunpack.c.h.b16 %v1203
    %v2535 = vunpack.c.l.b16 %v1204
    %v2536 = vunpack.c.h.b16 %v1204
    %v2537 = vunpack.c.l.b16 %v1205
    %v2538 = vunpack.c.h.b16 %v1205
    %v2539 = vunpack.c.l.b16 %v1206
    %v2540 = vunpack.c.h.b16 %v1206
    %v2541 = vunpack.c.l.b16 %v1207
    %v2542 = vunpack.c.h.b16 %v1207
    %v2543 = vunpack.c.l.b16 %v1208
    %v2544 = vunpack.c.h.b16 %v1208
    %v2545 = vunpack.c.l.b16 %v1209
    %v2546 = vunpack.c.h.b16 %v1209
    %v2547 = vunpack.c.l.b16 %v1210
    %v2548 = vunpack.c.h.b16 %v1210
    %v2549 = vunpack.c.l.b16 %v1211
    %v2550 = vunpack.c.h.b16 %v1211
    %v2551 = vunpack.c.l.b16 %v1212
    %v2552 = vunpack.c.h.b16 %v1212
    %v2553 = vunpack.c.l.b16 %v1213
    %v2554 = vunpack.c.h.b16 %v1213
    %v2555 = vunpack.c.l.b16 %v1214
    %v2556 = vunpack.c.h.b16 %v1214
    %v2557 = vunpack.c.l.b16 %v1215
    %v2558 = vunpack.c.h.b16 %v1215
    %v2559 = vunpack.c.l.b16 %v1216
    %v2560 = vunpack.c.h.b16 %v1216
    %v2561 = vunpack.c.l.b16 %v1217
    %v2562 = vunpack.c.h.b16 %v1217
    %v2563 = vunpack.c.l.b16 %v1218
    %v2564 = vunpack.c.h.b16 %v1218
    %v2565 = vunpack.c.l.b16 %v1219
    %v2566 = vunpack.c.h.b16 %v1219
    %v2567 = vunpack.c.l.b16 %v1220
    %v2568 = vunpack.c.h.b16 %v1220
    %v2569 = vunpack.c.l.b16 %v1221
    %v2570 = vunpack.c.h.b16 %v1221
    %v2571 = vunpack.c.l.b16 %v1222
    %v2572 = vunpack.c.h.b16 %v1222
    %v2573 = vunpack.c.l.b16 %v1223
    %v2574 = vunpack.c.h.b16 %v1223
    %v2575 = vunpack.c.l.b16 %v1224
    %v2576 = vunpack.c.h.b16 %v1224
    %v2577 = vunpack.c.l.b16 %v1225
    %v2578 = vunpack.c.h.b16 %v1225
    %v2579 = vunpack.c.l.b16 %v1226
    %v2580 = vunpack.c.h.b16 %v1226
    %v2581 = vunpack.c.l.b16 %v1227
    %v2582 = vunpack.c.h.b16 %v1227
    %v2583 = vunpack.c.l.b16 %v1228
    %v2584 = vunpack.c.h.b16 %v1228
    %v2585 = vunpack.c.l.b16 %v1229
    %v2586 = vunpack.c.h.b16 %v1229
    %v2587 = vunpack.c.l.b16 %v1230
    %v2588 = vunpack.c.h.b16 %v1230
    %v2589 = vunpack.c.l.b16 %v1231
    %v2590 = vunpack.c.h.b16 %v1231
    %v2591 = vunpack.c.l.b16 %v1232
    %v2592 = vunpack.c.h.b16 %v1232
    %v2593 = vunpack.c.l.b16 %v1233
    %v2594 = vunpack.c.h.b16 %v1233
    %v2595 = vunpack.c.l.b16 %v1234
    %v2596 = vunpack.c.h.b16 %v1234
    %v2597 = vunpack.c.l.b16 %v1235
    %v2598 = vunpack.c.h.b16 %v1235
    %v2599 = vunpack.c.l.b16 %v1236
    %v2600 = vunpack.c.h.b16 %v1236
    %v2601 = vunpack.c.l.b16 %v1237
    %v2602 = vunpack.c.h.b16 %v1237
    %v2603 = vunpack.c.l.b16 %v1238
    %v2604 = vunpack.c.h.b16 %v1238
    %v2605 = vunpack.c.l.b16 %v1239
    %v2606 = vunpack.c.h.b16 %v1239
    %v2607 = vunpack.c.l.b16 %v1240
    %v2608 = vunpack.c.h.b16 %v1240
    %v2609 = vunpack.c.l.b16 %v1241
    %v2610 = vunpack.c.h.b16 %v1241
    %v2611 = vunpack.c.l.b16 %v1242
    %v2612 = vunpack.c.h.b16 %v1242
    %v2613 = vunpack.c.l.b16 %v1243
    %v2614 = vunpack.c.h.b16 %v1243
    %v2615 = vunpack.c.l.b16 %v1244
    %v2616 = vunpack.c.h.b16 %v1244
    %v2617 = vunpack.c.l.b16 %v1245
    %v2618 = vunpack.c.h.b16 %v1245
    %v2619 = vunpack.c.l.b16 %v1246
    %v2620 = vunpack.c.h.b16 %v1246
    %v2621 = vunpack.c.l.b16 %v1247
    %v2622 = vunpack.c.h.b16 %v1247
    %v2623 = vunpack.c.l.b16 %v1248
    %v2624 = vunpack.c.h.b16 %v1248
    %v2625 = vunpack.c.l.b16 %v1249
    %v2626 = vunpack.c.h.b16 %v1249
    %v2627 = vunpack.c.l.b16 %v1250
    %v2628 = vunpack.c.h.b16 %v1250
    %v2629 = vunpack.c.l.b16 %v1251
    %v2630 = vunpack.c.h.b16 %v1251
    %v2631 = vunpack.c.l.b16 %v1252
    %v2632 = vunpack.c.h.b16 %v1252
    %v2633 = vunpack.c.l.b16 %v1253
    %v2634 = vunpack.c.h.b16 %v1253
    %v2635 = vunpack.c.l.b16 %v1254
    %v2636 = vunpack.c.h.b16 %v1254
    %v2637 = vunpack.c.l.b16 %v1255
    %v2638 = vunpack.c.h.b16 %v1255
    %v2639 = vunpack.c.l.b16 %v1256
    %v2640 = vunpack.c.h.b16 %v1256
    %v2641 = vunpack.c.l.b16 %v1257
    %v2642 = vunpack.c.h.b16 %v1257
    %v2643 = vunpack.c.l.b16 %v1258
    %v2644 = vunpack.c.h.b16 %v1258
    %v2645 = vunpack.c.l.b16 %v1259
    %v2646 = vunpack.c.h.b16 %v1259
    %v2647 = vunpack.c.l.b16 %v1260
    %v2648 = vunpack.c.h.b16 %v1260
    %v2649 = vunpack.c.l.b16 %v1261
    %v2650 = vunpack.c.h.b16 %v1261
    %v2651 = vunpack.c.l.b16 %v1262
    %v2652 = vunpack.c.h.b16 %v1262
    %v2653 = vunpack.c.l.b16 %v1263
    %v2654 = vunpack.c.h.b16 %v1263
    %v2655 = vunpack.c.l.b16 %v1264
    %v2656 = vunpack.c.h.b16 %v1264
    %v2657 = vunpack.c.l.b16 %v1265
    %v2658 = vunpack.c.h.b16 %v1265
    %v2659 = vunpack.c.l.b16 %v1266
    %v2660 = vunpack.c.h.b16 %v1266
    %v2661 = vunpack.c.l.b16 %v1267
    %v2662 = vunpack.c.h.b16 %v1267
    %v2663 = vunpack.c.l.b16 %v1268
    %v2664 = vunpack.c.h.b16 %v1268
    %v2665 = vunpack.c.l.b16 %v1269
    %v2666 = vunpack.c.h.b16 %v1269
    %v2667 = vunpack.c.l.b16 %v1270
    %v2668 = vunpack.c.h.b16 %v1270
    %v2669 = vunpack.c.l.b16 %v1271
    %v2670 = vunpack.c.h.b16 %v1271
    %v2671 = vunpack.c.l.b16 %v1272
    %v2672 = vunpack.c.h.b16 %v1272
    %v2673 = vunpack.c.l.b16 %v1273
    %v2674 = vunpack.c.h.b16 %v1273
    %v2675 = vunpack.c.l.b16 %v1274
    %v2676 = vunpack.c.h.b16 %v1274
    %v2677 = vunpack.c.l.b16 %v1275
    %v2678 = vunpack.c.h.b16 %v1275
    %v2679 = vunpack.c.l.b16 %v1276
    %v2680 = vunpack.c.h.b16 %v1276
    %v2681 = vunpack.c.l.b16 %v1277
    %v2682 = vunpack.c.h.b16 %v1277
    %v2683 = vunpack.c.l.b16 %v1278
    %v2684 = vunpack.c.h.b16 %v1278
    %v2685 = vunpack.c.l.b16 %v1279
    %v2686 = vunpack.c.h.b16 %v1279
    %v2687 = vunpack.c.l.b16 %v1280
    %v2688 = vunpack.c.h.b16 %v1280
    %v2689 = vunpack.c.l.b16 %v1281
    %v2690 = vunpack.c.h.b16 %v1281
    %v2691 = vunpack.c.l.b16 %v1282
    %v2692 = vunpack.c.h.b16 %v1282
    %v2693 = vunpack.c.l.b16 %v1283
    %v2694 = vunpack.c.h.b16 %v1283
    %v2695 = vunpack.c.l.b16 %v1284
    %v2696 = vunpack.c.h.b16 %v1284
    %v2697 = vunpack.c.l.b16 %v1285
    %v2698 = vunpack.c.h.b16 %v1285
    %v2699 = vunpack.c.l.b16 %v1286
    %v2700 = vunpack.c.h.b16 %v1286
    %v2701 = vunpack.c.l.b16 %v1287
    %v2702 = vunpack.c.h.b16 %v1287
    %v2703 = vunpack.c.l.b16 %v1288
    %v2704 = vunpack.c.h.b16 %v1288
    %v2705 = vunpack.c.l.b16 %v1289
    %v2706 = vunpack.c.h.b16 %v1289
    %v2707 = vunpack.c.l.b16 %v1290
    %v2708 = vunpack.c.h.b16 %v1290
    %v2709 = vunpack.c.l.b16 %v1291
    %v2710 = vunpack.c.h.b16 %v1291
    %v2711 = vunpack.c.l.b16 %v1292
    %v2712 = vunpack.c.h.b16 %v1292
    %v2713 = vunpack.c.l.b16 %v1293
    %v2714 = vunpack.c.h.b16 %v1293
    %v2715 = vunpack.c.l.b16 %v1294
    %v2716 = vunpack.c.h.b16 %v1294
    %v2717 = vunpack.c.l.b16 %v1295
    %v2718 = vunpack.c.h.b16 %v1295
    %v2719 = vunpack.c.l.b16 %v1296
    %v2720 = vunpack.c.h.b16 %v1296
    %v2721 = vunpack.c.l.b16 %v1297
    %v2722 = vunpack.c.h.b16 %v1297
    %v2723 = vunpack.c.l.b16 %v1298
    %v2724 = vunpack.c.h.b16 %v1298
    %v2725 = vunpack.c.l.b16 %v1299
    %v2726 = vunpack.c.h.b16 %v1299
    %v2727 = vunpack.c.l.b16 %v1300
    %v2728 = vunpack.c.h.b16 %v1300
    %v2729 = vunpack.c.l.b16 %v1301
    %v2730 = vunpack.c.h.b16 %v1301
    %v2731 = vunpack.c.l.b16 %v1302
    %v2732 = vunpack.c.h.b16 %v1302
    %v2733 = vunpack.c.l.b16 %v1303
    %v2734 = vunpack.c.h.b16 %v1303
    %v2735 = vunpack.c.l.b16 %v1304
    %v2736 = vunpack.c.h.b16 %v1304
    %v2737 = vunpack.c.l.b16 %v1305
    %v2738 = vunpack.c.h.b16 %v1305
    %v2739 = vunpack.c.l.b16 %v1306
    %v2740 = vunpack.c.h.b16 %v1306
    %v2741 = vunpack.c.l.b16 %v1307
    %v2742 = vunpack.c.h.b16 %v1307
    %v2743 = vunpack.c.l.b16 %v1308
    %v2744 = vunpack.c.h.b16 %v1308
    %v2745 = vunpack.c.l.b16 %v1309
    %v2746 = vunpack.c.h.b16 %v1309
    %v2747 = vunpack.c.l.b16 %v1310
    %v2748 = vunpack.c.h.b16 %v1310
    %v2749 = vunpack.c.l.b16 %v1311
    %v2750 = vunpack.c.h.b16 %v1311
    %v2751 = vunpack.c.l.b16 %v1312
    %v2752 = vunpack.c.h.b16 %v1312
    %v2753 = vunpack.c.l.b16 %v1313
    %v2754 = vunpack.c.h.b16 %v1313
    %v2755 = vunpack.c.l.b16 %v1314
    %v2756 = vunpack.c.h.b16 %v1314
    %v2757 = vunpack.c.l.b16 %v1315
    %v2758 = vunpack.c.h.b16 %v1315
    %v2759 = vunpack.c.l.b16 %v1316
    %v2760 = vunpack.c.h.b16 %v1316
    %v2761 = vunpack.c.l.b16 %v1317
    %v2762 = vunpack.c.h.b16 %v1317
    %v2763 = vunpack.c.l.b16 %v1318
    %v2764 = vunpack.c.h.b16 %v1318
    %v2765 = vunpack.c.l.b16 %v1319
    %v2766 = vunpack.c.h.b16 %v1319
    %v2767 = vunpack.c.l.b16 %v1320
    %v2768 = vunpack.c.h.b16 %v1320
    %v2769 = vunpack.c.l.b16 %v1321
    %v2770 = vunpack.c.h.b16 %v1321
    %v2771 = vunpack.c.l.b16 %v1322
    %v2772 = vunpack.c.h.b16 %v1322
    %v2773 = vunpack.c.l.b16 %v1323
    %v2774 = vunpack.c.h.b16 %v1323
    %v2775 = vunpack.c.l.b16 %v1324
    %v2776 = vunpack.c.h.b16 %v1324
    %v2777 = vunpack.c.l.b16 %v1325
    %v2778 = vunpack.c.h.b16 %v1325
    %v2779 = vunpack.c.l.b16 %v1326
    %v2780 = vunpack.c.h.b16 %v1326
    %v2781 = vunpack.c.l.b16 %v1327
    %v2782 = vunpack.c.h.b16 %v1327
    %v2783 = vunpack.c.l.b16 %v1328
    %v2784 = vunpack.c.h.b16 %v1328
    %v2785 = vunpack.c.l.b16 %v1329
    %v2786 = vunpack.c.h.b16 %v1329
    %v2787 = vunpack.c.l.b16 %v1330
    %v2788 = vunpack.c.h.b16 %v1330
    %v2789 = vunpack.c.l.b16 %v1331
    %v2790 = vunpack.c.h.b16 %v1331
    %v2791 = vunpack.c.l.b16 %v1332
    %v2792 = vunpack.c.h.b16 %v1332
    %v2793 = vunpack.c.l.b16 %v1333
    %v2794 = vunpack.c.h.b16 %v1333
    %v2795 = vunpack.c.l.b16 %v1334
    %v2796 = vunpack.c.h.b16 %v1334
    %v2797 = vunpack.c.l.b16 %v1335
    %v2798 = vunpack.c.h.b16 %v1335
    %v2799 = vunpack.c.l.b16 %v1336
    %v2800 = vunpack.c.h.b16 %v1336
    %v2801 = vunpack.c.l.b16 %v1337
    %v2802 = vunpack.c.h.b16 %v1337
    %v2803 = vunpack.c.l.b16 %v1338
    %v2804 = vunpack.c.h.b16 %v1338
    %v2805 = vunpack.c.l.b16 %v1339
    %v2806 = vunpack.c.h.b16 %v1339
    %v2807 = vunpack.c.l.b16 %v1340
    %v2808 = vunpack.c.h.b16 %v1340
    %v2809 = vunpack.c.l.b16 %v1341
    %v2810 = vunpack.c.h.b16 %v1341
    %v2811 = vunpack.c.l.b16 %v1342
    %v2812 = vunpack.c.h.b16 %v1342
    %v2813 = vunpack.c.l.b16 %v1343
    %v2814 = vunpack.c.h.b16 %v1343
    %v2815 = vunpack.c.l.b16 %v1344
    %v2816 = vunpack.c.h.b16 %v1344
    %v2817 = vunpack.c.l.b16 %v1345
    %v2818 = vunpack.c.h.b16 %v1345
    %v2819 = vunpack.c.l.b16 %v1346
    %v2820 = vunpack.c.h.b16 %v1346
    %v2821 = vunpack.c.l.b16 %v1347
    %v2822 = vunpack.c.h.b16 %v1347
    %v2823 = vunpack.c.l.b16 %v1348
    %v2824 = vunpack.c.h.b16 %v1348
    %v2825 = vunpack.c.l.b16 %v1349
    %v2826 = vunpack.c.h.b16 %v1349
    %v2827 = vunpack.c.l.b16 %v1350
    %v2828 = vunpack.c.h.b16 %v1350
    %v2829 = vunpack.c.l.b16 %v1351
    %v2830 = vunpack.c.h.b16 %v1351
    %v2831 = vunpack.c.l.b16 %v1352
    %v2832 = vunpack.c.h.b16 %v1352
    %v2833 = vunpack.c.l.b16 %v1353
    %v2834 = vunpack.c.h.b16 %v1353
    %v2835 = vunpack.c.l.b16 %v1354
    %v2836 = vunpack.c.h.b16 %v1354
    %v2837 = vunpack.c.l.b16 %v1355
    %v2838 = vunpack.c.h.b16 %v1355
    %v2839 = vunpack.c.l.b16 %v1356
    %v2840 = vunpack.c.h.b16 %v1356
    %v2841 = vunpack.c.l.b16 %v1357
    %v2842 = vunpack.c.h.b16 %v1357
    %v2843 = vunpack.c.l.b16 %v1358
    %v2844 = vunpack.c.h.b16 %v1358
    %v2845 = vunpack.c.l.b16 %v1359
    %v2846 = vunpack.c.h.b16 %v1359
    %v2847 = vunpack.c.l.b16 %v1360
    %v2848 = vunpack.c.h.b16 %v1360
    %v2849 = vunpack.c.l.b16 %v1361
    %v2850 = vunpack.c.h.b16 %v1361
    %v2851 = vunpack.c.l.b16 %v1362
    %v2852 = vunpack.c.h.b16 %v1362
    %v2853 = vunpack.c.l.b16 %v1363
    %v2854 = vunpack.c.h.b16 %v1363
    %v2855 = vunpack.c.l.b16 %v1364
    %v2856 = vunpack.c.h.b16 %v1364
    %v2857 = vunpack.c.l.b16 %v1365
    %v2858 = vunpack.c.h.b16 %v1365
    %v2859 = vunpack.c.l.b16 %v1366
    %v2860 = vunpack.c.h.b16 %v1366
    %v2861 = vunpack.c.l.b16 %v1367
    %v2862 = vunpack.c.h.b16 %v1367
    %v2863 = vunpack.c.l.b16 %v1368
    %v2864 = vunpack.c.h.b16 %v1368
    %v2865 = vunpack.c.l.b16 %v1369
    %v2866 = vunpack.c.h.b16 %v1369
    %v2867 = vunpack.c.l.b16 %v1370
    %v2868 = vunpack.c.h.b16 %v1370
    %v2869 = vunpack.c.l.b16 %v1371
    %v2870 = vunpack.c.h.b16 %v1371
    %v2871 = vunpack.c.l.b16 %v1372
    %v2872 = vunpack.c.h.b16 %v1372
    %v2873 = vunpack.c.l.b16 %v1373
    %v2874 = vunpack.c.h.b16 %v1373
    %v2875 = vunpack.c.l.b16 %v1374
    %v2876 = vunpack.c.h.b16 %v1374
    %v2877 = vunpack.c.l.b16 %v1375
    %v2878 = vunpack.c.h.b16 %v1375
    %v2879 = vunpack.c.l.b16 %v1376
    %v2880 = vunpack.c.h.b16 %v1376
    %v2881 = vunpack.c.l.b16 %v1377
    %v2882 = vunpack.c.h.b16 %v1377
    %v2883 = vunpack.c.l.b16 %v1378
    %v2884 = vunpack.c.h.b16 %v1378
    %v2885 = vunpack.c.l.b16 %v1379
    %v2886 = vunpack.c.h.b16 %v1379
    %v2887 = vunpack.c.l.b16 %v1380
    %v2888 = vunpack.c.h.b16 %v1380
    %v2889 = vunpack.c.l.b16 %v1381
    %v2890 = vunpack.c.h.b16 %v1381
    %v2891 = vunpack.c.l.b16 %v1382
    %v2892 = vunpack.c.h.b16 %v1382
    %v2893 = vunpack.c.l.b16 %v1383
    %v2894 = vunpack.c.h.b16 %v1383
    %v2895 = vunpack.c.l.b16 %v1384
    %v2896 = vunpack.c.h.b16 %v1384
    %v2897 = vunpack.c.l.b16 %v1385
    %v2898 = vunpack.c.h.b16 %v1385
    %v2899 = vunpack.c.l.b16 %v1386
    %v2900 = vunpack.c.h.b16 %v1386
    %v2901 = vunpack.c.l.b16 %v1387
    %v2902 = vunpack.c.h.b16 %v1387
    %v2903 = vunpack.c.l.b16 %v1388
    %v2904 = vunpack.c.h.b16 %v1388
    %v2905 = vunpack.c.l.b16 %v1389
    %v2906 = vunpack.c.h.b16 %v1389
    %v2907 = vunpack.c.l.b16 %v1390
    %v2908 = vunpack.c.h.b16 %v1390
    %v2909 = vunpack.c.l.b16 %v1391
    %v2910 = vunpack.c.h.b16 %v1391
    %v2911 = vunpack.c.l.b16 %v1392
    %v2912 = vunpack.c.h.b16 %v1392
    %v2913 = vunpack.c.l.b16 %v1393
    %v2914 = vunpack.c.h.b16 %v1393
    %v2915 = vunpack.c.l.b16 %v1394
    %v2916 = vunpack.c.h.b16 %v1394
    %v2917 = vunpack.c.l.b16 %v1395
    %v2918 = vunpack.c.h.b16 %v1395
    %v2919 = vunpack.c.l.b16 %v1396
    %v2920 = vunpack.c.h.b16 %v1396
    %v2921 = vunpack.c.l.b16 %v1397
    %v2922 = vunpack.c.h.b16 %v1397
    %v2923 = vunpack.c.l.b16 %v1398
    %v2924 = vunpack.c.h.b16 %v1398
    %v2925 = vunpack.c.l.b16 %v1399
    %v2926 = vunpack.c.h.b16 %v1399
    %v2927 = vunpack.c.l.b16 %v1400
    %v2928 = vunpack.c.h.b16 %v1400
    %v2929 = vunpack.c.l.b16 %v1401
    %v2930 = vunpack.c.h.b16 %v1401
    %v2931 = vunpack.c.l.b16 %v1402
    %v2932 = vunpack.c.h.b16 %v1402
    %v2933 = vunpack.c.l.b16 %v1403
    %v2934 = vunpack.c.h.b16 %v1403
    %v2935 = vunpack.c.l.b16 %v1404
    %v2936 = vunpack.c.h.b16 %v1404
    %v2937 = vunpack.c.l.b16 %v1405
    %v2938 = vunpack.c.h.b16 %v1405
    %v2939 = vunpack.c.l.b16 %v1406
    %v2940 = vunpack.c.h.b16 %v1406
    %v2941 = vunpack.c.l.b16 %v1407
    %v2942 = vunpack.c.h.b16 %v1407
    %v2943 = vunpack.c.l.b16 %v1408
    %v2944 = vunpack.c.h.b16 %v1408
    %v2945 = vunpack.c.l.b16 %v1409
    %v2946 = vunpack.c.h.b16 %v1409
    %v2947 = vunpack.c.l.b16 %v1410
    %v2948 = vunpack.c.h.b16 %v1410
    %v2949 = vunpack.c.l.b16 %v1411
    %v2950 = vunpack.c.h.b16 %v1411
    %v2951 = vunpack.c.l.b16 %v1412
    %v2952 = vunpack.c.h.b16 %v1412
    %v2953 = vunpack.c.l.b16 %v1413
    %v2954 = vunpack.c.h.b16 %v1413
    %v2955 = vunpack.c.l.b16 %v1414
    %v2956 = vunpack.c.h.b16 %v1414
    %v2957 = vunpack.c.l.b16 %v1415
    %v2958 = vunpack.c.h.b16 %v1415
    %v2959 = vunpack.c.l.b16 %v1416
    %v2960 = vunpack.c.h.b16 %v1416
    %v2961 = vunpack.c.l.b16 %v1417
    %v2962 = vunpack.c.h.b16 %v1417
    %v2963 = vunpack.c.l.b16 %v1418
    %v2964 = vunpack.c.h.b16 %v1418
    %v2965 = vunpack.c.l.b16 %v1419
    %v2966 = vunpack.c.h.b16 %v1419
    %v2967 = vunpack.c.l.b16 %v1420
    %v2968 = vunpack.c.h.b16 %v1420
    %v2969 = vunpack.c.l.b16 %v1421
    %v2970 = vunpack.c.h.b16 %v1421
    %v2971 = vunpack.c.l.b16 %v1422
    %v2972 = vunpack.c.h.b16 %v1422
    %v2973 = vunpack.c.l.b16 %v1423
    %v2974 = vunpack.c.h.b16 %v1423
    %v2975 = vunpack.c.l.b16 %v1424
    %v2976 = vunpack.c.h.b16 %v1424
    %v2977 = vunpack.c.l.b16 %v1425
    %v2978 = vunpack.c.h.b16 %v1425
    %v2979 = vunpack.c.l.b16 %v1426
    %v2980 = vunpack.c.h.b16 %v1426
    %v2981 = vunpack.c.l.b16 %v1427
    %v2982 = vunpack.c.h.b16 %v1427
    %v2983 = vunpack.c.l.b16 %v1428
    %v2984 = vunpack.c.h.b16 %v1428
    %v2985 = vunpack.c.l.b16 %v1429
    %v2986 = vunpack.c.h.b16 %v1429
    %v2987 = vunpack.c.l.b16 %v1430
    %v2988 = vunpack.c.h.b16 %v1430
    %v2989 = vunpack.c.l.b16 %v1431
    %v2990 = vunpack.c.h.b16 %v1431
    %v2991 = vunpack.c.l.b16 %v1432
    %v2992 = vunpack.c.h.b16 %v1432
    %v2993 = vunpack.c.l.b16 %v1433
    %v2994 = vunpack.c.h.b16 %v1433
    %v2995 = vunpack.c.l.b16 %v1434
    %v2996 = vunpack.c.h.b16 %v1434
    %v2997 = vunpack.c.l.b16 %v1435
    %v2998 = vunpack.c.h.b16 %v1435
    %v2999 = vunpack.c.l.b16 %v1436
    %v3000 = vunpack.c.h.b16 %v1436
    %v3001 = vunpack.c.l.b16 %v1437
    %v3002 = vunpack.c.h.b16 %v1437
    %v3003 = vunpack.c.l.b16 %v1438
    %v3004 = vunpack.c.h.b16 %v1438
    %v3005 = vunpack.c.l.b16 %v1439
    %v3006 = vunpack.c.h.b16 %v1439
    %v3007 = vunpack.c.l.b16 %v1440
    %v3008 = vunpack.c.h.b16 %v1440
    %v3009 = vunpack.c.l.b16 %v1441
    %v3010 = vunpack.c.h.b16 %v1441
    %v3011 = vunpack.c.l.b16 %v1442
    %v3012 = vunpack.c.h.b16 %v1442
    %v3013 = vunpack.c.l.b16 %v1443
    %v3014 = vunpack.c.h.b16 %v1443
    %v3015 = vunpack.c.l.b16 %v1444
    %v3016 = vunpack.c.h.b16 %v1444
    %v3017 = vpack.c.b16 %v2009, %v1993
    %v3018 = vpack.c.b16 %v2010, %v1994
    %v3019 = vpack.c.b16 %v2011, %v1995
    %v3020 = vpack.c.b16 %v2012, %v1996
    %v3021 = vpack.c.b16 %v2013, %v1997
    %v3022 = vpack.c.b16 %v2014, %v1998
    %v3023 = vpack.c.b16 %v2015, %v1999
    %v3024 = vpack.c.b16 %v2016, %v2000
    %v3025 = vpack.c.b16 %v2017, %v2001
    %v3026 = vpack.c.b16 %v2018, %v2002
    %v3027 = vpack.c.b16 %v2019, %v2003
    %v3028 = vpack.c.b16 %v2020, %v2004
    %v3029 = vpack.c.b16 %v2021, %v2005
    %v3030 = vpack.c.b16 %v2022, %v2006
    %v3031 = vpack.c.b16 %v2023, %v2007
    %v3032 = vpack.c.b16 %v2024, %v2008
    %v3033 = vpack.c.b16 %v2041, %v2025
    %v3034 = vpack.c.b16 %v2042, %v2026
    %v3035 = vpack.c.b16 %v2043, %v2027
    %v3036 = vpack.c.b16 %v2044, %v2028
    %v3037 = vpack.c.b16 %v2045, %v2029
    %v3038 = vpack.c.b16 %v2046, %v2030
    %v3039 = vpack.c.b16 %v2047, %v2031
    %v3040 = vpack.c.b16 %v2048, %v2032
    %v3041 = vpack.c.b16 %v2049, %v2033
    %v3042 = vpack.c.b16 %v2050, %v2034
    %v3043 = vpack.c.b16 %v2051, %v2035
    %v3044 = vpack.c.b16 %v2052, %v2036
    %v3045 = vpack.c.b16 %v2053, %v2037
    %v3046 = vpack.c.b16 %v2054, %v2038
    %v3047 = vpack.c.b16 %v2055, %v2039
    %v3048 = vpack.c.b16 %v2056, %v2040
    %v3049 = vpack.c.b16 %v2073, %v2057
    %v3050 = vpack.c.b16 %v2074, %v2058
    %v3051 = vpack.c.b16 %v2075, %v2059
    %v3052 = vpack.c.b16 %v2076, %v2060
    %v3053 = vpack.c.b16 %v2077, %v2061
    %v3054 = vpack.c.b16 %v2078, %v2062
    %v3055 = vpack.c.b16 %v2079, %v2063
    %v3056 = vpack.c.b16 %v2080, %v2064
    %v3057 = vpack.c.b16 %v2081, %v2065
    %v3058 = vpack.c.b16 %v2082, %v2066
    %v3059 = vpack.c.b16 %v2083, %v2067
    %v3060 = vpack.c.b16 %v2084, %v2068
    %v3061 = vpack.c.b16 %v2085, %v2069
    %v3062 = vpack.c.b16 %v2086, %v2070
    %v3063 = vpack.c.b16 %v2087, %v2071
    %v3064 = vpack.c.b16 %v2088, %v2072
    %v3065 = vpack.c.b16 %v2105, %v2089
    %v3066 = vpack.c.b16 %v2106, %v2090
    %v3067 = vpack.c.b16 %v2107, %v2091
    %v3068 = vpack.c.b16 %v2108, %v2092
    %v3069 = vpack.c.b16 %v2109, %v2093
    %v3070 = vpack.c.b16 %v2110, %v2094
    %v3071 = vpack.c.b16 %v2111, %v2095
    %v3072 = vpack.c.b16 %v2112, %v2096
    %v3073 = vpack.c.b16 %v2113, %v2097
    %v3074 = vpack.c.b16 %v2114, %v2098
    %v3075 = vpack.c.b16 %v2115, %v2099
    %v3076 = vpack.c.b16 %v2116, %v2100
    %v3077 = vpack.c.b16 %v2117, %v2101
    %v3078 = vpack.c.b16 %v2118, %v2102
    %v3079 = vpack.c.b16 %v2119, %v2103
    %v3080 = vpack.c.b16 %v2120, %v2104
    %v3081 = vpack.c.b16 %v2137, %v2121
    %v3082 = vpack.c.b16 %v2138, %v2122
    %v3083 = vpack.c.b16 %v2139, %v2123
    %v3084 = vpack.c.b16 %v2140, %v2124
    %v3085 = vpack.c.b16 %v2141, %v2125
    %v3086 = vpack.c.b16 %v2142, %v2126
    %v3087 = vpack.c.b16 %v2143, %v2127
    %v3088 = vpack.c.b16 %v2144, %v2128
    %v3089 = vpack.c.b16 %v2145, %v2129
    %v3090 = vpack.c.b16 %v2146, %v2130
    %v3091 = vpack.c.b16 %v2147, %v2131
    %v3092 = vpack.c.b16 %v2148, %v2132
    %v3093 = vpack.c.b16 %v2149, %v2133
    %v3094 = vpack.c.b16 %v2150, %v2134
    %v3095 = vpack.c.b16 %v2151, %v2135
    %v3096 = vpack.c.b16 %v2152, %v2136
    %v3097 = vpack.c.b16 %v2169, %v2153
    %v3098 = vpack.c.b16 %v2170, %v2154
    %v3099 = vpack.c.b16 %v2171, %v2155
    %v3100 = vpack.c.b16 %v2172, %v2156
    %v3101 = vpack.c.b16 %v2173, %v2157
    %v3102 = vpack.c.b16 %v2174, %v2158
    %v3103 = vpack.c.b16 %v2175, %v2159
    %v3104 = vpack.c.b16 %v2176, %v2160
    %v3105 = vpack.c.b16 %v2177, %v2161
    %v3106 = vpack.c.b16 %v2178, %v2162
    %v3107 = vpack.c.b16 %v2179, %v2163
    %v3108 = vpack.c.b16 %v2180, %v2164
    %v3109 = vpack.c.b16 %v2181, %v2165
    %v3110 = vpack.c.b16 %v2182, %v2166
    %v3111 = vpack.c.b16 %v2183, %v2167
    %v3112 = vpack.c.b16 %v2184, %v2168
    %v3113 = vpack.c.b16 %v2201, %v2185
    %v3114 = vpack.c.b16 %v2202, %v2186
    %v3115 = vpack.c.b16 %v2203, %v2187
    %v3116 = vpack.c.b16 %v2204, %v2188
    %v3117 = vpack.c.b16 %v2205, %v2189
    %v3118 = vpack.c.b16 %v2206, %v2190
    %v3119 = vpack.c.b16 %v2207, %v2191
    %v3120 = vpack.c.b16 %v2208, %v2192
    %v3121 = vpack.c.b16 %v2209, %v2193
    %v3122 = vpack.c.b16 %v2210, %v2194
    %v3123 = vpack.c.b16 %v2211, %v2195
    %v3124 = vpack.c.b16 %v2212, %v2196
    %v3125 = vpack.c.b16 %v2213, %v2197
    %v3126 = vpack.c.b16 %v2214, %v2198
    %v3127 = vpack.c.b16 %v2215, %v2199
    %v3128 = vpack.c.b16 %v2216, %v2200
    %v3129 = vpack.c.b16 %v2233, %v2217
    %v3130 = vpack.c.b16 %v2234, %v2218
    %v3131 = vpack.c.b16 %v2235, %v2219
    %v3132 = vpack.c.b16 %v2236, %v2220
    %v3133 = vpack.c.b16 %v2237, %v2221
    %v3134 = vpack.c.b16 %v2238, %v2222
    %v3135 = vpack.c.b16 %v2239, %v2223
    %v3136 = vpack.c.b16 %v2240, %v2224
    %v3137 = vpack.c.b16 %v2241, %v2225
    %v3138 = vpack.c.b16 %v2242, %v2226
    %v3139 = vpack.c.b16 %v2243, %v2227
    %v3140 = vpack.c.b16 %v2244, %v2228
    %v3141 = vpack.c.b16 %v2245, %v2229
    %v3142 = vpack.c.b16 %v2246, %v2230
    %v3143 = vpack.c.b16 %v2247, %v2231
    %v3144 = vpack.c.b16 %v2248, %v2232
    %v3145 = vpack.c.b16 %v2265, %v2249
    %v3146 = vpack.c.b16 %v2266, %v2250
    %v3147 = vpack.c.b16 %v2267, %v2251
    %v3148 = vpack.c.b16 %v2268, %v2252
    %v3149 = vpack.c.b16 %v2269, %v2253
    %v3150 = vpack.c.b16 %v2270, %v2254
    %v3151 = vpack.c.b16 %v2271, %v2255
    %v3152 = vpack.c.b16 %v2272, %v2256
    %v3153 = vpack.c.b16 %v2273, %v2257
    %v3154 = vpack.c.b16 %v2274, %v2258
    %v3155 = vpack.c.b16 %v2275, %v2259
    %v3156 = vpack.c.b16 %v2276, %v2260
    %v3157 = vpack.c.b16 %v2277, %v2261
    %v3158 = vpack.c.b16 %v2278, %v2262
    %v3159 = vpack.c.b16 %v2279, %v2263
    %v3160 = vpack.c.b16 %v2280, %v2264
    %v3161 = vpack.c.b16 %v2297, %v2281
    %v3162 = vpack.c.b16 %v2298, %v2282
    %v3163 = vpack.c.b16 %v2299, %v2283
    %v3164 = vpack.c.b16 %v2300, %v2284
    %v3165 = vpack.c.b16 %v2301, %v2285
    %v3166 = vpack.c.b16 %v2302, %v2286
    %v3167 = vpack.c.b16 %v2303, %v2287
    %v3168 = vpack.c.b16 %v2304, %v2288
    %v3169 = vpack.c.b16 %v2305, %v2289
    %v3170 = vpack.c.b16 %v2306, %v2290
    %v3171 = vpack.c.b16 %v2307, %v2291
    %v3172 = vpack.c.b16 %v2308, %v2292
    %v3173 = vpack.c.b16 %v2309, %v2293
    %v3174 = vpack.c.b16 %v2310, %v2294
    %v3175 = vpack.c.b16 %v2311, %v2295
    %v3176 = vpack.c.b16 %v2312, %v2296
    %v3177 = vpack.c.b16 %v2329, %v2313
    %v3178 = vpack.c.b16 %v2330, %v2314
    %v3179 = vpack.c.b16 %v2331, %v2315
    %v3180 = vpack.c.b16 %v2332, %v2316
    %v3181 = vpack.c.b16 %v2333, %v2317
    %v3182 = vpack.c.b16 %v2334, %v2318
    %v3183 = vpack.c.b16 %v2335, %v2319
    %v3184 = vpack.c.b16 %v2336, %v2320
    %v3185 = vpack.c.b16 %v2337, %v2321
    %v3186 = vpack.c.b16 %v2338, %v2322
    %v3187 = vpack.c.b16 %v2339, %v2323
    %v3188 = vpack.c.b16 %v2340, %v2324
    %v3189 = vpack.c.b16 %v2341, %v2325
    %v3190 = vpack.c.b16 %v2342, %v2326
    %v3191 = vpack.c.b16 %v2343, %v2327
    %v3192 = vpack.c.b16 %v2344, %v2328
    %v3193 = vpack.c.b16 %v2361, %v2345
    %v3194 = vpack.c.b16 %v2362, %v2346
    %v3195 = vpack.c.b16 %v2363, %v2347
    %v3196 = vpack.c.b16 %v2364, %v2348
    %v3197 = vpack.c.b16 %v2365, %v2349
    %v3198 = vpack.c.b16 %v2366, %v2350
    %v3199 = vpack.c.b16 %v2367, %v2351
    %v3200 = vpack.c.b16 %v2368, %v2352
    %v3201 = vpack.c.b16 %v2369, %v2353
    %v3202 = vpack.c.b16 %v2370, %v2354
    %v3203 = vpack.c.b16 %v2371, %v2355
    %v3204 = vpack.c.b16 %v2372, %v2356
    %v3205 = vpack.c.b16 %v2373, %v2357
    %v3206 = vpack.c.b16 %v2374, %v2358
    %v3207 = vpack.c.b16 %v2375, %v2359
    %v3208 = vpack.c.b16 %v2376, %v2360
    %v3209 = vpack.c.b16 %v2393, %v2377
    %v3210 = vpack.c.b16 %v2394, %v2378
    %v3211 = vpack.c.b16 %v2395, %v2379
    %v3212 = vpack.c.b16 %v2396, %v2380
    %v3213 = vpack.c.b16 %v2397, %v2381
    %v3214 = vpack.c.b16 %v2398, %v2382
    %v3215 = vpack.c.b16 %v2399, %v2383
    %v3216 = vpack.c.b16 %v2400, %v2384
    %v3217 = vpack.c.b16 %v2401, %v2385
    %v3218 = vpack.c.b16 %v2402, %v2386
    %v3219 = vpack.c.b16 %v2403, %v2387
    %v3220 = vpack.c.b16 %v2404, %v2388
    %v3221 = vpack.c.b16 %v2405, %v2389
    %v3222 = vpack.c.b16 %v2406, %v2390
    %v3223 = vpack.c.b16 %v2407, %v2391
    %v3224 = vpack.c.b16 %v2408, %v2392
    %v3225 = vpack.c.b16 %v2425, %v2409
    %v3226 = vpack.c.b16 %v2426, %v2410
    %v3227 = vpack.c.b16 %v2427, %v2411
    %v3228 = vpack.c.b16 %v2428, %v2412
    %v3229 = vpack.c.b16 %v2429, %v2413
    %v3230 = vpack.c.b16 %v2430, %v2414
    %v3231 = vpack.c.b16 %v2431, %v2415
    %v3232 = vpack.c.b16 %v2432, %v2416
    %v3233 = vpack.c.b16 %v2433, %v2417
    %v3234 = vpack.c.b16 %v2434, %v2418
    %v3235 = vpack.c.b16 %v2435, %v2419
    %v3236 = vpack.c.b16 %v2436, %v2420
    %v3237 = vpack.c.b16 %v2437, %v2421
    %v3238 = vpack.c.b16 %v2438, %v2422
    %v3239 = vpack.c.b16 %v2439, %v2423
    %v3240 = vpack.c.b16 %v2440, %v2424
    %v3241 = vpack.c.b16 %v2457, %v2441
    %v3242 = vpack.c.b16 %v2458, %v2442
    %v3243 = vpack.c.b16 %v2459, %v2443
    %v3244 = vpack.c.b16 %v2460, %v2444
    %v3245 = vpack.c.b16 %v2461, %v2445
    %v3246 = vpack.c.b16 %v2462, %v2446
    %v3247 = vpack.c.b16 %v2463, %v2447
    %v3248 = vpack.c.b16 %v2464, %v2448
    %v3249 = vpack.c.b16 %v2465, %v2449
    %v3250 = vpack.c.b16 %v2466, %v2450
    %v3251 = vpack.c.b16 %v2467, %v2451
    %v3252 = vpack.c.b16 %v2468, %v2452
    %v3253 = vpack.c.b16 %v2469, %v2453
    %v3254 = vpack.c.b16 %v2470, %v2454
    %v3255 = vpack.c.b16 %v2471, %v2455
    %v3256 = vpack.c.b16 %v2472, %v2456
    %v3257 = vpack.c.b16 %v2489, %v2473
    %v3258 = vpack.c.b16 %v2490, %v2474
    %v3259 = vpack.c.b16 %v2491, %v2475
    %v3260 = vpack.c.b16 %v2492, %v2476
    %v3261 = vpack.c.b16 %v2493, %v2477
    %v3262 = vpack.c.b16 %v2494, %v2478
    %v3263 = vpack.c.b16 %v2495, %v2479
    %v3264 = vpack.c.b16 %v2496, %v2480
    %v3265 = vpack.c.b16 %v2497, %v2481
    %v3266 = vpack.c.b16 %v2498, %v2482
    %v3267 = vpack.c.b16 %v2499, %v2483
    %v3268 = vpack.c.b16 %v2500, %v2484
    %v3269 = vpack.c.b16 %v2501, %v2485
    %v3270 = vpack.c.b16 %v2502, %v2486
    %v3271 = vpack.c.b16 %v2503, %v2487
    %v3272 = vpack.c.b16 %v2504, %v2488
    %v3273 = vpack.c.b16 %v2521, %v2505
    %v3274 = vpack.c.b16 %v2522, %v2506
    %v3275 = vpack.c.b16 %v2523, %v2507
    %v3276 = vpack.c.b16 %v2524, %v2508
    %v3277 = vpack.c.b16 %v2525, %v2509
    %v3278 = vpack.c.b16 %v2526, %v2510
    %v3279 = vpack.c.b16 %v2527, %v2511
    %v3280 = vpack.c.b16 %v2528, %v2512
    %v3281 = vpack.c.b16 %v2529, %v2513
    %v3282 = vpack.c.b16 %v2530, %v2514
    %v3283 = vpack.c.b16 %v2531, %v2515
    %v3284 = vpack.c.b16 %v2532, %v2516
    %v3285 = vpack.c.b16 %v2533, %v2517
    %v3286 = vpack.c.b16 %v2534, %v2518
    %v3287 = vpack.c.b16 %v2535, %v2519
    %v3288 = vpack.c.b16 %v2536, %v2520
    %v3289 = vpack.c.b16 %v2553, %v2537
    %v3290 = vpack.c.b16 %v2554, %v2538
    %v3291 = vpack.c.b16 %v2555, %v2539
    %v3292 = vpack.c.b16 %v2556, %v2540
    %v3293 = vpack.c.b16 %v2557, %v2541
    %v3294 = vpack.c.b16 %v2558, %v2542
    %v3295 = vpack.c.b16 %v2559, %v2543
    %v3296 = vpack.c.b16 %v2560, %v2544
    %v3297 = vpack.c.b16 %v2561, %v2545
    %v3298 = vpack.c.b16 %v2562, %v2546
    %v3299 = vpack.c.b16 %v2563, %v2547
    %v3300 = vpack.c.b16 %v2564, %v2548
    %v3301 = vpack.c.b16 %v2565, %v2549
    %v3302 = vpack.c.b16 %v2566, %v2550
    %v3303 = vpack.c.b16 %v2567, %v2551
    %v3304 = vpack.c.b16 %v2568, %v2552
    %v3305 = vpack.c.b16 %v2585, %v2569
    %v3306 = vpack.c.b16 %v2586, %v2570
    %v3307 = vpack.c.b16 %v2587, %v2571
    %v3308 = vpack.c.b16 %v2588, %v2572
    %v3309 = vpack.c.b16 %v2589, %v2573
    %v3310 = vpack.c.b16 %v2590, %v2574
    %v3311 = vpack.c.b16 %v2591, %v2575
    %v3312 = vpack.c.b16 %v2592, %v2576
    %v3313 = vpack.c.b16 %v2593, %v2577
    %v3314 = vpack.c.b16 %v2594, %v2578
    %v3315 = vpack.c.b16 %v2595, %v2579
    %v3316 = vpack.c.b16 %v2596, %v2580
    %v3317 = vpack.c.b16 %v2597, %v2581
    %v3318 = vpack.c.b16 %v2598, %v2582
    %v3319 = vpack.c.b16 %v2599, %v2583
    %v3320 = vpack.c.b16 %v2600, %v2584
    %v3321 = vpack.c.b16 %v2617, %v2601
    %v3322 = vpack.c.b16 %v2618, %v2602
    %v3323 = vpack.c.b16 %v2619, %v2603
    %v3324 = vpack.c.b16 %v2620, %v2604
    %v3325 = vpack.c.b16 %v2621, %v2605
    %v3326 = vpack.c.b16 %v2622, %v2606
    %v3327 = vpack.c.b16 %v2623, %v2607
    %v3328 = vpack.c.b16 %v2624, %v2608
    %v3329 = vpack.c.b16 %v2625, %v2609
    %v3330 = vpack.c.b16 %v2626, %v2610
    %v3331 = vpack.c.b16 %v2627, %v2611
    %v3332 = vpack.c.b16 %v2628, %v2612
    %v3333 = vpack.c.b16 %v2629, %v2613
    %v3334 = vpack.c.b16 %v2630, %v2614
    %v3335 = vpack.c.b16 %v2631, %v2615
    %v3336 = vpack.c.b16 %v2632, %v2616
    %v3337 = vpack.c.b16 %v2649, %v2633
    %v3338 = vpack.c.b16 %v2650, %v2634
    %v3339 = vpack.c.b16 %v2651, %v2635
    %v3340 = vpack.c.b16 %v2652, %v2636
    %v3341 = vpack.c.b16 %v2653, %v2637
    %v3342 = vpack.c.b16 %v2654, %v2638
    %v3343 = vpack.c.b16 %v2655, %v2639
    %v3344 = vpack.c.b16 %v2656, %v2640
    %v3345 = vpack.c.b16 %v2657, %v2641
    %v3346 = vpack.c.b16 %v2658, %v2642
    %v3347 = vpack.c.b16 %v2659, %v2643
    %v3348 = vpack.c.b16 %v2660, %v2644
    %v3349 = vpack.c.b16 %v2661, %v2645
    %v3350 = vpack.c.b16 %v2662, %v2646
    %v3351 = vpack.c.b16 %v2663, %v2647
    %v3352 = vpack.c.b16 %v2664, %v2648
    %v3353 = vpack.c.b16 %v2681, %v2665
    %v3354 = vpack.c.b16 %v2682, %v2666
    %v3355 = vpack.c.b16 %v2683, %v2667
    %v3356 = vpack.c.b16 %v2684, %v2668
    %v3357 = vpack.c.b16 %v2685, %v2669
    %v3358 = vpack.c.b16 %v2686, %v2670
    %v3359 = vpack.c.b16 %v2687, %v2671
    %v3360 = vpack.c.b16 %v2688, %v2672
    %v3361 = vpack.c.b16 %v2689, %v2673
    %v3362 = vpack.c.b16 %v2690, %v2674
    %v3363 = vpack.c.b16 %v2691, %v2675
    %v3364 = vpack.c.b16 %v2692, %v2676
    %v3365 = vpack.c.b16 %v2693, %v2677
    %v3366 = vpack.c.b16 %v2694, %v2678
    %v3367 = vpack.c.b16 %v2695, %v2679
    %v3368 = vpack.c.b16 %v2696, %v2680
    %v3369 = vpack.c.b16 %v2713, %v2697
    %v3370 = vpack.c.b16 %v2714, %v2698
    %v3371 = vpack.c.b16 %v2715, %v2699
    %v3372 = vpack.c.b16 %v2716, %v2700
    %v3373 = vpack.c.b16 %v2717, %v2701
    %v3374 = vpack.c.b16 %v2718, %v2702
    %v3375 = vpack.c.b16 %v2719, %v2703
    %v3376 = vpack.c.b16 %v2720, %v2704
    %v3377 = vpack.c.b16 %v2721, %v2705
    %v3378 = vpack.c.b16 %v2722, %v2706
    %v3379 = vpack.c.b16 %v2723, %v2707
    %v3380 = vpack.c.b16 %v2724, %v2708
    %v3381 = vpack.c.b16 %v2725, %v2709
    %v3382 = vpack.c.b16 %v2726, %v2710
    %v3383 = vpack.c.b16 %v2727, %v2711
    %v3384 = vpack.c.b16 %v2728, %v2712
    %v3385 = vpack.c.b16 %v2745, %v2729
    %v3386 = vpack.c.b16 %v2746, %v2730
    %v3387 = vpack.c.b16 %v2747, %v2731
    %v3388 = vpack.c.b16 %v2748, %v2732
    %v3389 = vpack.c.b16 %v2749, %v2733
    %v3390 = vpack.c.b16 %v2750, %v2734
    %v3391 = vpack.c.b16 %v2751, %v2735
    %v3392 = vpack.c.b16 %v2752, %v2736
    %v3393 = vpack.c.b16 %v2753, %v2737
    %v3394 = vpack.c.b16 %v2754, %v2738
    %v3395 = vpack.c.b16 %v2755, %v2739
    %v3396 = vpack.c.b16 %v2756, %v2740
    %v3397 = vpack.c.b16 %v2757, %v2741
    %v3398 = vpack.c.b16 %v2758, %v2742
    %v3399 = vpack.c.b16 %v2759, %v2743
    %v3400 = vpack.c.b16 %v2760, %v2744
    %v3401 = vpack.c.b16 %v2777, %v2761
    %v3402 = vpack.c.b16 %v2778, %v2762
    %v3403 = vpack.c.b16 %v2779, %v2763
    %v3404 = vpack.c.b16 %v2780, %v2764
    %v3405 = vpack.c.b16 %v2781, %v2765
    %v3406 = vpack.c.b16 %v2782, %v2766
    %v3407 = vpack.c.b16 %v2783, %v2767
    %v3408 = vpack.c.b16 %v2784, %v2768
    %v3409 = vpack.c.b16 %v2785, %v2769
    %v3410 = vpack.c.b16 %v2786, %v2770
    %v3411 = vpack.c.b16 %v2787, %v2771
    %v3412 = vpack.c.b16 %v2788, %v2772
    %v3413 = vpack.c.b16 %v2789, %v2773
    %v3414 = vpack.c.b16 %v2790, %v2774
    %v3415 = vpack.c.b16 %v2791, %v2775
    %v3416 = vpack.c.b16 %v2792, %v2776
    %v3417 = vpack.c.b16 %v2809, %v2793
    %v3418 = vpack.c.b16 %v2810, %v2794
    %v3419 = vpack.c.b16 %v2811, %v2795
    %v3420 = vpack.c.b16 %v2812, %v2796
    %v3421 = vpack.c.b16 %v2813, %v2797
    %v3422 = vpack.c.b16 %v2814, %v2798
    %v3423 = vpack.c.b16 %v2815, %v2799
    %v3424 = vpack.c.b16 %v2816, %v2800
    %v3425 = vpack.c.b16 %v2817, %v2801
    %v3426 = vpack.c.b16 %v2818, %v2802
    %v3427 = vpack.c.b16 %v2819, %v2803
    %v3428 = vpack.c.b16 %v2820, %v2804
    %v3429 = vpack.c.b16 %v2821, %v2805
    %v3430 = vpack.c.b16 %v2822, %v2806
    %v3431 = vpack.c.b16 %v2823, %v2807
    %v3432 = vpack.c.b16 %v2824, %v2808
    %v3433 = vpack.c.b16 %v2841, %v2825
    %v3434 = vpack.c.b16 %v2842, %v2826
    %v3435 = vpack.c.b16 %v2843, %v2827
    %v3436 = vpack.c.b16 %v2844, %v2828
    %v3437 = vpack.c.b16 %v2845, %v2829
    %v3438 = vpack.c.b16 %v2846, %v2830
    %v3439 = vpack.c.b16 %v2847, %v2831
    %v3440 = vpack.c.b16 %v2848, %v2832
    %v3441 = vpack.c.b16 %v2849, %v2833
    %v3442 = vpack.c.b16 %v2850, %v2834
    %v3443 = vpack.c.b16 %v2851, %v2835
    %v3444 = vpack.c.b16 %v2852, %v2836
    %v3445 = vpack.c.b16 %v2853, %v2837
    %v3446 = vpack.c.b16 %v2854, %v2838
    %v3447 = vpack.c.b16 %v2855, %v2839
    %v3448 = vpack.c.b16 %v2856, %v2840
    %v3449 = vpack.c.b16 %v2873, %v2857
    %v3450 = vpack.c.b16 %v2874, %v2858
    %v3451 = vpack.c.b16 %v2875, %v2859
    %v3452 = vpack.c.b16 %v2876, %v2860
    %v3453 = vpack.c.b16 %v2877, %v2861
    %v3454 = vpack.c.b16 %v2878, %v2862
    %v3455 = vpack.c.b16 %v2879, %v2863
    %v3456 = vpack.c.b16 %v2880, %v2864
    %v3457 = vpack.c.b16 %v2881, %v2865
    %v3458 = vpack.c.b16 %v2882, %v2866
    %v3459 = vpack.c.b16 %v2883, %v2867
    %v3460 = vpack.c.b16 %v2884, %v2868
    %v3461 = vpack.c.b16 %v2885, %v2869
    %v3462 = vpack.c.b16 %v2886, %v2870
    %v3463 = vpack.c.b16 %v2887, %v2871
    %v3464 = vpack.c.b16 %v2888, %v2872
    %v3465 = vpack.c.b16 %v2905, %v2889
    %v3466 = vpack.c.b16 %v2906, %v2890
    %v3467 = vpack.c.b16 %v2907, %v2891
    %v3468 = vpack.c.b16 %v2908, %v2892
    %v3469 = vpack.c.b16 %v2909, %v2893
    %v3470 = vpack.c.b16 %v2910, %v2894
    %v3471 = vpack.c.b16 %v2911, %v2895
    %v3472 = vpack.c.b16 %v2912, %v2896
    %v3473 = vpack.c.b16 %v2913, %v2897
    %v3474 = vpack.c.b16 %v2914, %v2898
    %v3475 = vpack.c.b16 %v2915, %v2899
    %v3476 = vpack.c.b16 %v2916, %v2900
    %v3477 = vpack.c.b16 %v2917, %v2901
    %v3478 = vpack.c.b16 %v2918, %v2902
    %v3479 = vpack.c.b16 %v2919, %v2903
    %v3480 = vpack.c.b16 %v2920, %v2904
    %v3481 = vpack.c.b16 %v2937, %v2921
    %v3482 = vpack.c.b16 %v2938, %v2922
    %v3483 = vpack.c.b16 %v2939, %v2923
    %v3484 = vpack.c.b16 %v2940, %v2924
    %v3485 = vpack.c.b16 %v2941, %v2925
    %v3486 = vpack.c.b16 %v2942, %v2926
    %v3487 = vpack.c.b16 %v2943, %v2927
    %v3488 = vpack.c.b16 %v2944, %v2928
    %v3489 = vpack.c.b16 %v2945, %v2929
    %v3490 = vpack.c.b16 %v2946, %v2930
    %v3491 = vpack.c.b16 %v2947, %v2931
    %v3492 = vpack.c.b16 %v2948, %v2932
    %v3493 = vpack.c.b16 %v2949, %v2933
    %v3494 = vpack.c.b16 %v2950, %v2934
    %v3495 = vpack.c.b16 %v2951, %v2935
    %v3496 = vpack.c.b16 %v2952, %v2936
    %v3497 = vpack.c.b16 %v2969, %v2953
    %v3498 = vpack.c.b16 %v2970, %v2954
    %v3499 = vpack.c.b16 %v2971, %v2955
    %v3500 = vpack.c.b16 %v2972, %v2956
    %v3501 = vpack.c.b16 %v2973, %v2957
    %v3502 = vpack.c.b16 %v2974, %v2958
    %v3503 = vpack.c.b16 %v2975, %v2959
    %v3504 = vpack.c.b16 %v2976, %v2960
    %v3505 = vpack.c.b16 %v2977, %v2961
    %v3506 = vpack.c.b16 %v2978, %v2962
    %v3507 = vpack.c.b16 %v2979, %v2963
    %v3508 = vpack.c.b16 %v2980, %v2964
    %v3509 = vpack.c.b16 %v2981, %v2965
    %v3510 = vpack.c.b16 %v2982, %v2966
    %v3511 = vpack.c.b16 %v2983, %v2967
    %v3512 = vpack.c.b16 %v2984, %v2968
    %v3513 = vpack.c.b16 %v3001, %v2985
    %v3514 = vpack.c.b16 %v3002, %v2986
    %v3515 = vpack.c.b16 %v3003, %v2987
    %v3516 = vpack.c.b16 %v3004, %v2988
    %v3517 = vpack.c.b16 %v3005, %v2989
    %v3518 = vpack.c.b16 %v3006, %v2990
    %v3519 = vpack.c.b16 %v3007, %v2991
    %v3520 = vpack.c.b16 %v3008, %v2992
    %v3521 = vpack.c.b16 %v3009, %v2993
    %v3522 = vpack.c.b16 %v3010, %v2994
    %v3523 = vpack.c.b16 %v3011, %v2995
    %v3524 = vpack.c.b16 %v3012, %v2996
    %v3525 = vpack.c.b16 %v3013, %v2997
    %v3526 = vpack.c.b16 %v3014, %v2998
    %v3527 = vpack.c.b16 %v3015, %v2999
    %v3528 = vpack.c.b16 %v3016, %v3000
    %4041 = vmatpush.bf16.msra.mxu0 %v3129
    %4042 = vmatpush.bf16.msra.mxu0 %v3113
    %4043 = vmatpush.bf16.msra.mxu0 %v3097
    %4044 = vmatpush.bf16.msra.mxu0 %v3081
    %4045 = vmatpush.bf16.msra.mxu0 %v3065
    %4046 = vmatpush.bf16.msra.mxu0 %v3049
    %4047 = vmatpush.bf16.msra.mxu0 %v3033
    %4048 = vmatpush.bf16.msra.mxu0 %v3017
    %4049 = vmatmul.bf16.gmra.mxu0 %v929
    %v4050 = vpop.f32.mrf.mxu0
    %v4051 = vadd.f32 %v1449, %v4050
    %v4052 = vpop.f32.mrf.mxu0
    %4053 = vdwg.mxu0
    %4054 = vmatpush.bf16.msra.mxu0 %v3257
    %4055 = vmatpush.bf16.msra.mxu0 %v3241
    %4056 = vmatpush.bf16.msra.mxu0 %v3225
    %4057 = vmatpush.bf16.msra.mxu0 %v3209
    %4058 = vmatpush.bf16.msra.mxu0 %v3193
    %4059 = vmatpush.bf16.msra.mxu0 %v3177
    %4060 = vmatpush.bf16.msra.mxu0 %v3161
    %4061 = vmatpush.bf16.msra.mxu0 %v3145
    %4062 = vmatmul.bf16.gmra.mxu0 %v930
    %v4063 = vpop.f32.mrf.mxu0
    %v4064 = vadd.f32 %v4051, %v4063
    %v4065 = vpop.f32.mrf.mxu0
    %4066 = vdwg.mxu0
    %4067 = vmatpush.bf16.msra.mxu0 %v3385
    %4068 = vmatpush.bf16.msra.mxu0 %v3369
    %4069 = vmatpush.bf16.msra.mxu0 %v3353
    %4070 = vmatpush.bf16.msra.mxu0 %v3337
    %4071 = vmatpush.bf16.msra.mxu0 %v3321
    %4072 = vmatpush.bf16.msra.mxu0 %v3305
    %4073 = vmatpush.bf16.msra.mxu0 %v3289
    %4074 = vmatpush.bf16.msra.mxu0 %v3273
    %4075 = vmatmul.bf16.gmra.mxu0 %v931
    %v4076 = vpop.f32.mrf.mxu0
    %v4077 = vadd.f32 %v4064, %v4076
    %v4078 = vpop.f32.mrf.mxu0
    %4079 = vdwg.mxu0
    %4080 = vmatpush.bf16.msra.mxu0 %v3513
    %4081 = vmatpush.bf16.msra.mxu0 %v3497
    %4082 = vmatpush.bf16.msra.mxu0 %v3481
    %4083 = vmatpush.bf16.msra.mxu0 %v3465
    %4084 = vmatpush.bf16.msra.mxu0 %v3449
    %4085 = vmatpush.bf16.msra.mxu0 %v3433
    %4086 = vmatpush.bf16.msra.mxu0 %v3417
    %4087 = vmatpush.bf16.msra.mxu0 %v3401
    %4088 = vmatmul.bf16.gmra.mxu0 %v932
    %v4089 = vpop.f32.mrf.mxu0
    %v4090 = vadd.f32 %v4077, %v4089
    %v4091 = vpop.f32.mrf.mxu0
    %4092 = vdwg.mxu0
    %4093 = vmatpush.bf16.msra.mxu0 %v3130
    %4094 = vmatpush.bf16.msra.mxu0 %v3114
    %4095 = vmatpush.bf16.msra.mxu0 %v3098
    %4096 = vmatpush.bf16.msra.mxu0 %v3082
    %4097 = vmatpush.bf16.msra.mxu0 %v3066
    %4098 = vmatpush.bf16.msra.mxu0 %v3050
    %4099 = vmatpush.bf16.msra.mxu0 %v3034
    %4100 = vmatpush.bf16.msra.mxu0 %v3018
    %4101 = vmatmul.bf16.gmra.mxu0 %v929
    %v4102 = vpop.f32.mrf.mxu0
    %v4103 = vadd.f32 %v1450, %v4102
    %v4104 = vpop.f32.mrf.mxu0
    %4105 = vdwg.mxu0
    %4106 = vmatpush.bf16.msra.mxu0 %v3258
    %4107 = vmatpush.bf16.msra.mxu0 %v3242
    %4108 = vmatpush.bf16.msra.mxu0 %v3226
    %4109 = vmatpush.bf16.msra.mxu0 %v3210
    %4110 = vmatpush.bf16.msra.mxu0 %v3194
    %4111 = vmatpush.bf16.msra.mxu0 %v3178
    %4112 = vmatpush.bf16.msra.mxu0 %v3162
    %4113 = vmatpush.bf16.msra.mxu0 %v3146
    %4114 = vmatmul.bf16.gmra.mxu0 %v930
    %v4115 = vpop.f32.mrf.mxu0
    %v4116 = vadd.f32 %v4103, %v4115
    %v4117 = vpop.f32.mrf.mxu0
    %4118 = vdwg.mxu0
    %4119 = vmatpush.bf16.msra.mxu0 %v3386
    %4120 = vmatpush.bf16.msra.mxu0 %v3370
    %4121 = vmatpush.bf16.msra.mxu0 %v3354
    %4122 = vmatpush.bf16.msra.mxu0 %v3338
    %4123 = vmatpush.bf16.msra.mxu0 %v3322
    %4124 = vmatpush.bf16.msra.mxu0 %v3306
    %4125 = vmatpush.bf16.msra.mxu0 %v3290
    %4126 = vmatpush.bf16.msra.mxu0 %v3274
    %4127 = vmatmul.bf16.gmra.mxu0 %v931
    %v4128 = vpop.f32.mrf.mxu0
    %v4129 = vadd.f32 %v4116, %v4128
    %v4130 = vpop.f32.mrf.mxu0
    %4131 = vdwg.mxu0
    %4132 = vmatpush.bf16.msra.mxu0 %v3514
    %4133 = vmatpush.bf16.msra.mxu0 %v3498
    %4134 = vmatpush.bf16.msra.mxu0 %v3482
    %4135 = vmatpush.bf16.msra.mxu0 %v3466
    %4136 = vmatpush.bf16.msra.mxu0 %v3450
    %4137 = vmatpush.bf16.msra.mxu0 %v3434
    %4138 = vmatpush.bf16.msra.mxu0 %v3418
    %4139 = vmatpush.bf16.msra.mxu0 %v3402
    %4140 = vmatmul.bf16.gmra.mxu0 %v932
    %v4141 = vpop.f32.mrf.mxu0
    %v4142 = vadd.f32 %v4129, %v4141
    %v4143 = vpop.f32.mrf.mxu0
    %4144 = vdwg.mxu0
    %4145 = vmatpush.bf16.msra.mxu0 %v3131
    %4146 = vmatpush.bf16.msra.mxu0 %v3115
    %4147 = vmatpush.bf16.msra.mxu0 %v3099
    %4148 = vmatpush.bf16.msra.mxu0 %v3083
    %4149 = vmatpush.bf16.msra.mxu0 %v3067
    %4150 = vmatpush.bf16.msra.mxu0 %v3051
    %4151 = vmatpush.bf16.msra.mxu0 %v3035
    %4152 = vmatpush.bf16.msra.mxu0 %v3019
    %4153 = vmatmul.bf16.gmra.mxu0 %v929
    %v4154 = vpop.f32.mrf.mxu0
    %v4155 = vadd.f32 %v1451, %v4154
    %v4156 = vpop.f32.mrf.mxu0
    %4157 = vdwg.mxu0
    %4158 = vmatpush.bf16.msra.mxu0 %v3259
    %4159 = vmatpush.bf16.msra.mxu0 %v3243
    %4160 = vmatpush.bf16.msra.mxu0 %v3227
    %4161 = vmatpush.bf16.msra.mxu0 %v3211
    %4162 = vmatpush.bf16.msra.mxu0 %v3195
    %4163 = vmatpush.bf16.msra.mxu0 %v3179
    %4164 = vmatpush.bf16.msra.mxu0 %v3163
    %4165 = vmatpush.bf16.msra.mxu0 %v3147
    %4166 = vmatmul.bf16.gmra.mxu0 %v930
    %v4167 = vpop.f32.mrf.mxu0
    %v4168 = vadd.f32 %v4155, %v4167
    %v4169 = vpop.f32.mrf.mxu0
    %4170 = vdwg.mxu0
    %4171 = vmatpush.bf16.msra.mxu0 %v3387
    %4172 = vmatpush.bf16.msra.mxu0 %v3371
    %4173 = vmatpush.bf16.msra.mxu0 %v3355
    %4174 = vmatpush.bf16.msra.mxu0 %v3339
    %4175 = vmatpush.bf16.msra.mxu0 %v3323
    %4176 = vmatpush.bf16.msra.mxu0 %v3307
    %4177 = vmatpush.bf16.msra.mxu0 %v3291
    %4178 = vmatpush.bf16.msra.mxu0 %v3275
    %4179 = vmatmul.bf16.gmra.mxu0 %v931
    %v4180 = vpop.f32.mrf.mxu0
    %v4181 = vadd.f32 %v4168, %v4180
    %v4182 = vpop.f32.mrf.mxu0
    %4183 = vdwg.mxu0
    %4184 = vmatpush.bf16.msra.mxu0 %v3515
    %4185 = vmatpush.bf16.msra.mxu0 %v3499
    %4186 = vmatpush.bf16.msra.mxu0 %v3483
    %4187 = vmatpush.bf16.msra.mxu0 %v3467
    %4188 = vmatpush.bf16.msra.mxu0 %v3451
    %4189 = vmatpush.bf16.msra.mxu0 %v3435
    %4190 = vmatpush.bf16.msra.mxu0 %v3419
    %4191 = vmatpush.bf16.msra.mxu0 %v3403
    %4192 = vmatmul.bf16.gmra.mxu0 %v932
    %v4193 = vpop.f32.mrf.mxu0
    %v4194 = vadd.f32 %v4181, %v4193
    %v4195 = vpop.f32.mrf.mxu0
    %4196 = vdwg.mxu0
    %4197 = vmatpush.bf16.msra.mxu0 %v3132
    %4198 = vmatpush.bf16.msra.mxu0 %v3116
    %4199 = vmatpush.bf16.msra.mxu0 %v3100
    %4200 = vmatpush.bf16.msra.mxu0 %v3084
    %4201 = vmatpush.bf16.msra.mxu0 %v3068
    %4202 = vmatpush.bf16.msra.mxu0 %v3052
    %4203 = vmatpush.bf16.msra.mxu0 %v3036
    %4204 = vmatpush.bf16.msra.mxu0 %v3020
    %4205 = vmatmul.bf16.gmra.mxu0 %v929
    %v4206 = vpop.f32.mrf.mxu0
    %v4207 = vadd.f32 %v1452, %v4206
    %v4208 = vpop.f32.mrf.mxu0
    %4209 = vdwg.mxu0
    %4210 = vmatpush.bf16.msra.mxu0 %v3260
    %4211 = vmatpush.bf16.msra.mxu0 %v3244
    %4212 = vmatpush.bf16.msra.mxu0 %v3228
    %4213 = vmatpush.bf16.msra.mxu0 %v3212
    %4214 = vmatpush.bf16.msra.mxu0 %v3196
    %4215 = vmatpush.bf16.msra.mxu0 %v3180
    %4216 = vmatpush.bf16.msra.mxu0 %v3164
    %4217 = vmatpush.bf16.msra.mxu0 %v3148
    %4218 = vmatmul.bf16.gmra.mxu0 %v930
    %v4219 = vpop.f32.mrf.mxu0
    %v4220 = vadd.f32 %v4207, %v4219
    %v4221 = vpop.f32.mrf.mxu0
    %4222 = vdwg.mxu0
    %4223 = vmatpush.bf16.msra.mxu0 %v3388
    %4224 = vmatpush.bf16.msra.mxu0 %v3372
    %4225 = vmatpush.bf16.msra.mxu0 %v3356
    %4226 = vmatpush.bf16.msra.mxu0 %v3340
    %4227 = vmatpush.bf16.msra.mxu0 %v3324
    %4228 = vmatpush.bf16.msra.mxu0 %v3308
    %4229 = vmatpush.bf16.msra.mxu0 %v3292
    %4230 = vmatpush.bf16.msra.mxu0 %v3276
    %4231 = vmatmul.bf16.gmra.mxu0 %v931
    %v4232 = vpop.f32.mrf.mxu0
    %v4233 = vadd.f32 %v4220, %v4232
    %v4234 = vpop.f32.mrf.mxu0
    %4235 = vdwg.mxu0
    %4236 = vmatpush.bf16.msra.mxu0 %v3516
    %4237 = vmatpush.bf16.msra.mxu0 %v3500
    %4238 = vmatpush.bf16.msra.mxu0 %v3484
    %4239 = vmatpush.bf16.msra.mxu0 %v3468
    %4240 = vmatpush.bf16.msra.mxu0 %v3452
    %4241 = vmatpush.bf16.msra.mxu0 %v3436
    %4242 = vmatpush.bf16.msra.mxu0 %v3420
    %4243 = vmatpush.bf16.msra.mxu0 %v3404
    %4244 = vmatmul.bf16.gmra.mxu0 %v932
    %v4245 = vpop.f32.mrf.mxu0
    %v4246 = vadd.f32 %v4233, %v4245
    %v4247 = vpop.f32.mrf.mxu0
    %4248 = vdwg.mxu0
    %4249 = vmatpush.bf16.msra.mxu0 %v3133
    %4250 = vmatpush.bf16.msra.mxu0 %v3117
    %4251 = vmatpush.bf16.msra.mxu0 %v3101
    %4252 = vmatpush.bf16.msra.mxu0 %v3085
    %4253 = vmatpush.bf16.msra.mxu0 %v3069
    %4254 = vmatpush.bf16.msra.mxu0 %v3053
    %4255 = vmatpush.bf16.msra.mxu0 %v3037
    %4256 = vmatpush.bf16.msra.mxu0 %v3021
    %4257 = vmatmul.bf16.gmra.mxu0 %v929
    %v4258 = vpop.f32.mrf.mxu0
    %v4259 = vadd.f32 %v1453, %v4258
    %v4260 = vpop.f32.mrf.mxu0
    %4261 = vdwg.mxu0
    %4262 = vmatpush.bf16.msra.mxu0 %v3261
    %4263 = vmatpush.bf16.msra.mxu0 %v3245
    %4264 = vmatpush.bf16.msra.mxu0 %v3229
    %4265 = vmatpush.bf16.msra.mxu0 %v3213
    %4266 = vmatpush.bf16.msra.mxu0 %v3197
    %4267 = vmatpush.bf16.msra.mxu0 %v3181
    %4268 = vmatpush.bf16.msra.mxu0 %v3165
    %4269 = vmatpush.bf16.msra.mxu0 %v3149
    %4270 = vmatmul.bf16.gmra.mxu0 %v930
    %v4271 = vpop.f32.mrf.mxu0
    %v4272 = vadd.f32 %v4259, %v4271
    %v4273 = vpop.f32.mrf.mxu0
    %4274 = vdwg.mxu0
    %4275 = vmatpush.bf16.msra.mxu0 %v3389
    %4276 = vmatpush.bf16.msra.mxu0 %v3373
    %4277 = vmatpush.bf16.msra.mxu0 %v3357
    %4278 = vmatpush.bf16.msra.mxu0 %v3341
    %4279 = vmatpush.bf16.msra.mxu0 %v3325
    %4280 = vmatpush.bf16.msra.mxu0 %v3309
    %4281 = vmatpush.bf16.msra.mxu0 %v3293
    %4282 = vmatpush.bf16.msra.mxu0 %v3277
    %4283 = vmatmul.bf16.gmra.mxu0 %v931
    %v4284 = vpop.f32.mrf.mxu0
    %v4285 = vadd.f32 %v4272, %v4284
    %v4286 = vpop.f32.mrf.mxu0
    %4287 = vdwg.mxu0
    %4288 = vmatpush.bf16.msra.mxu0 %v3517
    %4289 = vmatpush.bf16.msra.mxu0 %v3501
    %4290 = vmatpush.bf16.msra.mxu0 %v3485
    %4291 = vmatpush.bf16.msra.mxu0 %v3469
    %4292 = vmatpush.bf16.msra.mxu0 %v3453
    %4293 = vmatpush.bf16.msra.mxu0 %v3437
    %4294 = vmatpush.bf16.msra.mxu0 %v3421
    %4295 = vmatpush.bf16.msra.mxu0 %v3405
    %4296 = vmatmul.bf16.gmra.mxu0 %v932
    %v4297 = vpop.f32.mrf.mxu0
    %v4298 = vadd.f32 %v4285, %v4297
    %v4299 = vpop.f32.mrf.mxu0
    %4300 = vdwg.mxu0
    %4301 = vmatpush.bf16.msra.mxu0 %v3134
    %4302 = vmatpush.bf16.msra.mxu0 %v3118
    %4303 = vmatpush.bf16.msra.mxu0 %v3102
    %4304 = vmatpush.bf16.msra.mxu0 %v3086
    %4305 = vmatpush.bf16.msra.mxu0 %v3070
    %4306 = vmatpush.bf16.msra.mxu0 %v3054
    %4307 = vmatpush.bf16.msra.mxu0 %v3038
    %4308 = vmatpush.bf16.msra.mxu0 %v3022
    %4309 = vmatmul.bf16.gmra.mxu0 %v929
    %v4310 = vpop.f32.mrf.mxu0
    %v4311 = vadd.f32 %v1454, %v4310
    %v4312 = vpop.f32.mrf.mxu0
    %4313 = vdwg.mxu0
    %4314 = vmatpush.bf16.msra.mxu0 %v3262
    %4315 = vmatpush.bf16.msra.mxu0 %v3246
    %4316 = vmatpush.bf16.msra.mxu0 %v3230
    %4317 = vmatpush.bf16.msra.mxu0 %v3214
    %4318 = vmatpush.bf16.msra.mxu0 %v3198
    %4319 = vmatpush.bf16.msra.mxu0 %v3182
    %4320 = vmatpush.bf16.msra.mxu0 %v3166
    %4321 = vmatpush.bf16.msra.mxu0 %v3150
    %4322 = vmatmul.bf16.gmra.mxu0 %v930
    %v4323 = vpop.f32.mrf.mxu0
    %v4324 = vadd.f32 %v4311, %v4323
    %v4325 = vpop.f32.mrf.mxu0
    %4326 = vdwg.mxu0
    %4327 = vmatpush.bf16.msra.mxu0 %v3390
    %4328 = vmatpush.bf16.msra.mxu0 %v3374
    %4329 = vmatpush.bf16.msra.mxu0 %v3358
    %4330 = vmatpush.bf16.msra.mxu0 %v3342
    %4331 = vmatpush.bf16.msra.mxu0 %v3326
    %4332 = vmatpush.bf16.msra.mxu0 %v3310
    %4333 = vmatpush.bf16.msra.mxu0 %v3294
    %4334 = vmatpush.bf16.msra.mxu0 %v3278
    %4335 = vmatmul.bf16.gmra.mxu0 %v931
    %v4336 = vpop.f32.mrf.mxu0
    %v4337 = vadd.f32 %v4324, %v4336
    %v4338 = vpop.f32.mrf.mxu0
    %4339 = vdwg.mxu0
    %4340 = vmatpush.bf16.msra.mxu0 %v3518
    %4341 = vmatpush.bf16.msra.mxu0 %v3502
    %4342 = vmatpush.bf16.msra.mxu0 %v3486
    %4343 = vmatpush.bf16.msra.mxu0 %v3470
    %4344 = vmatpush.bf16.msra.mxu0 %v3454
    %4345 = vmatpush.bf16.msra.mxu0 %v3438
    %4346 = vmatpush.bf16.msra.mxu0 %v3422
    %4347 = vmatpush.bf16.msra.mxu0 %v3406
    %4348 = vmatmul.bf16.gmra.mxu0 %v932
    %v4349 = vpop.f32.mrf.mxu0
    %v4350 = vadd.f32 %v4337, %v4349
    %v4351 = vpop.f32.mrf.mxu0
    %4352 = vdwg.mxu0
    %4353 = vmatpush.bf16.msra.mxu0 %v3135
    %4354 = vmatpush.bf16.msra.mxu0 %v3119
    %4355 = vmatpush.bf16.msra.mxu0 %v3103
    %4356 = vmatpush.bf16.msra.mxu0 %v3087
    %4357 = vmatpush.bf16.msra.mxu0 %v3071
    %4358 = vmatpush.bf16.msra.mxu0 %v3055
    %4359 = vmatpush.bf16.msra.mxu0 %v3039
    %4360 = vmatpush.bf16.msra.mxu0 %v3023
    %4361 = vmatmul.bf16.gmra.mxu0 %v929
    %v4362 = vpop.f32.mrf.mxu0
    %v4363 = vadd.f32 %v1455, %v4362
    %v4364 = vpop.f32.mrf.mxu0
    %4365 = vdwg.mxu0
    %4366 = vmatpush.bf16.msra.mxu0 %v3263
    %4367 = vmatpush.bf16.msra.mxu0 %v3247
    %4368 = vmatpush.bf16.msra.mxu0 %v3231
    %4369 = vmatpush.bf16.msra.mxu0 %v3215
    %4370 = vmatpush.bf16.msra.mxu0 %v3199
    %4371 = vmatpush.bf16.msra.mxu0 %v3183
    %4372 = vmatpush.bf16.msra.mxu0 %v3167
    %4373 = vmatpush.bf16.msra.mxu0 %v3151
    %4374 = vmatmul.bf16.gmra.mxu0 %v930
    %v4375 = vpop.f32.mrf.mxu0
    %v4376 = vadd.f32 %v4363, %v4375
    %v4377 = vpop.f32.mrf.mxu0
    %4378 = vdwg.mxu0
    %4379 = vmatpush.bf16.msra.mxu0 %v3391
    %4380 = vmatpush.bf16.msra.mxu0 %v3375
    %4381 = vmatpush.bf16.msra.mxu0 %v3359
    %4382 = vmatpush.bf16.msra.mxu0 %v3343
    %4383 = vmatpush.bf16.msra.mxu0 %v3327
    %4384 = vmatpush.bf16.msra.mxu0 %v3311
    %4385 = vmatpush.bf16.msra.mxu0 %v3295
    %4386 = vmatpush.bf16.msra.mxu0 %v3279
    %4387 = vmatmul.bf16.gmra.mxu0 %v931
    %v4388 = vpop.f32.mrf.mxu0
    %v4389 = vadd.f32 %v4376, %v4388
    %v4390 = vpop.f32.mrf.mxu0
    %4391 = vdwg.mxu0
    %4392 = vmatpush.bf16.msra.mxu0 %v3519
    %4393 = vmatpush.bf16.msra.mxu0 %v3503
    %4394 = vmatpush.bf16.msra.mxu0 %v3487
    %4395 = vmatpush.bf16.msra.mxu0 %v3471
    %4396 = vmatpush.bf16.msra.mxu0 %v3455
    %4397 = vmatpush.bf16.msra.mxu0 %v3439
    %4398 = vmatpush.bf16.msra.mxu0 %v3423
    %4399 = vmatpush.bf16.msra.mxu0 %v3407
    %4400 = vmatmul.bf16.gmra.mxu0 %v932
    %v4401 = vpop.f32.mrf.mxu0
    %v4402 = vadd.f32 %v4389, %v4401
    %v4403 = vpop.f32.mrf.mxu0
    %4404 = vdwg.mxu0
    %4405 = vmatpush.bf16.msra.mxu0 %v3136
    %4406 = vmatpush.bf16.msra.mxu0 %v3120
    %4407 = vmatpush.bf16.msra.mxu0 %v3104
    %4408 = vmatpush.bf16.msra.mxu0 %v3088
    %4409 = vmatpush.bf16.msra.mxu0 %v3072
    %4410 = vmatpush.bf16.msra.mxu0 %v3056
    %4411 = vmatpush.bf16.msra.mxu0 %v3040
    %4412 = vmatpush.bf16.msra.mxu0 %v3024
    %4413 = vmatmul.bf16.gmra.mxu0 %v929
    %v4414 = vpop.f32.mrf.mxu0
    %v4415 = vadd.f32 %v1456, %v4414
    %v4416 = vpop.f32.mrf.mxu0
    %4417 = vdwg.mxu0
    %4418 = vmatpush.bf16.msra.mxu0 %v3264
    %4419 = vmatpush.bf16.msra.mxu0 %v3248
    %4420 = vmatpush.bf16.msra.mxu0 %v3232
    %4421 = vmatpush.bf16.msra.mxu0 %v3216
    %4422 = vmatpush.bf16.msra.mxu0 %v3200
    %4423 = vmatpush.bf16.msra.mxu0 %v3184
    %4424 = vmatpush.bf16.msra.mxu0 %v3168
    %4425 = vmatpush.bf16.msra.mxu0 %v3152
    %4426 = vmatmul.bf16.gmra.mxu0 %v930
    %v4427 = vpop.f32.mrf.mxu0
    %v4428 = vadd.f32 %v4415, %v4427
    %v4429 = vpop.f32.mrf.mxu0
    %4430 = vdwg.mxu0
    %4431 = vmatpush.bf16.msra.mxu0 %v3392
    %4432 = vmatpush.bf16.msra.mxu0 %v3376
    %4433 = vmatpush.bf16.msra.mxu0 %v3360
    %4434 = vmatpush.bf16.msra.mxu0 %v3344
    %4435 = vmatpush.bf16.msra.mxu0 %v3328
    %4436 = vmatpush.bf16.msra.mxu0 %v3312
    %4437 = vmatpush.bf16.msra.mxu0 %v3296
    %4438 = vmatpush.bf16.msra.mxu0 %v3280
    %4439 = vmatmul.bf16.gmra.mxu0 %v931
    %v4440 = vpop.f32.mrf.mxu0
    %v4441 = vadd.f32 %v4428, %v4440
    %v4442 = vpop.f32.mrf.mxu0
    %4443 = vdwg.mxu0
    %4444 = vmatpush.bf16.msra.mxu0 %v3520
    %4445 = vmatpush.bf16.msra.mxu0 %v3504
    %4446 = vmatpush.bf16.msra.mxu0 %v3488
    %4447 = vmatpush.bf16.msra.mxu0 %v3472
    %4448 = vmatpush.bf16.msra.mxu0 %v3456
    %4449 = vmatpush.bf16.msra.mxu0 %v3440
    %4450 = vmatpush.bf16.msra.mxu0 %v3424
    %4451 = vmatpush.bf16.msra.mxu0 %v3408
    %4452 = vmatmul.bf16.gmra.mxu0 %v932
    %v4453 = vpop.f32.mrf.mxu0
    %v4454 = vadd.f32 %v4441, %v4453
    %v4455 = vpop.f32.mrf.mxu0
    %4456 = vdwg.mxu0
    %4457 = vmatpush.bf16.msra.mxu0 %v3137
    %4458 = vmatpush.bf16.msra.mxu0 %v3121
    %4459 = vmatpush.bf16.msra.mxu0 %v3105
    %4460 = vmatpush.bf16.msra.mxu0 %v3089
    %4461 = vmatpush.bf16.msra.mxu0 %v3073
    %4462 = vmatpush.bf16.msra.mxu0 %v3057
    %4463 = vmatpush.bf16.msra.mxu0 %v3041
    %4464 = vmatpush.bf16.msra.mxu0 %v3025
    %4465 = vmatmul.bf16.gmra.mxu0 %v929
    %v4466 = vpop.f32.mrf.mxu0
    %v4467 = vadd.f32 %v1457, %v4466
    %v4468 = vpop.f32.mrf.mxu0
    %4469 = vdwg.mxu0
    %4470 = vmatpush.bf16.msra.mxu0 %v3265
    %4471 = vmatpush.bf16.msra.mxu0 %v3249
    %4472 = vmatpush.bf16.msra.mxu0 %v3233
    %4473 = vmatpush.bf16.msra.mxu0 %v3217
    %4474 = vmatpush.bf16.msra.mxu0 %v3201
    %4475 = vmatpush.bf16.msra.mxu0 %v3185
    %4476 = vmatpush.bf16.msra.mxu0 %v3169
    %4477 = vmatpush.bf16.msra.mxu0 %v3153
    %4478 = vmatmul.bf16.gmra.mxu0 %v930
    %v4479 = vpop.f32.mrf.mxu0
    %v4480 = vadd.f32 %v4467, %v4479
    %v4481 = vpop.f32.mrf.mxu0
    %4482 = vdwg.mxu0
    %4483 = vmatpush.bf16.msra.mxu0 %v3393
    %4484 = vmatpush.bf16.msra.mxu0 %v3377
    %4485 = vmatpush.bf16.msra.mxu0 %v3361
    %4486 = vmatpush.bf16.msra.mxu0 %v3345
    %4487 = vmatpush.bf16.msra.mxu0 %v3329
    %4488 = vmatpush.bf16.msra.mxu0 %v3313
    %4489 = vmatpush.bf16.msra.mxu0 %v3297
    %4490 = vmatpush.bf16.msra.mxu0 %v3281
    %4491 = vmatmul.bf16.gmra.mxu0 %v931
    %v4492 = vpop.f32.mrf.mxu0
    %v4493 = vadd.f32 %v4480, %v4492
    %v4494 = vpop.f32.mrf.mxu0
    %4495 = vdwg.mxu0
    %4496 = vmatpush.bf16.msra.mxu0 %v3521
    %4497 = vmatpush.bf16.msra.mxu0 %v3505
    %4498 = vmatpush.bf16.msra.mxu0 %v3489
    %4499 = vmatpush.bf16.msra.mxu0 %v3473
    %4500 = vmatpush.bf16.msra.mxu0 %v3457
    %4501 = vmatpush.bf16.msra.mxu0 %v3441
    %4502 = vmatpush.bf16.msra.mxu0 %v3425
    %4503 = vmatpush.bf16.msra.mxu0 %v3409
    %4504 = vmatmul.bf16.gmra.mxu0 %v932
    %v4505 = vpop.f32.mrf.mxu0
    %v4506 = vadd.f32 %v4493, %v4505
    %v4507 = vpop.f32.mrf.mxu0
    %4508 = vdwg.mxu0
    %4509 = vmatpush.bf16.msra.mxu0 %v3138
    %4510 = vmatpush.bf16.msra.mxu0 %v3122
    %4511 = vmatpush.bf16.msra.mxu0 %v3106
    %4512 = vmatpush.bf16.msra.mxu0 %v3090
    %4513 = vmatpush.bf16.msra.mxu0 %v3074
    %4514 = vmatpush.bf16.msra.mxu0 %v3058
    %4515 = vmatpush.bf16.msra.mxu0 %v3042
    %4516 = vmatpush.bf16.msra.mxu0 %v3026
    %4517 = vmatmul.bf16.gmra.mxu0 %v929
    %v4518 = vpop.f32.mrf.mxu0
    %v4519 = vadd.f32 %v1458, %v4518
    %v4520 = vpop.f32.mrf.mxu0
    %4521 = vdwg.mxu0
    %4522 = vmatpush.bf16.msra.mxu0 %v3266
    %4523 = vmatpush.bf16.msra.mxu0 %v3250
    %4524 = vmatpush.bf16.msra.mxu0 %v3234
    %4525 = vmatpush.bf16.msra.mxu0 %v3218
    %4526 = vmatpush.bf16.msra.mxu0 %v3202
    %4527 = vmatpush.bf16.msra.mxu0 %v3186
    %4528 = vmatpush.bf16.msra.mxu0 %v3170
    %4529 = vmatpush.bf16.msra.mxu0 %v3154
    %4530 = vmatmul.bf16.gmra.mxu0 %v930
    %v4531 = vpop.f32.mrf.mxu0
    %v4532 = vadd.f32 %v4519, %v4531
    %v4533 = vpop.f32.mrf.mxu0
    %4534 = vdwg.mxu0
    %4535 = vmatpush.bf16.msra.mxu0 %v3394
    %4536 = vmatpush.bf16.msra.mxu0 %v3378
    %4537 = vmatpush.bf16.msra.mxu0 %v3362
    %4538 = vmatpush.bf16.msra.mxu0 %v3346
    %4539 = vmatpush.bf16.msra.mxu0 %v3330
    %4540 = vmatpush.bf16.msra.mxu0 %v3314
    %4541 = vmatpush.bf16.msra.mxu0 %v3298
    %4542 = vmatpush.bf16.msra.mxu0 %v3282
    %4543 = vmatmul.bf16.gmra.mxu0 %v931
    %v4544 = vpop.f32.mrf.mxu0
    %v4545 = vadd.f32 %v4532, %v4544
    %v4546 = vpop.f32.mrf.mxu0
    %4547 = vdwg.mxu0
    %4548 = vmatpush.bf16.msra.mxu0 %v3522
    %4549 = vmatpush.bf16.msra.mxu0 %v3506
    %4550 = vmatpush.bf16.msra.mxu0 %v3490
    %4551 = vmatpush.bf16.msra.mxu0 %v3474
    %4552 = vmatpush.bf16.msra.mxu0 %v3458
    %4553 = vmatpush.bf16.msra.mxu0 %v3442
    %4554 = vmatpush.bf16.msra.mxu0 %v3426
    %4555 = vmatpush.bf16.msra.mxu0 %v3410
    %4556 = vmatmul.bf16.gmra.mxu0 %v932
    %v4557 = vpop.f32.mrf.mxu0
    %v4558 = vadd.f32 %v4545, %v4557
    %v4559 = vpop.f32.mrf.mxu0
    %4560 = vdwg.mxu0
    %4561 = vmatpush.bf16.msra.mxu0 %v3139
    %4562 = vmatpush.bf16.msra.mxu0 %v3123
    %4563 = vmatpush.bf16.msra.mxu0 %v3107
    %4564 = vmatpush.bf16.msra.mxu0 %v3091
    %4565 = vmatpush.bf16.msra.mxu0 %v3075
    %4566 = vmatpush.bf16.msra.mxu0 %v3059
    %4567 = vmatpush.bf16.msra.mxu0 %v3043
    %4568 = vmatpush.bf16.msra.mxu0 %v3027
    %4569 = vmatmul.bf16.gmra.mxu0 %v929
    %v4570 = vpop.f32.mrf.mxu0
    %v4571 = vadd.f32 %v1459, %v4570
    %v4572 = vpop.f32.mrf.mxu0
    %4573 = vdwg.mxu0
    %4574 = vmatpush.bf16.msra.mxu0 %v3267
    %4575 = vmatpush.bf16.msra.mxu0 %v3251
    %4576 = vmatpush.bf16.msra.mxu0 %v3235
    %4577 = vmatpush.bf16.msra.mxu0 %v3219
    %4578 = vmatpush.bf16.msra.mxu0 %v3203
    %4579 = vmatpush.bf16.msra.mxu0 %v3187
    %4580 = vmatpush.bf16.msra.mxu0 %v3171
    %4581 = vmatpush.bf16.msra.mxu0 %v3155
    %4582 = vmatmul.bf16.gmra.mxu0 %v930
    %v4583 = vpop.f32.mrf.mxu0
    %v4584 = vadd.f32 %v4571, %v4583
    %v4585 = vpop.f32.mrf.mxu0
    %4586 = vdwg.mxu0
    %4587 = vmatpush.bf16.msra.mxu0 %v3395
    %4588 = vmatpush.bf16.msra.mxu0 %v3379
    %4589 = vmatpush.bf16.msra.mxu0 %v3363
    %4590 = vmatpush.bf16.msra.mxu0 %v3347
    %4591 = vmatpush.bf16.msra.mxu0 %v3331
    %4592 = vmatpush.bf16.msra.mxu0 %v3315
    %4593 = vmatpush.bf16.msra.mxu0 %v3299
    %4594 = vmatpush.bf16.msra.mxu0 %v3283
    %4595 = vmatmul.bf16.gmra.mxu0 %v931
    %v4596 = vpop.f32.mrf.mxu0
    %v4597 = vadd.f32 %v4584, %v4596
    %v4598 = vpop.f32.mrf.mxu0
    %4599 = vdwg.mxu0
    %4600 = vmatpush.bf16.msra.mxu0 %v3523
    %4601 = vmatpush.bf16.msra.mxu0 %v3507
    %4602 = vmatpush.bf16.msra.mxu0 %v3491
    %4603 = vmatpush.bf16.msra.mxu0 %v3475
    %4604 = vmatpush.bf16.msra.mxu0 %v3459
    %4605 = vmatpush.bf16.msra.mxu0 %v3443
    %4606 = vmatpush.bf16.msra.mxu0 %v3427
    %4607 = vmatpush.bf16.msra.mxu0 %v3411
    %4608 = vmatmul.bf16.gmra.mxu0 %v932
    %v4609 = vpop.f32.mrf.mxu0
    %v4610 = vadd.f32 %v4597, %v4609
    %v4611 = vpop.f32.mrf.mxu0
    %4612 = vdwg.mxu0
    %4613 = vmatpush.bf16.msra.mxu0 %v3140
    %4614 = vmatpush.bf16.msra.mxu0 %v3124
    %4615 = vmatpush.bf16.msra.mxu0 %v3108
    %4616 = vmatpush.bf16.msra.mxu0 %v3092
    %4617 = vmatpush.bf16.msra.mxu0 %v3076
    %4618 = vmatpush.bf16.msra.mxu0 %v3060
    %4619 = vmatpush.bf16.msra.mxu0 %v3044
    %4620 = vmatpush.bf16.msra.mxu0 %v3028
    %4621 = vmatmul.bf16.gmra.mxu0 %v929
    %v4622 = vpop.f32.mrf.mxu0
    %v4623 = vadd.f32 %v1460, %v4622
    %v4624 = vpop.f32.mrf.mxu0
    %4625 = vdwg.mxu0
    %4626 = vmatpush.bf16.msra.mxu0 %v3268
    %4627 = vmatpush.bf16.msra.mxu0 %v3252
    %4628 = vmatpush.bf16.msra.mxu0 %v3236
    %4629 = vmatpush.bf16.msra.mxu0 %v3220
    %4630 = vmatpush.bf16.msra.mxu0 %v3204
    %4631 = vmatpush.bf16.msra.mxu0 %v3188
    %4632 = vmatpush.bf16.msra.mxu0 %v3172
    %4633 = vmatpush.bf16.msra.mxu0 %v3156
    %4634 = vmatmul.bf16.gmra.mxu0 %v930
    %v4635 = vpop.f32.mrf.mxu0
    %v4636 = vadd.f32 %v4623, %v4635
    %v4637 = vpop.f32.mrf.mxu0
    %4638 = vdwg.mxu0
    %4639 = vmatpush.bf16.msra.mxu0 %v3396
    %4640 = vmatpush.bf16.msra.mxu0 %v3380
    %4641 = vmatpush.bf16.msra.mxu0 %v3364
    %4642 = vmatpush.bf16.msra.mxu0 %v3348
    %4643 = vmatpush.bf16.msra.mxu0 %v3332
    %4644 = vmatpush.bf16.msra.mxu0 %v3316
    %4645 = vmatpush.bf16.msra.mxu0 %v3300
    %4646 = vmatpush.bf16.msra.mxu0 %v3284
    %4647 = vmatmul.bf16.gmra.mxu0 %v931
    %v4648 = vpop.f32.mrf.mxu0
    %v4649 = vadd.f32 %v4636, %v4648
    %v4650 = vpop.f32.mrf.mxu0
    %4651 = vdwg.mxu0
    %4652 = vmatpush.bf16.msra.mxu0 %v3524
    %4653 = vmatpush.bf16.msra.mxu0 %v3508
    %4654 = vmatpush.bf16.msra.mxu0 %v3492
    %4655 = vmatpush.bf16.msra.mxu0 %v3476
    %4656 = vmatpush.bf16.msra.mxu0 %v3460
    %4657 = vmatpush.bf16.msra.mxu0 %v3444
    %4658 = vmatpush.bf16.msra.mxu0 %v3428
    %4659 = vmatpush.bf16.msra.mxu0 %v3412
    %4660 = vmatmul.bf16.gmra.mxu0 %v932
    %v4661 = vpop.f32.mrf.mxu0
    %v4662 = vadd.f32 %v4649, %v4661
    %v4663 = vpop.f32.mrf.mxu0
    %4664 = vdwg.mxu0
    %4665 = vmatpush.bf16.msra.mxu0 %v3141
    %4666 = vmatpush.bf16.msra.mxu0 %v3125
    %4667 = vmatpush.bf16.msra.mxu0 %v3109
    %4668 = vmatpush.bf16.msra.mxu0 %v3093
    %4669 = vmatpush.bf16.msra.mxu0 %v3077
    %4670 = vmatpush.bf16.msra.mxu0 %v3061
    %4671 = vmatpush.bf16.msra.mxu0 %v3045
    %4672 = vmatpush.bf16.msra.mxu0 %v3029
    %4673 = vmatmul.bf16.gmra.mxu0 %v929
    %v4674 = vpop.f32.mrf.mxu0
    %v4675 = vadd.f32 %v1461, %v4674
    %v4676 = vpop.f32.mrf.mxu0
    %4677 = vdwg.mxu0
    %4678 = vmatpush.bf16.msra.mxu0 %v3269
    %4679 = vmatpush.bf16.msra.mxu0 %v3253
    %4680 = vmatpush.bf16.msra.mxu0 %v3237
    %4681 = vmatpush.bf16.msra.mxu0 %v3221
    %4682 = vmatpush.bf16.msra.mxu0 %v3205
    %4683 = vmatpush.bf16.msra.mxu0 %v3189
    %4684 = vmatpush.bf16.msra.mxu0 %v3173
    %4685 = vmatpush.bf16.msra.mxu0 %v3157
    %4686 = vmatmul.bf16.gmra.mxu0 %v930
    %v4687 = vpop.f32.mrf.mxu0
    %v4688 = vadd.f32 %v4675, %v4687
    %v4689 = vpop.f32.mrf.mxu0
    %4690 = vdwg.mxu0
    %4691 = vmatpush.bf16.msra.mxu0 %v3397
    %4692 = vmatpush.bf16.msra.mxu0 %v3381
    %4693 = vmatpush.bf16.msra.mxu0 %v3365
    %4694 = vmatpush.bf16.msra.mxu0 %v3349
    %4695 = vmatpush.bf16.msra.mxu0 %v3333
    %4696 = vmatpush.bf16.msra.mxu0 %v3317
    %4697 = vmatpush.bf16.msra.mxu0 %v3301
    %4698 = vmatpush.bf16.msra.mxu0 %v3285
    %4699 = vmatmul.bf16.gmra.mxu0 %v931
    %v4700 = vpop.f32.mrf.mxu0
    %v4701 = vadd.f32 %v4688, %v4700
    %v4702 = vpop.f32.mrf.mxu0
    %4703 = vdwg.mxu0
    %4704 = vmatpush.bf16.msra.mxu0 %v3525
    %4705 = vmatpush.bf16.msra.mxu0 %v3509
    %4706 = vmatpush.bf16.msra.mxu0 %v3493
    %4707 = vmatpush.bf16.msra.mxu0 %v3477
    %4708 = vmatpush.bf16.msra.mxu0 %v3461
    %4709 = vmatpush.bf16.msra.mxu0 %v3445
    %4710 = vmatpush.bf16.msra.mxu0 %v3429
    %4711 = vmatpush.bf16.msra.mxu0 %v3413
    %4712 = vmatmul.bf16.gmra.mxu0 %v932
    %v4713 = vpop.f32.mrf.mxu0
    %v4714 = vadd.f32 %v4701, %v4713
    %v4715 = vpop.f32.mrf.mxu0
    %4716 = vdwg.mxu0
    %4717 = vmatpush.bf16.msra.mxu0 %v3142
    %4718 = vmatpush.bf16.msra.mxu0 %v3126
    %4719 = vmatpush.bf16.msra.mxu0 %v3110
    %4720 = vmatpush.bf16.msra.mxu0 %v3094
    %4721 = vmatpush.bf16.msra.mxu0 %v3078
    %4722 = vmatpush.bf16.msra.mxu0 %v3062
    %4723 = vmatpush.bf16.msra.mxu0 %v3046
    %4724 = vmatpush.bf16.msra.mxu0 %v3030
    %4725 = vmatmul.bf16.gmra.mxu0 %v929
    %v4726 = vpop.f32.mrf.mxu0
    %v4727 = vadd.f32 %v1462, %v4726
    %v4728 = vpop.f32.mrf.mxu0
    %4729 = vdwg.mxu0
    %4730 = vmatpush.bf16.msra.mxu0 %v3270
    %4731 = vmatpush.bf16.msra.mxu0 %v3254
    %4732 = vmatpush.bf16.msra.mxu0 %v3238
    %4733 = vmatpush.bf16.msra.mxu0 %v3222
    %4734 = vmatpush.bf16.msra.mxu0 %v3206
    %4735 = vmatpush.bf16.msra.mxu0 %v3190
    %4736 = vmatpush.bf16.msra.mxu0 %v3174
    %4737 = vmatpush.bf16.msra.mxu0 %v3158
    %4738 = vmatmul.bf16.gmra.mxu0 %v930
    %v4739 = vpop.f32.mrf.mxu0
    %v4740 = vadd.f32 %v4727, %v4739
    %v4741 = vpop.f32.mrf.mxu0
    %4742 = vdwg.mxu0
    %4743 = vmatpush.bf16.msra.mxu0 %v3398
    %4744 = vmatpush.bf16.msra.mxu0 %v3382
    %4745 = vmatpush.bf16.msra.mxu0 %v3366
    %4746 = vmatpush.bf16.msra.mxu0 %v3350
    %4747 = vmatpush.bf16.msra.mxu0 %v3334
    %4748 = vmatpush.bf16.msra.mxu0 %v3318
    %4749 = vmatpush.bf16.msra.mxu0 %v3302
    %4750 = vmatpush.bf16.msra.mxu0 %v3286
    %4751 = vmatmul.bf16.gmra.mxu0 %v931
    %v4752 = vpop.f32.mrf.mxu0
    %v4753 = vadd.f32 %v4740, %v4752
    %v4754 = vpop.f32.mrf.mxu0
    %4755 = vdwg.mxu0
    %4756 = vmatpush.bf16.msra.mxu0 %v3526
    %4757 = vmatpush.bf16.msra.mxu0 %v3510
    %4758 = vmatpush.bf16.msra.mxu0 %v3494
    %4759 = vmatpush.bf16.msra.mxu0 %v3478
    %4760 = vmatpush.bf16.msra.mxu0 %v3462
    %4761 = vmatpush.bf16.msra.mxu0 %v3446
    %4762 = vmatpush.bf16.msra.mxu0 %v3430
    %4763 = vmatpush.bf16.msra.mxu0 %v3414
    %4764 = vmatmul.bf16.gmra.mxu0 %v932
    %v4765 = vpop.f32.mrf.mxu0
    %v4766 = vadd.f32 %v4753, %v4765
    %v4767 = vpop.f32.mrf.mxu0
    %4768 = vdwg.mxu0
    %4769 = vmatpush.bf16.msra.mxu0 %v3143
    %4770 = vmatpush.bf16.msra.mxu0 %v3127
    %4771 = vmatpush.bf16.msra.mxu0 %v3111
    %4772 = vmatpush.bf16.msra.mxu0 %v3095
    %4773 = vmatpush.bf16.msra.mxu0 %v3079
    %4774 = vmatpush.bf16.msra.mxu0 %v3063
    %4775 = vmatpush.bf16.msra.mxu0 %v3047
    %4776 = vmatpush.bf16.msra.mxu0 %v3031
    %4777 = vmatmul.bf16.gmra.mxu0 %v929
    %v4778 = vpop.f32.mrf.mxu0
    %v4779 = vadd.f32 %v1463, %v4778
    %v4780 = vpop.f32.mrf.mxu0
    %4781 = vdwg.mxu0
    %4782 = vmatpush.bf16.msra.mxu0 %v3271
    %4783 = vmatpush.bf16.msra.mxu0 %v3255
    %4784 = vmatpush.bf16.msra.mxu0 %v3239
    %4785 = vmatpush.bf16.msra.mxu0 %v3223
    %4786 = vmatpush.bf16.msra.mxu0 %v3207
    %4787 = vmatpush.bf16.msra.mxu0 %v3191
    %4788 = vmatpush.bf16.msra.mxu0 %v3175
    %4789 = vmatpush.bf16.msra.mxu0 %v3159
    %4790 = vmatmul.bf16.gmra.mxu0 %v930
    %v4791 = vpop.f32.mrf.mxu0
    %v4792 = vadd.f32 %v4779, %v4791
    %v4793 = vpop.f32.mrf.mxu0
    %4794 = vdwg.mxu0
    %4795 = vmatpush.bf16.msra.mxu0 %v3399
    %4796 = vmatpush.bf16.msra.mxu0 %v3383
    %4797 = vmatpush.bf16.msra.mxu0 %v3367
    %4798 = vmatpush.bf16.msra.mxu0 %v3351
    %4799 = vmatpush.bf16.msra.mxu0 %v3335
    %4800 = vmatpush.bf16.msra.mxu0 %v3319
    %4801 = vmatpush.bf16.msra.mxu0 %v3303
    %4802 = vmatpush.bf16.msra.mxu0 %v3287
    %4803 = vmatmul.bf16.gmra.mxu0 %v931
    %v4804 = vpop.f32.mrf.mxu0
    %v4805 = vadd.f32 %v4792, %v4804
    %v4806 = vpop.f32.mrf.mxu0
    %4807 = vdwg.mxu0
    %4808 = vmatpush.bf16.msra.mxu0 %v3527
    %4809 = vmatpush.bf16.msra.mxu0 %v3511
    %4810 = vmatpush.bf16.msra.mxu0 %v3495
    %4811 = vmatpush.bf16.msra.mxu0 %v3479
    %4812 = vmatpush.bf16.msra.mxu0 %v3463
    %4813 = vmatpush.bf16.msra.mxu0 %v3447
    %4814 = vmatpush.bf16.msra.mxu0 %v3431
    %4815 = vmatpush.bf16.msra.mxu0 %v3415
    %4816 = vmatmul.bf16.gmra.mxu0 %v932
    %v4817 = vpop.f32.mrf.mxu0
    %v4818 = vadd.f32 %v4805, %v4817
    %v4819 = vpop.f32.mrf.mxu0
    %4820 = vdwg.mxu0
    %4821 = vmatpush.bf16.msra.mxu0 %v3144
    %4822 = vmatpush.bf16.msra.mxu0 %v3128
    %4823 = vmatpush.bf16.msra.mxu0 %v3112
    %4824 = vmatpush.bf16.msra.mxu0 %v3096
    %4825 = vmatpush.bf16.msra.mxu0 %v3080
    %4826 = vmatpush.bf16.msra.mxu0 %v3064
    %4827 = vmatpush.bf16.msra.mxu0 %v3048
    %4828 = vmatpush.bf16.msra.mxu0 %v3032
    %4829 = vmatmul.bf16.gmra.mxu0 %v929
    %v4830 = vpop.f32.mrf.mxu0
    %v4831 = vadd.f32 %v1464, %v4830
    %v4832 = vpop.f32.mrf.mxu0
    %4833 = vdwg.mxu0
    %4834 = vmatpush.bf16.msra.mxu0 %v3272
    %4835 = vmatpush.bf16.msra.mxu0 %v3256
    %4836 = vmatpush.bf16.msra.mxu0 %v3240
    %4837 = vmatpush.bf16.msra.mxu0 %v3224
    %4838 = vmatpush.bf16.msra.mxu0 %v3208
    %4839 = vmatpush.bf16.msra.mxu0 %v3192
    %4840 = vmatpush.bf16.msra.mxu0 %v3176
    %4841 = vmatpush.bf16.msra.mxu0 %v3160
    %4842 = vmatmul.bf16.gmra.mxu0 %v930
    %v4843 = vpop.f32.mrf.mxu0
    %v4844 = vadd.f32 %v4831, %v4843
    %v4845 = vpop.f32.mrf.mxu0
    %4846 = vdwg.mxu0
    %4847 = vmatpush.bf16.msra.mxu0 %v3400
    %4848 = vmatpush.bf16.msra.mxu0 %v3384
    %4849 = vmatpush.bf16.msra.mxu0 %v3368
    %4850 = vmatpush.bf16.msra.mxu0 %v3352
    %4851 = vmatpush.bf16.msra.mxu0 %v3336
    %4852 = vmatpush.bf16.msra.mxu0 %v3320
    %4853 = vmatpush.bf16.msra.mxu0 %v3304
    %4854 = vmatpush.bf16.msra.mxu0 %v3288
    %4855 = vmatmul.bf16.gmra.mxu0 %v931
    %v4856 = vpop.f32.mrf.mxu0
    %v4857 = vadd.f32 %v4844, %v4856
    %v4858 = vpop.f32.mrf.mxu0
    %4859 = vdwg.mxu0
    %4860 = vmatpush.bf16.msra.mxu0 %v3528
    %4861 = vmatpush.bf16.msra.mxu0 %v3512
    %4862 = vmatpush.bf16.msra.mxu0 %v3496
    %4863 = vmatpush.bf16.msra.mxu0 %v3480
    %4864 = vmatpush.bf16.msra.mxu0 %v3464
    %4865 = vmatpush.bf16.msra.mxu0 %v3448
    %4866 = vmatpush.bf16.msra.mxu0 %v3432
    %4867 = vmatpush.bf16.msra.mxu0 %v3416
    %4868 = vmatmul.bf16.gmra.mxu0 %v932
    %v4869 = vpop.f32.mrf.mxu0
    %v4870 = vadd.f32 %v4857, %v4869
    %v4871 = vpop.f32.mrf.mxu0
    %4872 = vdwg.mxu0
    %v4873 = vmax.f32 %v4090, 0.0
    %v4874 = vmax.f32 %v4142, 0.0
    %v4875 = vmax.f32 %v4194, 0.0
    %v4876 = vmax.f32 %v4246, 0.0
    %v4877 = vmax.f32 %v4298, 0.0
    %v4878 = vmax.f32 %v4350, 0.0
    %v4879 = vmax.f32 %v4402, 0.0
    %v4880 = vmax.f32 %v4454, 0.0
    %v4881 = vmax.f32 %v4506, 0.0
    %v4882 = vmax.f32 %v4558, 0.0
    %v4883 = vmax.f32 %v4610, 0.0
    %v4884 = vmax.f32 %v4662, 0.0
    %v4885 = vmax.f32 %v4714, 0.0
    %v4886 = vmax.f32 %v4766, 0.0
    %v4887 = vmax.f32 %v4818, 0.0
    %v4888 = vmax.f32 %v4870, 0.0
    %v4889 = vpack.c.bf16 %v4874, %v4873
    %v4890 = vpack.c.bf16 %v4876, %v4875
    %v4891 = vpack.c.bf16 %v4878, %v4877
    %v4892 = vpack.c.bf16 %v4880, %v4879
    %v4893 = vpack.c.bf16 %v4882, %v4881
    %v4894 = vpack.c.bf16 %v4884, %v4883
    %v4895 = vpack.c.bf16 %v4886, %v4885
    %v4896 = vpack.c.bf16 %v4888, %v4887
    %4897 = vst [vmem:[#allocation20] sm:$0xff] %v4889
    %4898 = vst [vmem:[#allocation20 + $0x8] sm:$0xff] %v4890
    %4899 = vst [vmem:[#allocation20 + $0x10] sm:$0xff] %v4891
    %4900 = vst [vmem:[#allocation20 + $0x18] sm:$0xff] %v4892
    %4901 = vst [vmem:[#allocation20 + $0x20] sm:$0xff] %v4893
    %4902 = vst [vmem:[#allocation20 + $0x28] sm:$0xff] %v4894
    %4903 = vst [vmem:[#allocation20 + $0x30] sm:$0xff] %v4895
    %4904 = vst [vmem:[#allocation20 + $0x38] sm:$0xff] %v4896
    // Predicated region
    $region90: #{tpu_custom_call.1} parent=1 // pred_check
      _
    $region91: #{tpu_custom_call.1} parent=1 // pred_check_branch
      %4906 = sbr.rel (0) target = $region93
    $region92: #{tpu_custom_call.1} parent=1 // pred_region
      %4908 = vsyncadd [#allocation4], 0
      %s4910 = sshll.u32 [#allocation20], 4
      %s4911 = int_to_ptr.vmem [resolvable:$true] %s4910
      %s4912 = sshll.u32 %s11, 4
      %s4913 = int_to_ptr.hbm [resolvable:$true] %s4912
      %4915 = dma.vmem_to_hbm [thread:$0]  %s4911, 1024, %s4913, [#allocation4]
    $region93: #{tpu_custom_call.1} parent=1 // pred_fallthru
      _
    // Predicated region
    $region94: #{tpu_custom_call.1} parent=1 // pred_check
      _
    $region95: #{tpu_custom_call.1} parent=1 // pred_check_branch
      %4917 = sbr.rel (0) target = $region97
    $region96: #{tpu_custom_call.1} parent=1 // pred_region
      %4919 = dma.done [#allocation4], 1024
    $region97: #{tpu_custom_call.1} parent=1 // pred_fallthru
      _
    %4920 = vsyncpa [#allocation3], 1
    %4921 = vsyncpa [#allocation6], 1
    %4922 = vsyncpa [#allocation9], 1
    %4923 = vsyncpa [#allocation12], 1
    %4924 = vsyncpa [#allocation15], 1
    %4925 = vsyncpa [#allocation18], 1
    %4926 = vsyncpa [#allocation4], 1

</llo_original>
